<compile_context>
chip_gen: v6e
topology: v6e:2x2x1
jax: 0.10.0
libtpu: 0.0.40
codegen_flags: <defaults>
</compile_context>

<pallas_src>
import jax
import jax.numpy as jnp
from jax.experimental import pallas as pl
from jax.experimental.pallas import tpu as pltpu

IN_F, H1, H2, OUT_F = 9, 6, 4, 1


def mlp_kernel(x_ref, w1_ref, b1_ref, w2_ref, b2_ref, w3_ref, b3_ref, o_ref):
    # x_ref:  (IN_F, TILE_N)  batch-on-lanes tile
    # wX_ref: (out, in)  PyTorch convention, VMEM-resident across grid steps
    # bX_ref: (out, 1)   broadcasts along lanes
    def dense_sigmoid(h, w_ref, b_ref):
        # (n_out, n_in) @ (n_in, TILE_N) on the MXU (vector-extended slot,
        # idle otherwise); HIGHEST = f32-exact multi-pass. Bias add + sigmoid
        # run on VPU/EUP, all lane-dense.
        z = jnp.dot(w_ref[...], h,
                    preferred_element_type=jnp.float32,
                    precision=jax.lax.Precision.HIGHEST)
        return jax.nn.sigmoid(z + b_ref[...])

    h = x_ref[...]                          # (9, TILE_N)
    h = dense_sigmoid(h, w1_ref, b1_ref)    # (6, TILE_N)
    h = dense_sigmoid(h, w2_ref, b2_ref)    # (4, TILE_N)
    h = dense_sigmoid(h, w3_ref, b3_ref)    # (1, TILE_N)
    o_ref[...] = h                          # lane-dense (1, TILE_N) store


def _round_up(x, m):
    return ((x + m - 1) // m) * m


def _choose_tile_n(n, tile_n_max):
    # Lane-aligned (multiple of 128) tile width. For moderate batches, split
    # in two so v7x's 2 TensorCores both get a "parallel" grid step; for large
    # batches cap at tile_n_max (many steps, per-step overhead amortized).
    if n <= 256:
        return _round_up(max(n, 1), 128)
    return min(tile_n_max, _round_up(pl.cdiv(n, 2), 128))


def mlp_forward(x, params, tile_n=None, tile_n_max=32768):
    """x: (N, 9) float32. Returns (N, 1) float32, same math as the PyTorch model."""
    w1, b1, w2, b2, w3, b3 = params          # torch convention (out, in), bias (out, 1)
    n = x.shape[0]
    # TODO(synk): have the producer emit x feature-major (9, N) so this HBM
    # relayout disappears (it is ~2x the kernel's own HBM traffic).
    x_t = x.T.astype(jnp.float32)            # (9, N): batch on lanes

    if tile_n is None:
        tile_n = _choose_tile_n(n, tile_n_max)
    num_tiles = pl.cdiv(n, tile_n)           # boundary block masked by Pallas; no pad

    const = lambda i: (0, 0)                 # weights resident across grid steps
    out = pl.pallas_call(
        mlp_kernel,
        out_shape=jax.ShapeDtypeStruct((OUT_F, n), jnp.float32),
        grid=(num_tiles,),
        in_specs=[
            pl.BlockSpec((IN_F, tile_n), lambda i: (0, i)),   # x tile
            pl.BlockSpec((H1, IN_F), const),                  # w1 (6, 9)
            pl.BlockSpec((H1, 1), const),                     # b1 (6, 1)
            pl.BlockSpec((H2, H1), const),                    # w2 (4, 6)
            pl.BlockSpec((H2, 1), const),                     # b2 (4, 1)
            pl.BlockSpec((OUT_F, H2), const),                 # w3 (1, 4)
            pl.BlockSpec((OUT_F, 1), const),                  # b3 (1, 1)
        ],
        out_specs=pl.BlockSpec((OUT_F, tile_n), lambda i: (0, i)),
        compiler_params=pltpu.CompilerParams(
            dimension_semantics=("parallel",),        # shards across v7x's 2 TCs
            vmem_limit_bytes=32 * 1024 * 1024,        # safe on 64 MiB v7x VMEM
        ),
    )(x_t, w1, b1, w2, b2, w3, b3)

    return out.T                              # (N, 1)


def init_params(key):
    # Deterministic init mimicking torch.nn.Linear default:
    # uniform(-1/sqrt(fan_in), 1/sqrt(fan_in)) for weight (out, in) and bias (out, 1).
    dims = [(H1, IN_F), (H2, H1), (OUT_F, H2)]            # (fan_out, fan_in)
    params = []
    for (fan_out, fan_in) in dims:
        key, kw, kb = jax.random.split(key, 3)
        bound = 1.0 / (fan_in ** 0.5)
        w = jax.random.uniform(kw, (fan_out, fan_in), jnp.float32, -bound, bound)
        b = jax.random.uniform(kb, (fan_out, 1), jnp.float32, -bound, bound)
        params += [w, b]
    return params


if __name__ == "__main__":
    key = jax.random.PRNGKey(0)
    key, kx = jax.random.split(key)
    # 1500 samples x 9 features: small (~54 KiB), exercises the 2-tile
    # "parallel" grid AND the un-padded boundary block (1500 % 768 != 0).
    n = 1500
    x = jax.random.normal(kx, (n, IN_F), jnp.float32)
    params = init_params(key)

    out = jax.block_until_ready(mlp_forward(x, params))

    # Reference check with plain JAX (same math as the PyTorch forward: x W^T + b),
    # using HIGHEST matmul precision to match the kernel's f32-exact MXU path.
    w1, b1, w2, b2, w3, b3 = params
    hp = jax.lax.Precision.HIGHEST
    ref = jax.nn.sigmoid(jnp.dot(x, w1.T, precision=hp) + b1.T)
    ref = jax.nn.sigmoid(jnp.dot(ref, w2.T, precision=hp) + b2.T)
    ref = jax.nn.sigmoid(jnp.dot(ref, w3.T, precision=hp) + b3.T)
    assert out.shape == (n, 1)
    assert jnp.allclose(out, ref, atol=1e-5, rtol=1e-5)
    print("KERNEL_OK")
</pallas_src>

<mosaic_0001>
module attributes {stable_mosaic.version = 11 : i64} {
  func.func @mlp_kernel(%arg0: i32, %arg1: memref<9x768xf32, #tpu.memory_space<vmem>>, %arg2: memref<6x9xf32, #tpu.memory_space<vmem>>, %arg3: memref<6x1xf32, #tpu.memory_space<vmem>>, %arg4: memref<4x6xf32, #tpu.memory_space<vmem>>, %arg5: memref<4x1xf32, #tpu.memory_space<vmem>>, %arg6: memref<1x4xf32, #tpu.memory_space<vmem>>, %arg7: memref<1x1xf32, #tpu.memory_space<vmem>>, %arg8: memref<1x768xf32, #tpu.memory_space<vmem>>) attributes {dimension_semantics = [#tpu.dimension_semantics<parallel>], iteration_bounds = array<i64: 2>, scalar_prefetch = 0 : i64, scratch_operands = 0 : i64, tpu.core_type = #tpu.core_type<tc>, window_params = [{transform_indices = @transform_0, window_bounds = array<i64: 9, 768>}, {pipeline_mode = #tpu.pipeline_mode<synchronous>, transform_indices = @transform_1, window_bounds = array<i64: 6, 9>}, {pipeline_mode = #tpu.pipeline_mode<synchronous>, transform_indices = @transform_2, window_bounds = array<i64: 6, 1>}, {pipeline_mode = #tpu.pipeline_mode<synchronous>, transform_indices = @transform_3, window_bounds = array<i64: 4, 6>}, {pipeline_mode = #tpu.pipeline_mode<synchronous>, transform_indices = @transform_4, window_bounds = array<i64: 4, 1>}, {pipeline_mode = #tpu.pipeline_mode<synchronous>, transform_indices = @transform_5, window_bounds = array<i64: 1, 4>}, {pipeline_mode = #tpu.pipeline_mode<synchronous>, transform_indices = @transform_6, window_bounds = array<i64: 1, 1>}, {transform_indices = @transform_7, window_bounds = array<i64: 1, 768>}]} {
    %c0 = arith.constant 0 : index
    %c0_0 = arith.constant 0 : index
    %0 = vector.load %arg1[%c0, %c0_0] : memref<9x768xf32, #tpu.memory_space<vmem>>, vector<9x768xf32>
    %c0_1 = arith.constant 0 : index
    %c0_2 = arith.constant 0 : index
    %1 = vector.load %arg2[%c0_1, %c0_2] : memref<6x9xf32, #tpu.memory_space<vmem>>, vector<6x9xf32>
    %cst = arith.constant dense<0.000000e+00> : vector<6x768xf32>
    %2 = tpu.matmul %1, %0, %cst {dimension_numbers = #tpu.dot_dimension_numbers<[1], [0], [0], [1], [0, 0, 1, 1], [], []>, precision = #tpu.contract_precision<fp32>} : vector<6x9xf32>, vector<9x768xf32>, vector<6x768xf32> -> vector<6x768xf32>
    %c0_3 = arith.constant 0 : index
    %c0_4 = arith.constant 0 : index
    %3 = vector.load %arg3[%c0_3, %c0_4] : memref<6x1xf32, #tpu.memory_space<vmem>>, vector<6x1xf32>
    %4 = vector.broadcast %3 : vector<6x1xf32> to vector<6x768xf32>
    %5 = arith.addf %2, %4 : vector<6x768xf32>
    %6 = arith.negf %5 : vector<6x768xf32>
    %7 = math.exp %6 : vector<6x768xf32>
    %cst_5 = arith.constant 1.000000e+00 : f32
    %8 = vector.broadcast %cst_5 : f32 to vector<6x768xf32>
    %9 = arith.addf %8, %7 : vector<6x768xf32>
    %10 = arith.divf %8, %9 : vector<6x768xf32>
    %c0_6 = arith.constant 0 : index
    %c0_7 = arith.constant 0 : index
    %11 = vector.load %arg4[%c0_6, %c0_7] : memref<4x6xf32, #tpu.memory_space<vmem>>, vector<4x6xf32>
    %cst_8 = arith.constant dense<0.000000e+00> : vector<4x768xf32>
    %12 = tpu.matmul %11, %10, %cst_8 {dimension_numbers = #tpu.dot_dimension_numbers<[1], [0], [0], [1], [0, 0, 1, 1], [], []>, precision = #tpu.contract_precision<fp32>} : vector<4x6xf32>, vector<6x768xf32>, vector<4x768xf32> -> vector<4x768xf32>
    %c0_9 = arith.constant 0 : index
    %c0_10 = arith.constant 0 : index
    %13 = vector.load %arg5[%c0_9, %c0_10] : memref<4x1xf32, #tpu.memory_space<vmem>>, vector<4x1xf32>
    %14 = vector.broadcast %13 : vector<4x1xf32> to vector<4x768xf32>
    %15 = arith.addf %12, %14 : vector<4x768xf32>
    %16 = arith.negf %15 : vector<4x768xf32>
    %17 = math.exp %16 : vector<4x768xf32>
    %cst_11 = arith.constant 1.000000e+00 : f32
    %18 = vector.broadcast %cst_11 : f32 to vector<4x768xf32>
    %19 = arith.addf %18, %17 : vector<4x768xf32>
    %20 = arith.divf %18, %19 : vector<4x768xf32>
    %c0_12 = arith.constant 0 : index
    %c0_13 = arith.constant 0 : index
    %21 = vector.load %arg6[%c0_12, %c0_13] : memref<1x4xf32, #tpu.memory_space<vmem>>, vector<1x4xf32>
    %cst_14 = arith.constant dense<0.000000e+00> : vector<1x768xf32>
    %22 = tpu.matmul %21, %20, %cst_14 {dimension_numbers = #tpu.dot_dimension_numbers<[1], [0], [0], [1], [0, 0, 1, 1], [], []>, precision = #tpu.contract_precision<fp32>} : vector<1x4xf32>, vector<4x768xf32>, vector<1x768xf32> -> vector<1x768xf32>
    %c0_15 = arith.constant 0 : index
    %c0_16 = arith.constant 0 : index
    %23 = vector.load %arg7[%c0_15, %c0_16] : memref<1x1xf32, #tpu.memory_space<vmem>>, vector<1x1xf32>
    %24 = vector.broadcast %23 : vector<1x1xf32> to vector<1x768xf32>
    %25 = arith.addf %22, %24 : vector<1x768xf32>
    %26 = arith.negf %25 : vector<1x768xf32>
    %27 = math.exp %26 : vector<1x768xf32>
    %cst_17 = arith.constant 1.000000e+00 : f32
    %28 = vector.broadcast %cst_17 : f32 to vector<1x768xf32>
    %29 = arith.addf %28, %27 : vector<1x768xf32>
    %30 = arith.divf %28, %29 : vector<1x768xf32>
    %c0_18 = arith.constant 0 : index
    %c0_19 = arith.constant 0 : index
    %31 = vector.load %arg8[%c0_18, %c0_19] : memref<1x768xf32, #tpu.memory_space<vmem>>, vector<1x768xf32>
    tpu.vector_store %arg8[%c0_18, %c0_19], %30 {strides = array<i32>} : memref<1x768xf32, #tpu.memory_space<vmem>>, vector<1x768xf32>,
    return
  }
  func.func @transform_0(%arg0: i32) -> (i32, i32) {
    %c0_i32 = arith.constant 0 : i32
    %c0_i32_0 = arith.constant 0 : i32
    return %c0_i32, %arg0 : i32, i32
  }
  func.func @transform_1(%arg0: i32) -> (i32, i32) {
    %c0_i32 = arith.constant 0 : i32
    %c0_i32_0 = arith.constant 0 : i32
    %c0_i32_1 = arith.constant 0 : i32
    return %c0_i32, %c0_i32_0 : i32, i32
  }
  func.func @transform_2(%arg0: i32) -> (i32, i32) {
    %c0_i32 = arith.constant 0 : i32
    %c0_i32_0 = arith.constant 0 : i32
    %c0_i32_1 = arith.constant 0 : i32
    return %c0_i32, %c0_i32_0 : i32, i32
  }
  func.func @transform_3(%arg0: i32) -> (i32, i32) {
    %c0_i32 = arith.constant 0 : i32
    %c0_i32_0 = arith.constant 0 : i32
    %c0_i32_1 = arith.constant 0 : i32
    return %c0_i32, %c0_i32_0 : i32, i32
  }
  func.func @transform_4(%arg0: i32) -> (i32, i32) {
    %c0_i32 = arith.constant 0 : i32
    %c0_i32_0 = arith.constant 0 : i32
    %c0_i32_1 = arith.constant 0 : i32
    return %c0_i32, %c0_i32_0 : i32, i32
  }
  func.func @transform_5(%arg0: i32) -> (i32, i32) {
    %c0_i32 = arith.constant 0 : i32
    %c0_i32_0 = arith.constant 0 : i32
    %c0_i32_1 = arith.constant 0 : i32
    return %c0_i32, %c0_i32_0 : i32, i32
  }
  func.func @transform_6(%arg0: i32) -> (i32, i32) {
    %c0_i32 = arith.constant 0 : i32
    %c0_i32_0 = arith.constant 0 : i32
    %c0_i32_1 = arith.constant 0 : i32
    return %c0_i32, %c0_i32_0 : i32, i32
  }
  func.func @transform_7(%arg0: i32) -> (i32, i32) {
    %c0_i32 = arith.constant 0 : i32
    %c0_i32_0 = arith.constant 0 : i32
    return %c0_i32, %arg0 : i32, i32
  }
}

</mosaic_0001>

<llo_original>
// kernel: tpu_custom_call.1
$region0: #{tpu_custom_call.1}
  #allocation0 [shape = 'u32[]', space=smem, size = 0x4, offset = 0x4, fixed_abs, tag = 'smem constant byte address 0x4 - core index']
  #allocation1 [shape = 'u32[144,128]{1,0:T(1,128)}', space=vmem, size = 0x12000, scoped, tag = 'internal scratch']
  #allocation2 [shape = 'f32[1,1]{1,0:T(1,128)S(1)}', space=vmem, size = 0x200, scoped, tag = 'scoped memory for tpu_custom_call.1']
  %s0 = inlined_call_operand.hbm [shape: f32[9,1500], index: 0, kind: input, shape index: {}]
  %s1 = inlined_call_operand.vmem [shape: f32[6,9], index: 1, kind: input, shape index: {}]
  %s2 = inlined_call_operand.vmem [shape: f32[6,1], index: 2, kind: input, shape index: {}]
  %s3 = inlined_call_operand.vmem [shape: f32[4,6], index: 3, kind: input, shape index: {}]
  %s4 = inlined_call_operand.vmem [shape: f32[4,1], index: 4, kind: input, shape index: {}]
  %s5 = inlined_call_operand.vmem [shape: f32[1,4], index: 5, kind: input, shape index: {}]
  %s6 = inlined_call_operand.<no memory space> [shape: f32[1,1], index: 6, kind: input, shape index: {}]
  %s7 = inlined_call_operand.hbm [shape: f32[1,1500], index: 7, kind: output, shape index: {}]
  %s8 = sld [smem:[#allocation0]]
  $region65: #{tpu_custom_call.1} parent=0
    _
  %s10 = ssub.s32 1, %s8
  %s11 = scalar_select 0, %s10, %s8
  %v12 = vstv %s6
  %13 = vst [vmem:[#allocation2] sm:$0x1] %v12
  $region1: #{tpu_custom_call.1} parent=0
    #allocation3 [shape = 'u8[98304]{0}', space=vmem, size = 0x18000, scoped, tag = 'input window, operand 0']
    #allocation4 [shape = 's32[2]{0}', space=sflag, size = 0x8, scoped, tag = 'scoped memory for tpu_custom_call.1']
    #allocation5 [shape = 's32[2]{0}', space=sflag, size = 0x8, scoped, tag = 'scoped memory for tpu_custom_call.1']
    #allocation6 [shape = 'u8[6144]{0}', space=vmem, size = 0x1800, scoped, tag = 'output window, operand 0']
    %14 = vsyncpa [#allocation4], 0
    %s15 = scalar_lea.sflag [#allocation4], 1
    %16 = vsyncpa %s15, 0
    %17 = vsyncpa [#allocation5], 0
    %s18 = scalar_lea.sflag [#allocation5], 1
    %19 = vsyncpa %s18, 0
    loop: start=0, step=1, limit=4
    $region2: #{tpu_custom_call.1} parent=1 // loop_pre_header
      _
    $region3: #{tpu_custom_call.1} parent=1 // loop_header
      %s21 = sphi 0, %s25
      %p22 = scmp.ge.s32.totalorder %s21, 4
      %s31 = sphi 0, %s33
      %s34 = sphi 0, %s31
      %s35 = sphi 0, %s34
      %s51 = sphi 0, %s35
      %s55 = sphi 0, %s55
      %s57 = sphi 0, %s55
      %s58 = sphi 0, %s57
      %s72 = sphi 0, %s58
      %s76 = sphi 0, %s76
      %s78 = sphi 0, %s76
      %s79 = sphi 0, %s78
      %s93 = sphi 0, %s79
      %s97 = sphi 0, %s97
      %s99 = sphi 0, %s97
      %s100 = sphi 0, %s99
      %s114 = sphi 0, %s100
      %s118 = sphi 0, %s118
      %s120 = sphi 0, %s118
      %s121 = sphi 0, %s120
      %s135 = sphi 0, %s121
      %s139 = sphi 0, %s139
      %s141 = sphi 0, %s139
      %s142 = sphi 0, %s141
      %s156 = sphi 0, %s142
      %s160 = sphi 0, %s160
      %s162 = sphi 0, %s160
      %s163 = sphi 0, %s162
      %s177 = sphi 0, %s163
      %s183 = sphi 0, %s185
      %s186 = sphi 0, %s183
      %s187 = sphi 0, %s186
      %s203 = sphi 0, %s187
    $region4: #{tpu_custom_call.1} parent=1 // loop_header_branch
      %24 = sbr.rel (%p22) target = $region8
    $region5: #{tpu_custom_call.1} parent=1 // loop_body
      %s26 = ssub.s32 %s21, 1
      %s27 = ssub.s32 %s21, 2
      %s28 = sadd.s32 %s21, 1
      %s29 = ssub.s32 %s21, %s28
      %p30 = scmp.eq.s32.totalorder %s29, 0
      %s32 = sadd.s32 %s31, 1
      %s33 = scalar_select %p30, %s31, %s32
      %p36 = pneg %p30
      %p37 = scmp.eq.s32.totalorder %s21, 1
      %p38 = por %p36, %p37
      %p39 = scmp.ne.s32.totalorder %s31, %s34
      %p40 = scmp.eq.s32.totalorder %s21, 0
      %p41 = por %p39, %p40
      %p42 = scmp.ne.s32.totalorder %s31, %s34
      %p43 = scmp.eq.s32.totalorder %s26, 1
      %p44 = por %p42, %p43
      %p45 = scmp.ne.s32.totalorder %s34, %s35
      %p46 = scmp.eq.s32.totalorder %s26, 0
      %p47 = por %p45, %p46
      %p48 = scmp.ne.s32.totalorder %s34, %s35
      %p49 = scmp.eq.s32.totalorder %s27, 1
      %p50 = por %p48, %p49
      %p52 = scmp.ne.s32.totalorder %s35, %s51
      %p53 = scmp.eq.s32.totalorder %s27, 0
      %p54 = por %p52, %p53
      %s56 = sadd.s32 %s55, 1
      %p59 = scmp.eq.s32.totalorder %s21, 1
      %p60 = scmp.ne.s32.totalorder %s55, %s57
      %p61 = scmp.eq.s32.totalorder %s21, 0
      %p62 = por %p60, %p61
      %p63 = scmp.ne.s32.totalorder %s55, %s57
      %p64 = scmp.eq.s32.totalorder %s26, 1
      %p65 = por %p63, %p64
      %p66 = scmp.ne.s32.totalorder %s57, %s58
      %p67 = scmp.eq.s32.totalorder %s26, 0
      %p68 = por %p66, %p67
      %p69 = scmp.ne.s32.totalorder %s57, %s58
      %p70 = scmp.eq.s32.totalorder %s27, 1
      %p71 = por %p69, %p70
      %p73 = scmp.ne.s32.totalorder %s58, %s72
      %p74 = scmp.eq.s32.totalorder %s27, 0
      %p75 = por %p73, %p74
      %s77 = sadd.s32 %s76, 1
      %p80 = scmp.eq.s32.totalorder %s21, 1
      %p81 = scmp.ne.s32.totalorder %s76, %s78
      %p82 = scmp.eq.s32.totalorder %s21, 0
      %p83 = por %p81, %p82
      %p84 = scmp.ne.s32.totalorder %s76, %s78
      %p85 = scmp.eq.s32.totalorder %s26, 1
      %p86 = por %p84, %p85
      %p87 = scmp.ne.s32.totalorder %s78, %s79
      %p88 = scmp.eq.s32.totalorder %s26, 0
      %p89 = por %p87, %p88
      %p90 = scmp.ne.s32.totalorder %s78, %s79
      %p91 = scmp.eq.s32.totalorder %s27, 1
      %p92 = por %p90, %p91
      %p94 = scmp.ne.s32.totalorder %s79, %s93
      %p95 = scmp.eq.s32.totalorder %s27, 0
      %p96 = por %p94, %p95
      %s98 = sadd.s32 %s97, 1
      %p101 = scmp.eq.s32.totalorder %s21, 1
      %p102 = scmp.ne.s32.totalorder %s97, %s99
      %p103 = scmp.eq.s32.totalorder %s21, 0
      %p104 = por %p102, %p103
      %p105 = scmp.ne.s32.totalorder %s97, %s99
      %p106 = scmp.eq.s32.totalorder %s26, 1
      %p107 = por %p105, %p106
      %p108 = scmp.ne.s32.totalorder %s99, %s100
      %p109 = scmp.eq.s32.totalorder %s26, 0
      %p110 = por %p108, %p109
      %p111 = scmp.ne.s32.totalorder %s99, %s100
      %p112 = scmp.eq.s32.totalorder %s27, 1
      %p113 = por %p111, %p112
      %p115 = scmp.ne.s32.totalorder %s100, %s114
      %p116 = scmp.eq.s32.totalorder %s27, 0
      %p117 = por %p115, %p116
      %s119 = sadd.s32 %s118, 1
      %p122 = scmp.eq.s32.totalorder %s21, 1
      %p123 = scmp.ne.s32.totalorder %s118, %s120
      %p124 = scmp.eq.s32.totalorder %s21, 0
      %p125 = por %p123, %p124
      %p126 = scmp.ne.s32.totalorder %s118, %s120
      %p127 = scmp.eq.s32.totalorder %s26, 1
      %p128 = por %p126, %p127
      %p129 = scmp.ne.s32.totalorder %s120, %s121
      %p130 = scmp.eq.s32.totalorder %s26, 0
      %p131 = por %p129, %p130
      %p132 = scmp.ne.s32.totalorder %s120, %s121
      %p133 = scmp.eq.s32.totalorder %s27, 1
      %p134 = por %p132, %p133
      %p136 = scmp.ne.s32.totalorder %s121, %s135
      %p137 = scmp.eq.s32.totalorder %s27, 0
      %p138 = por %p136, %p137
      %s140 = sadd.s32 %s139, 1
      %p143 = scmp.eq.s32.totalorder %s21, 1
      %p144 = scmp.ne.s32.totalorder %s139, %s141
      %p145 = scmp.eq.s32.totalorder %s21, 0
      %p146 = por %p144, %p145
      %p147 = scmp.ne.s32.totalorder %s139, %s141
      %p148 = scmp.eq.s32.totalorder %s26, 1
      %p149 = por %p147, %p148
      %p150 = scmp.ne.s32.totalorder %s141, %s142
      %p151 = scmp.eq.s32.totalorder %s26, 0
      %p152 = por %p150, %p151
      %p153 = scmp.ne.s32.totalorder %s141, %s142
      %p154 = scmp.eq.s32.totalorder %s27, 1
      %p155 = por %p153, %p154
      %p157 = scmp.ne.s32.totalorder %s142, %s156
      %p158 = scmp.eq.s32.totalorder %s27, 0
      %p159 = por %p157, %p158
      %s161 = sadd.s32 %s160, 1
      %p164 = scmp.eq.s32.totalorder %s21, 1
      %p165 = scmp.ne.s32.totalorder %s160, %s162
      %p166 = scmp.eq.s32.totalorder %s21, 0
      %p167 = por %p165, %p166
      %p168 = scmp.ne.s32.totalorder %s160, %s162
      %p169 = scmp.eq.s32.totalorder %s26, 1
      %p170 = por %p168, %p169
      %p171 = scmp.ne.s32.totalorder %s162, %s163
      %p172 = scmp.eq.s32.totalorder %s26, 0
      %p173 = por %p171, %p172
      %p174 = scmp.ne.s32.totalorder %s162, %s163
      %p175 = scmp.eq.s32.totalorder %s27, 1
      %p176 = por %p174, %p175
      %p178 = scmp.ne.s32.totalorder %s163, %s177
      %p179 = scmp.eq.s32.totalorder %s27, 0
      %p180 = por %p178, %p179
      %s181 = ssub.s32 %s21, %s28
      %p182 = scmp.eq.s32.totalorder %s181, 0
      %s184 = sadd.s32 %s183, 1
      %s185 = scalar_select %p182, %s183, %s184
      %p188 = pneg %p182
      %p189 = scmp.eq.s32.totalorder %s21, 1
      %p190 = por %p188, %p189
      %p191 = scmp.ne.s32.totalorder %s183, %s186
      %p192 = scmp.eq.s32.totalorder %s21, 0
      %p193 = por %p191, %p192
      %p194 = scmp.ne.s32.totalorder %s183, %s186
      %p195 = scmp.eq.s32.totalorder %s26, 1
      %p196 = por %p194, %p195
      %p197 = scmp.ne.s32.totalorder %s186, %s187
      %p198 = scmp.eq.s32.totalorder %s26, 0
      %p199 = por %p197, %p198
      %p200 = scmp.ne.s32.totalorder %s186, %s187
      %p201 = scmp.eq.s32.totalorder %s27, 1
      %p202 = por %p200, %p201
      %p204 = scmp.ne.s32.totalorder %s187, %s203
      %p205 = scmp.eq.s32.totalorder %s27, 0
      %p206 = por %p204, %p205
      %p207 = scmp.le.s32.totalorder 1, %s21
      %p208 = scmp.lt.s32.totalorder %s21, 3
      %p209 = pnand %p207, %p208
      %p210 = pneg %p209
      // Predicated region
      $region9: #{tpu_custom_call.1} parent=5 // pred_check
        _
      $region10: #{tpu_custom_call.1} parent=5 // pred_check_branch
        %212 = sbr.rel (%p209) target = $region12
      $region11: #{tpu_custom_call.1} parent=5 // pred_region
        %s213 = ssub.s32 %s21, 1
        // Predicated region
        $region13: #{tpu_custom_call.1} parent=11 // pred_check
          %p214 = pneg %p68
        $region14: #{tpu_custom_call.1} parent=11 // pred_check_branch
          %216 = sbr.rel (%p214) target = $region16
        $region15: #{tpu_custom_call.1} parent=11 // pred_region
          _
        $region16: #{tpu_custom_call.1} parent=11 // pred_fallthru
          _
        // Predicated region
        $region17: #{tpu_custom_call.1} parent=11 // pred_check
          %p217 = pneg %p89
        $region18: #{tpu_custom_call.1} parent=11 // pred_check_branch
          %219 = sbr.rel (%p217) target = $region20
        $region19: #{tpu_custom_call.1} parent=11 // pred_region
          _
        $region20: #{tpu_custom_call.1} parent=11 // pred_fallthru
          _
        // Predicated region
        $region21: #{tpu_custom_call.1} parent=11 // pred_check
          %p220 = pneg %p110
        $region22: #{tpu_custom_call.1} parent=11 // pred_check_branch
          %222 = sbr.rel (%p220) target = $region24
        $region23: #{tpu_custom_call.1} parent=11 // pred_region
          _
        $region24: #{tpu_custom_call.1} parent=11 // pred_fallthru
          _
        // Predicated region
        $region25: #{tpu_custom_call.1} parent=11 // pred_check
          %p223 = pneg %p131
        $region26: #{tpu_custom_call.1} parent=11 // pred_check_branch
          %225 = sbr.rel (%p223) target = $region28
        $region27: #{tpu_custom_call.1} parent=11 // pred_region
          _
        $region28: #{tpu_custom_call.1} parent=11 // pred_fallthru
          _
        // Predicated region
        $region29: #{tpu_custom_call.1} parent=11 // pred_check
          %p226 = pneg %p152
        $region30: #{tpu_custom_call.1} parent=11 // pred_check_branch
          %228 = sbr.rel (%p226) target = $region32
        $region31: #{tpu_custom_call.1} parent=11 // pred_region
          _
        $region32: #{tpu_custom_call.1} parent=11 // pred_fallthru
          _
        // Predicated region
        $region33: #{tpu_custom_call.1} parent=11 // pred_check
          %p229 = pneg %p173
        $region34: #{tpu_custom_call.1} parent=11 // pred_check_branch
          %231 = sbr.rel (%p229) target = $region36
        $region35: #{tpu_custom_call.1} parent=11 // pred_region
          _
        $region36: #{tpu_custom_call.1} parent=11 // pred_fallthru
          _
      $region12: #{tpu_custom_call.1} parent=5 // pred_fallthru
        _
      %p232 = scmp.lt.s32.totalorder %s21, 2
      // Predicated region
      $region37: #{tpu_custom_call.1} parent=5 // pred_check
        %p233 = pneg %p232
      $region38: #{tpu_custom_call.1} parent=5 // pred_check_branch
        %235 = sbr.rel (%p233) target = $region40
      $region39: #{tpu_custom_call.1} parent=5 // pred_region
        // Predicated region
        $region41: #{tpu_custom_call.1} parent=39 // pred_check
          %p236 = pneg %p41
        $region42: #{tpu_custom_call.1} parent=39 // pred_check_branch
          %238 = sbr.rel (%p236) target = $region44
        $region43: #{tpu_custom_call.1} parent=39 // pred_region
          %s239 = sand.u32 %s31, 1
          %s240 = scalar_lea.sflag [#allocation4], %s239
          %s241 = sand.u32 %s31, 1
          %s242 = smul.addr %s241, 96
          %s243 = scalar_lea.vmem [#allocation3], %s242
          %s244 = smul.u32 6, %s21
          %s246 = ssub.s32 1536, 1536
          %247 = vsyncadd %s240, %s246
          %s248 = smul.addr %s244, 128
          %s249 = scalar_lea.hbm %s0, %s248
          %s250 = sshll.u32 %s243, 4
          %s251 = int_to_ptr.vmem [resolvable:$true] %s250
          %256 = dma.hbm_to_vmem [thread:$0]  %s249, 1536, %s251, %s240, 1536, 768, 48
        $region44: #{tpu_custom_call.1} parent=39 // pred_fallthru
          _
      $region40: #{tpu_custom_call.1} parent=5 // pred_fallthru
        _
      %p257 = scmp.le.s32.totalorder 1, %s21
      %p258 = scmp.lt.s32.totalorder %s21, 3
      %p259 = pnand %p257, %p258
      %p260 = pneg %p259
      // Predicated region
      $region45: #{tpu_custom_call.1} parent=5 // pred_check
        _
      $region46: #{tpu_custom_call.1} parent=5 // pred_check_branch
        %262 = sbr.rel (%p259) target = $region48
      $region47: #{tpu_custom_call.1} parent=5 // pred_region
        %s263 = ssub.s32 %s21, 1
        %s264 = sand.u32 %s34, 1
        %s265 = scalar_lea.sflag [#allocation4], %s264
        %s266 = sand.u32 %s34, 1
        %s267 = smul.addr %s266, 96
        %s268 = scalar_lea.vmem [#allocation3], %s267
        // Predicated region
        $region49: #{tpu_custom_call.1} parent=47 // pred_check
          %p269 = pneg %p47
        $region50: #{tpu_custom_call.1} parent=47 // pred_check_branch
          %271 = sbr.rel (%p269) target = $region52
        $region51: #{tpu_custom_call.1} parent=47 // pred_region
          %272 = dma.done %s265, 1536
        $region52: #{tpu_custom_call.1} parent=47 // pred_fallthru
          _
        %s273 = sand.u32 %s34, 1
        %s274 = scalar_lea.sflag [#allocation4], %s273
        %s275 = sand.u32 %s34, 1
        %s276 = smul.addr %s275, 96
        %s277 = scalar_lea.vmem [#allocation3], %s276
        %p278 = pneg %p47
        %p279 = pneg %p44
        %p280 = pneg %p68
        %p281 = pneg %p65
        %p282 = pneg %p89
        %p283 = pneg %p86
        %p284 = pneg %p110
        %p285 = pneg %p107
        %p286 = pneg %p131
        %p287 = pneg %p128
        %p288 = pneg %p152
        %p289 = pneg %p149
        %p290 = pneg %p173
        %p291 = pneg %p170
        %p292 = pneg %p199
        %p293 = pneg %p196
        %s294 = sand.u32 %s186, 1
        %s295 = scalar_lea.sflag [#allocation5], %s294
        %s296 = sand.u32 %s186, 1
        %s297 = smul.addr %s296, 6
        %s298 = scalar_lea.vmem [#allocation6], %s297
        %s299 = smul.u32 6, %s26
        %s300 = smul.u32 6, %s26
        %v301 = vld [vmem:[%s268] sm:$0xff]
        %v302 = vld [vmem:[%s268 + $0x8] sm:$0xff]
        %v303 = vld [vmem:[%s268 + $0x10] sm:$0xff]
        %v304 = vld [vmem:[%s268 + $0x18] sm:$0xff]
        %v305 = vld [vmem:[%s268 + $0x20] sm:$0xff]
        %v306 = vld [vmem:[%s268 + $0x28] sm:$0xff]
        %v307 = vld [vmem:[%s268 + $0x30] sm:$0x1]
        %v308 = vld [vmem:[%s268 + $0x38] sm:$0x1]
        %v309 = vld [vmem:[%s268 + $0x40] sm:$0x1]
        %v310 = vld [vmem:[%s268 + $0x48] sm:$0x1]
        %v311 = vld [vmem:[%s268 + $0x50] sm:$0x1]
        %v312 = vld [vmem:[%s268 + $0x58] sm:$0x1]
        %v313 = vld [vmem:[%s1] sm:$0x3f]
        %v314 = vld [vmem:[%s2] sm:$0x3f]
        %316 = vset.pattern.permute.xlu0 0
        %317 = vperm.xlu0 %316, %v314
        %v318 = vpop.permute.xlu0 %317
        %vm320 = vcmask 72704
        %v322 = vsel %vm320, %v313, 0
        %vm324 = vcmask 1040384
        %v326 = vsel %vm324, %v307, 0
        %v329 = vsel %vm324, %v308, 0
        %v332 = vsel %vm324, %v309, 0
        %v335 = vsel %vm324, %v310, 0
        %v338 = vsel %vm324, %v311, 0
        %v341 = vsel %vm324, %v312, 0
        %343 = vmatprep.subr.mxu0 0.0
        %344 = vmatpush1.msra.mxu0 0.0
        %345 = vmatprep.subr.mxu0 0.0
        %346 = vmatpush1.msra.mxu0 0.0
        %347 = vmatprep.subr.mxu0 0.0
        %348 = vmatpush1.msra.mxu0 0.0
        %349 = vmatprep.subr.mxu0 0.0
        %350 = vmatpush1.msra.mxu0 0.0
        %351 = vmatprep.subr.mxu0 0.0
        %352 = vmatpush1.msra.mxu0 0.0
        %353 = vmatprep.subr.mxu0 0.0
        %354 = vmatpush1.msra.mxu0 0.0
        %355 = vmatprep.subr.mxu0 0.0
        %356 = vmatpush1.msra.mxu0 0.0
        %357 = vmatprep.subr.mxu0 0.0
        %358 = vmatpush1.msra.mxu0 0.0
        %359 = vmatprep.subr.mxu0 0.0
        %360 = vmatpush1.msra.mxu0 0.0
        %361 = vmatprep.subr.mxu0 0.0
        %362 = vmatpush1.msra.mxu0 0.0
        %363 = vmatprep.subr.mxu0 0.0
        %364 = vmatpush1.msra.mxu0 0.0
        %365 = vmatprep.subr.mxu0 0.0
        %366 = vmatpush1.msra.mxu0 0.0
        %367 = vmatprep.subr.mxu0 0.0
        %368 = vmatpush1.msra.mxu0 0.0
        %369 = vmatprep.subr.mxu0 0.0
        %370 = vmatpush1.msra.mxu0 0.0
        %v371 = vand.u32 %v329, 4294901760
        %372 = vmatprep.subr.mxu0 %v371
        %v373 = vand.u32 %v326, 4294901760
        %374 = vmatpush1.msra.mxu0 %v373
        %v375 = vand.u32 %v302, 4294901760
        %376 = vmatprep.subr.mxu0 %v375
        %v377 = vand.u32 %v301, 4294901760
        %378 = vmatpush1.msra.mxu0 %v377
        %379 = vmatprep.subr.mxu0 0.0
        %380 = vmatpush2.msra.mxu0 0.0
        %381 = vmatprep.subr.mxu0 0.0
        %382 = vmatpush2.msra.mxu0 0.0
        %383 = vmatprep.subr.mxu0 0.0
        %384 = vmatpush2.msra.mxu0 0.0
        %385 = vmatprep.subr.mxu0 0.0
        %386 = vmatpush2.msra.mxu0 0.0
        %387 = vmatprep.subr.mxu0 0.0
        %388 = vmatpush2.msra.mxu0 0.0
        %389 = vmatprep.subr.mxu0 0.0
        %390 = vmatpush2.msra.mxu0 0.0
        %391 = vmatprep.subr.mxu0 0.0
        %392 = vmatpush2.msra.mxu0 0.0
        %393 = vmatprep.subr.mxu0 0.0
        %394 = vmatpush2.msra.mxu0 0.0
        %395 = vmatprep.subr.mxu0 0.0
        %396 = vmatpush2.msra.mxu0 0.0
        %397 = vmatprep.subr.mxu0 0.0
        %398 = vmatpush2.msra.mxu0 0.0
        %399 = vmatprep.subr.mxu0 0.0
        %400 = vmatpush2.msra.mxu0 0.0
        %401 = vmatprep.subr.mxu0 0.0
        %402 = vmatpush2.msra.mxu0 0.0
        %403 = vmatprep.subr.mxu0 0.0
        %404 = vmatpush2.msra.mxu0 0.0
        %405 = vmatprep.subr.mxu0 0.0
        %406 = vmatpush2.msra.mxu0 0.0
        %407 = vmatprep.subr.mxu0 0.0
        %408 = vmatpush2.msra.mxu0 0.0
        %409 = vmatprep.subr.mxu0 0.0
        %410 = vmatpush2.msra.mxu0 0.0
        %411 = vmatprep.mubr.f32.mxu0 0.0
        %v412 = vand.u32 %v322, 4294901760
        %v413 = vsub.f32 %v322, %v412
        %v414 = vand.u32 %v413, 4294901760
        %v415 = vsub.f32 %v413, %v414
        %v416 = vand.u32 %v415, 4294901760
        %417 = vmatmul.mubr.f32.gmra.mxu0 %v416
        %v418 = vpop.f32.mrf.mxu0
        %v419 = vadd.f32 %v318, %v418
        %v420 = vpop.f32.mrf.mxu0
        %v421 = vadd.f32 %v318, %v420
        %422 = vdwg.mxu0
        %423 = vmatprep.subr.mxu0 0.0
        %424 = vmatpush1.msra.mxu0 0.0
        %425 = vmatprep.subr.mxu0 0.0
        %426 = vmatpush1.msra.mxu0 0.0
        %427 = vmatprep.subr.mxu0 0.0
        %428 = vmatpush1.msra.mxu0 0.0
        %429 = vmatprep.subr.mxu0 0.0
        %430 = vmatpush1.msra.mxu0 0.0
        %431 = vmatprep.subr.mxu0 0.0
        %432 = vmatpush1.msra.mxu0 0.0
        %433 = vmatprep.subr.mxu0 0.0
        %434 = vmatpush1.msra.mxu0 0.0
        %435 = vmatprep.subr.mxu0 0.0
        %436 = vmatpush1.msra.mxu0 0.0
        %437 = vmatprep.subr.mxu0 0.0
        %438 = vmatpush1.msra.mxu0 0.0
        %439 = vmatprep.subr.mxu0 0.0
        %440 = vmatpush1.msra.mxu0 0.0
        %441 = vmatprep.subr.mxu0 0.0
        %442 = vmatpush1.msra.mxu0 0.0
        %443 = vmatprep.subr.mxu0 0.0
        %444 = vmatpush1.msra.mxu0 0.0
        %445 = vmatprep.subr.mxu0 0.0
        %446 = vmatpush1.msra.mxu0 0.0
        %447 = vmatprep.subr.mxu0 0.0
        %448 = vmatpush1.msra.mxu0 0.0
        %449 = vmatprep.subr.mxu0 0.0
        %450 = vmatpush1.msra.mxu0 0.0
        %v451 = vand.u32 %v329, 4294901760
        %v452 = vsub.f32 %v329, %v451
        %v453 = vand.u32 %v452, 4294901760
        %v454 = vsub.f32 %v452, %v453
        %v455 = vand.u32 %v454, 4294901760
        %456 = vmatprep.subr.mxu0 %v455
        %v457 = vand.u32 %v326, 4294901760
        %v458 = vsub.f32 %v326, %v457
        %v459 = vand.u32 %v458, 4294901760
        %v460 = vsub.f32 %v458, %v459
        %v461 = vand.u32 %v460, 4294901760
        %462 = vmatpush1.msra.mxu0 %v461
        %v463 = vand.u32 %v302, 4294901760
        %v464 = vsub.f32 %v302, %v463
        %v465 = vand.u32 %v464, 4294901760
        %v466 = vsub.f32 %v464, %v465
        %v467 = vand.u32 %v466, 4294901760
        %468 = vmatprep.subr.mxu0 %v467
        %v469 = vand.u32 %v301, 4294901760
        %v470 = vsub.f32 %v301, %v469
        %v471 = vand.u32 %v470, 4294901760
        %v472 = vsub.f32 %v470, %v471
        %v473 = vand.u32 %v472, 4294901760
        %474 = vmatpush1.msra.mxu0 %v473
        %475 = vmatprep.subr.mxu0 0.0
        %476 = vmatpush2.msra.mxu0 0.0
        %477 = vmatprep.subr.mxu0 0.0
        %478 = vmatpush2.msra.mxu0 0.0
        %479 = vmatprep.subr.mxu0 0.0
        %480 = vmatpush2.msra.mxu0 0.0
        %481 = vmatprep.subr.mxu0 0.0
        %482 = vmatpush2.msra.mxu0 0.0
        %483 = vmatprep.subr.mxu0 0.0
        %484 = vmatpush2.msra.mxu0 0.0
        %485 = vmatprep.subr.mxu0 0.0
        %486 = vmatpush2.msra.mxu0 0.0
        %487 = vmatprep.subr.mxu0 0.0
        %488 = vmatpush2.msra.mxu0 0.0
        %489 = vmatprep.subr.mxu0 0.0
        %490 = vmatpush2.msra.mxu0 0.0
        %491 = vmatprep.subr.mxu0 0.0
        %492 = vmatpush2.msra.mxu0 0.0
        %493 = vmatprep.subr.mxu0 0.0
        %494 = vmatpush2.msra.mxu0 0.0
        %495 = vmatprep.subr.mxu0 0.0
        %496 = vmatpush2.msra.mxu0 0.0
        %497 = vmatprep.subr.mxu0 0.0
        %498 = vmatpush2.msra.mxu0 0.0
        %499 = vmatprep.subr.mxu0 0.0
        %500 = vmatpush2.msra.mxu0 0.0
        %501 = vmatprep.subr.mxu0 0.0
        %502 = vmatpush2.msra.mxu0 0.0
        %503 = vmatprep.subr.mxu0 0.0
        %504 = vmatpush2.msra.mxu0 0.0
        %505 = vmatprep.subr.mxu0 0.0
        %506 = vmatpush2.msra.mxu0 0.0
        %507 = vmatprep.mubr.f32.mxu0 0.0
        %v508 = vand.u32 %v322, 4294901760
        %509 = vmatmul.mubr.f32.gmra.mxu0 %v508
        %v510 = vpop.f32.mrf.mxu0
        %v511 = vadd.f32 %v419, %v510
        %v512 = vpop.f32.mrf.mxu0
        %v513 = vadd.f32 %v421, %v512
        %514 = vdwg.mxu0
        %515 = vmatprep.subr.mxu0 0.0
        %516 = vmatpush1.msra.mxu0 0.0
        %517 = vmatprep.subr.mxu0 0.0
        %518 = vmatpush1.msra.mxu0 0.0
        %519 = vmatprep.subr.mxu0 0.0
        %520 = vmatpush1.msra.mxu0 0.0
        %521 = vmatprep.subr.mxu0 0.0
        %522 = vmatpush1.msra.mxu0 0.0
        %523 = vmatprep.subr.mxu0 0.0
        %524 = vmatpush1.msra.mxu0 0.0
        %525 = vmatprep.subr.mxu0 0.0
        %526 = vmatpush1.msra.mxu0 0.0
        %527 = vmatprep.subr.mxu0 0.0
        %528 = vmatpush1.msra.mxu0 0.0
        %529 = vmatprep.subr.mxu0 0.0
        %530 = vmatpush1.msra.mxu0 0.0
        %531 = vmatprep.subr.mxu0 0.0
        %532 = vmatpush1.msra.mxu0 0.0
        %533 = vmatprep.subr.mxu0 0.0
        %534 = vmatpush1.msra.mxu0 0.0
        %535 = vmatprep.subr.mxu0 0.0
        %536 = vmatpush1.msra.mxu0 0.0
        %537 = vmatprep.subr.mxu0 0.0
        %538 = vmatpush1.msra.mxu0 0.0
        %539 = vmatprep.subr.mxu0 0.0
        %540 = vmatpush1.msra.mxu0 0.0
        %541 = vmatprep.subr.mxu0 0.0
        %542 = vmatpush1.msra.mxu0 0.0
        %v543 = vand.u32 %v329, 4294901760
        %v544 = vsub.f32 %v329, %v543
        %545 = vmatprep.subr.mxu0 %v544
        %v546 = vand.u32 %v326, 4294901760
        %v547 = vsub.f32 %v326, %v546
        %548 = vmatpush1.msra.mxu0 %v547
        %v549 = vand.u32 %v302, 4294901760
        %v550 = vsub.f32 %v302, %v549
        %551 = vmatprep.subr.mxu0 %v550
        %v552 = vand.u32 %v301, 4294901760
        %v553 = vsub.f32 %v301, %v552
        %554 = vmatpush1.msra.mxu0 %v553
        %555 = vmatprep.subr.mxu0 0.0
        %556 = vmatpush2.msra.mxu0 0.0
        %557 = vmatprep.subr.mxu0 0.0
        %558 = vmatpush2.msra.mxu0 0.0
        %559 = vmatprep.subr.mxu0 0.0
        %560 = vmatpush2.msra.mxu0 0.0
        %561 = vmatprep.subr.mxu0 0.0
        %562 = vmatpush2.msra.mxu0 0.0
        %563 = vmatprep.subr.mxu0 0.0
        %564 = vmatpush2.msra.mxu0 0.0
        %565 = vmatprep.subr.mxu0 0.0
        %566 = vmatpush2.msra.mxu0 0.0
        %567 = vmatprep.subr.mxu0 0.0
        %568 = vmatpush2.msra.mxu0 0.0
        %569 = vmatprep.subr.mxu0 0.0
        %570 = vmatpush2.msra.mxu0 0.0
        %571 = vmatprep.subr.mxu0 0.0
        %572 = vmatpush2.msra.mxu0 0.0
        %573 = vmatprep.subr.mxu0 0.0
        %574 = vmatpush2.msra.mxu0 0.0
        %575 = vmatprep.subr.mxu0 0.0
        %576 = vmatpush2.msra.mxu0 0.0
        %577 = vmatprep.subr.mxu0 0.0
        %578 = vmatpush2.msra.mxu0 0.0
        %579 = vmatprep.subr.mxu0 0.0
        %580 = vmatpush2.msra.mxu0 0.0
        %581 = vmatprep.subr.mxu0 0.0
        %582 = vmatpush2.msra.mxu0 0.0
        %583 = vmatprep.subr.mxu0 0.0
        %584 = vmatpush2.msra.mxu0 0.0
        %585 = vmatprep.subr.mxu0 0.0
        %586 = vmatpush2.msra.mxu0 0.0
        %587 = vmatprep.mubr.f32.mxu0 0.0
        %v588 = vand.u32 %v322, 4294901760
        %v589 = vsub.f32 %v322, %v588
        %590 = vmatmul.mubr.f32.gmra.mxu0 %v589
        %v591 = vpop.f32.mrf.mxu0
        %v592 = vadd.f32 %v511, %v591
        %v593 = vpop.f32.mrf.mxu0
        %v594 = vadd.f32 %v513, %v593
        %595 = vdwg.mxu0
        %596 = vmatprep.subr.mxu0 0.0
        %597 = vmatpush1.msra.mxu0 0.0
        %598 = vmatprep.subr.mxu0 0.0
        %599 = vmatpush1.msra.mxu0 0.0
        %600 = vmatprep.subr.mxu0 0.0
        %601 = vmatpush1.msra.mxu0 0.0
        %602 = vmatprep.subr.mxu0 0.0
        %603 = vmatpush1.msra.mxu0 0.0
        %604 = vmatprep.subr.mxu0 0.0
        %605 = vmatpush1.msra.mxu0 0.0
        %606 = vmatprep.subr.mxu0 0.0
        %607 = vmatpush1.msra.mxu0 0.0
        %608 = vmatprep.subr.mxu0 0.0
        %609 = vmatpush1.msra.mxu0 0.0
        %610 = vmatprep.subr.mxu0 0.0
        %611 = vmatpush1.msra.mxu0 0.0
        %612 = vmatprep.subr.mxu0 0.0
        %613 = vmatpush1.msra.mxu0 0.0
        %614 = vmatprep.subr.mxu0 0.0
        %615 = vmatpush1.msra.mxu0 0.0
        %616 = vmatprep.subr.mxu0 0.0
        %617 = vmatpush1.msra.mxu0 0.0
        %618 = vmatprep.subr.mxu0 0.0
        %619 = vmatpush1.msra.mxu0 0.0
        %620 = vmatprep.subr.mxu0 0.0
        %621 = vmatpush1.msra.mxu0 0.0
        %622 = vmatprep.subr.mxu0 0.0
        %623 = vmatpush1.msra.mxu0 0.0
        %v624 = vand.u32 %v329, 4294901760
        %625 = vmatprep.subr.mxu0 %v624
        %v626 = vand.u32 %v326, 4294901760
        %627 = vmatpush1.msra.mxu0 %v626
        %v628 = vand.u32 %v302, 4294901760
        %629 = vmatprep.subr.mxu0 %v628
        %v630 = vand.u32 %v301, 4294901760
        %631 = vmatpush1.msra.mxu0 %v630
        %632 = vmatprep.subr.mxu0 0.0
        %633 = vmatpush2.msra.mxu0 0.0
        %634 = vmatprep.subr.mxu0 0.0
        %635 = vmatpush2.msra.mxu0 0.0
        %636 = vmatprep.subr.mxu0 0.0
        %637 = vmatpush2.msra.mxu0 0.0
        %638 = vmatprep.subr.mxu0 0.0
        %639 = vmatpush2.msra.mxu0 0.0
        %640 = vmatprep.subr.mxu0 0.0
        %641 = vmatpush2.msra.mxu0 0.0
        %642 = vmatprep.subr.mxu0 0.0
        %643 = vmatpush2.msra.mxu0 0.0
        %644 = vmatprep.subr.mxu0 0.0
        %645 = vmatpush2.msra.mxu0 0.0
        %646 = vmatprep.subr.mxu0 0.0
        %647 = vmatpush2.msra.mxu0 0.0
        %648 = vmatprep.subr.mxu0 0.0
        %649 = vmatpush2.msra.mxu0 0.0
        %650 = vmatprep.subr.mxu0 0.0
        %651 = vmatpush2.msra.mxu0 0.0
        %652 = vmatprep.subr.mxu0 0.0
        %653 = vmatpush2.msra.mxu0 0.0
        %654 = vmatprep.subr.mxu0 0.0
        %655 = vmatpush2.msra.mxu0 0.0
        %656 = vmatprep.subr.mxu0 0.0
        %657 = vmatpush2.msra.mxu0 0.0
        %658 = vmatprep.subr.mxu0 0.0
        %659 = vmatpush2.msra.mxu0 0.0
        %660 = vmatprep.subr.mxu0 0.0
        %661 = vmatpush2.msra.mxu0 0.0
        %662 = vmatprep.subr.mxu0 0.0
        %663 = vmatpush2.msra.mxu0 0.0
        %664 = vmatprep.mubr.f32.mxu0 0.0
        %v665 = vand.u32 %v322, 4294901760
        %v666 = vsub.f32 %v322, %v665
        %v667 = vand.u32 %v666, 4294901760
        %668 = vmatmul.mubr.f32.gmra.mxu0 %v667
        %v669 = vpop.f32.mrf.mxu0
        %v670 = vadd.f32 %v592, %v669
        %v671 = vpop.f32.mrf.mxu0
        %v672 = vadd.f32 %v594, %v671
        %673 = vdwg.mxu0
        %674 = vmatprep.subr.mxu0 0.0
        %675 = vmatpush1.msra.mxu0 0.0
        %676 = vmatprep.subr.mxu0 0.0
        %677 = vmatpush1.msra.mxu0 0.0
        %678 = vmatprep.subr.mxu0 0.0
        %679 = vmatpush1.msra.mxu0 0.0
        %680 = vmatprep.subr.mxu0 0.0
        %681 = vmatpush1.msra.mxu0 0.0
        %682 = vmatprep.subr.mxu0 0.0
        %683 = vmatpush1.msra.mxu0 0.0
        %684 = vmatprep.subr.mxu0 0.0
        %685 = vmatpush1.msra.mxu0 0.0
        %686 = vmatprep.subr.mxu0 0.0
        %687 = vmatpush1.msra.mxu0 0.0
        %688 = vmatprep.subr.mxu0 0.0
        %689 = vmatpush1.msra.mxu0 0.0
        %690 = vmatprep.subr.mxu0 0.0
        %691 = vmatpush1.msra.mxu0 0.0
        %692 = vmatprep.subr.mxu0 0.0
        %693 = vmatpush1.msra.mxu0 0.0
        %694 = vmatprep.subr.mxu0 0.0
        %695 = vmatpush1.msra.mxu0 0.0
        %696 = vmatprep.subr.mxu0 0.0
        %697 = vmatpush1.msra.mxu0 0.0
        %698 = vmatprep.subr.mxu0 0.0
        %699 = vmatpush1.msra.mxu0 0.0
        %700 = vmatprep.subr.mxu0 0.0
        %701 = vmatpush1.msra.mxu0 0.0
        %v702 = vand.u32 %v329, 4294901760
        %v703 = vsub.f32 %v329, %v702
        %v704 = vand.u32 %v703, 4294901760
        %705 = vmatprep.subr.mxu0 %v704
        %v706 = vand.u32 %v326, 4294901760
        %v707 = vsub.f32 %v326, %v706
        %v708 = vand.u32 %v707, 4294901760
        %709 = vmatpush1.msra.mxu0 %v708
        %v710 = vand.u32 %v302, 4294901760
        %v711 = vsub.f32 %v302, %v710
        %v712 = vand.u32 %v711, 4294901760
        %713 = vmatprep.subr.mxu0 %v712
        %v714 = vand.u32 %v301, 4294901760
        %v715 = vsub.f32 %v301, %v714
        %v716 = vand.u32 %v715, 4294901760
        %717 = vmatpush1.msra.mxu0 %v716
        %718 = vmatprep.subr.mxu0 0.0
        %719 = vmatpush2.msra.mxu0 0.0
        %720 = vmatprep.subr.mxu0 0.0
        %721 = vmatpush2.msra.mxu0 0.0
        %722 = vmatprep.subr.mxu0 0.0
        %723 = vmatpush2.msra.mxu0 0.0
        %724 = vmatprep.subr.mxu0 0.0
        %725 = vmatpush2.msra.mxu0 0.0
        %726 = vmatprep.subr.mxu0 0.0
        %727 = vmatpush2.msra.mxu0 0.0
        %728 = vmatprep.subr.mxu0 0.0
        %729 = vmatpush2.msra.mxu0 0.0
        %730 = vmatprep.subr.mxu0 0.0
        %731 = vmatpush2.msra.mxu0 0.0
        %732 = vmatprep.subr.mxu0 0.0
        %733 = vmatpush2.msra.mxu0 0.0
        %734 = vmatprep.subr.mxu0 0.0
        %735 = vmatpush2.msra.mxu0 0.0
        %736 = vmatprep.subr.mxu0 0.0
        %737 = vmatpush2.msra.mxu0 0.0
        %738 = vmatprep.subr.mxu0 0.0
        %739 = vmatpush2.msra.mxu0 0.0
        %740 = vmatprep.subr.mxu0 0.0
        %741 = vmatpush2.msra.mxu0 0.0
        %742 = vmatprep.subr.mxu0 0.0
        %743 = vmatpush2.msra.mxu0 0.0
        %744 = vmatprep.subr.mxu0 0.0
        %745 = vmatpush2.msra.mxu0 0.0
        %746 = vmatprep.subr.mxu0 0.0
        %747 = vmatpush2.msra.mxu0 0.0
        %748 = vmatprep.subr.mxu0 0.0
        %749 = vmatpush2.msra.mxu0 0.0
        %750 = vmatprep.mubr.f32.mxu0 0.0
        %v751 = vand.u32 %v322, 4294901760
        %752 = vmatmul.mubr.f32.gmra.mxu0 %v751
        %v753 = vpop.f32.mrf.mxu0
        %v754 = vadd.f32 %v670, %v753
        %v755 = vpop.f32.mrf.mxu0
        %v756 = vadd.f32 %v672, %v755
        %757 = vdwg.mxu0
        %758 = vmatprep.subr.mxu0 0.0
        %759 = vmatpush1.msra.mxu0 0.0
        %760 = vmatprep.subr.mxu0 0.0
        %761 = vmatpush1.msra.mxu0 0.0
        %762 = vmatprep.subr.mxu0 0.0
        %763 = vmatpush1.msra.mxu0 0.0
        %764 = vmatprep.subr.mxu0 0.0
        %765 = vmatpush1.msra.mxu0 0.0
        %766 = vmatprep.subr.mxu0 0.0
        %767 = vmatpush1.msra.mxu0 0.0
        %768 = vmatprep.subr.mxu0 0.0
        %769 = vmatpush1.msra.mxu0 0.0
        %770 = vmatprep.subr.mxu0 0.0
        %771 = vmatpush1.msra.mxu0 0.0
        %772 = vmatprep.subr.mxu0 0.0
        %773 = vmatpush1.msra.mxu0 0.0
        %774 = vmatprep.subr.mxu0 0.0
        %775 = vmatpush1.msra.mxu0 0.0
        %776 = vmatprep.subr.mxu0 0.0
        %777 = vmatpush1.msra.mxu0 0.0
        %778 = vmatprep.subr.mxu0 0.0
        %779 = vmatpush1.msra.mxu0 0.0
        %780 = vmatprep.subr.mxu0 0.0
        %781 = vmatpush1.msra.mxu0 0.0
        %782 = vmatprep.subr.mxu0 0.0
        %783 = vmatpush1.msra.mxu0 0.0
        %784 = vmatprep.subr.mxu0 0.0
        %785 = vmatpush1.msra.mxu0 0.0
        %v786 = vand.u32 %v329, 4294901760
        %787 = vmatprep.subr.mxu0 %v786
        %v788 = vand.u32 %v326, 4294901760
        %789 = vmatpush1.msra.mxu0 %v788
        %v790 = vand.u32 %v302, 4294901760
        %791 = vmatprep.subr.mxu0 %v790
        %v792 = vand.u32 %v301, 4294901760
        %793 = vmatpush1.msra.mxu0 %v792
        %794 = vmatprep.subr.mxu0 0.0
        %795 = vmatpush2.msra.mxu0 0.0
        %796 = vmatprep.subr.mxu0 0.0
        %797 = vmatpush2.msra.mxu0 0.0
        %798 = vmatprep.subr.mxu0 0.0
        %799 = vmatpush2.msra.mxu0 0.0
        %800 = vmatprep.subr.mxu0 0.0
        %801 = vmatpush2.msra.mxu0 0.0
        %802 = vmatprep.subr.mxu0 0.0
        %803 = vmatpush2.msra.mxu0 0.0
        %804 = vmatprep.subr.mxu0 0.0
        %805 = vmatpush2.msra.mxu0 0.0
        %806 = vmatprep.subr.mxu0 0.0
        %807 = vmatpush2.msra.mxu0 0.0
        %808 = vmatprep.subr.mxu0 0.0
        %809 = vmatpush2.msra.mxu0 0.0
        %810 = vmatprep.subr.mxu0 0.0
        %811 = vmatpush2.msra.mxu0 0.0
        %812 = vmatprep.subr.mxu0 0.0
        %813 = vmatpush2.msra.mxu0 0.0
        %814 = vmatprep.subr.mxu0 0.0
        %815 = vmatpush2.msra.mxu0 0.0
        %816 = vmatprep.subr.mxu0 0.0
        %817 = vmatpush2.msra.mxu0 0.0
        %818 = vmatprep.subr.mxu0 0.0
        %819 = vmatpush2.msra.mxu0 0.0
        %820 = vmatprep.subr.mxu0 0.0
        %821 = vmatpush2.msra.mxu0 0.0
        %822 = vmatprep.subr.mxu0 0.0
        %823 = vmatpush2.msra.mxu0 0.0
        %824 = vmatprep.subr.mxu0 0.0
        %825 = vmatpush2.msra.mxu0 0.0
        %826 = vmatprep.mubr.f32.mxu0 0.0
        %v827 = vand.u32 %v322, 4294901760
        %828 = vmatmul.mubr.f32.gmra.mxu0 %v827
        %v829 = vpop.f32.mrf.mxu0
        %v830 = vadd.f32 %v754, %v829
        %v831 = vpop.f32.mrf.mxu0
        %v832 = vadd.f32 %v756, %v831
        %833 = vdwg.mxu0
        %834 = vmatprep.subr.mxu0 0.0
        %835 = vmatpush1.msra.mxu0 0.0
        %836 = vmatprep.subr.mxu0 0.0
        %837 = vmatpush1.msra.mxu0 0.0
        %838 = vmatprep.subr.mxu0 0.0
        %839 = vmatpush1.msra.mxu0 0.0
        %840 = vmatprep.subr.mxu0 0.0
        %841 = vmatpush1.msra.mxu0 0.0
        %842 = vmatprep.subr.mxu0 0.0
        %843 = vmatpush1.msra.mxu0 0.0
        %844 = vmatprep.subr.mxu0 0.0
        %845 = vmatpush1.msra.mxu0 0.0
        %846 = vmatprep.subr.mxu0 0.0
        %847 = vmatpush1.msra.mxu0 0.0
        %848 = vmatprep.subr.mxu0 0.0
        %849 = vmatpush1.msra.mxu0 0.0
        %850 = vmatprep.subr.mxu0 0.0
        %851 = vmatpush1.msra.mxu0 0.0
        %852 = vmatprep.subr.mxu0 0.0
        %853 = vmatpush1.msra.mxu0 0.0
        %854 = vmatprep.subr.mxu0 0.0
        %855 = vmatpush1.msra.mxu0 0.0
        %856 = vmatprep.subr.mxu0 0.0
        %857 = vmatpush1.msra.mxu0 0.0
        %858 = vmatprep.subr.mxu0 0.0
        %859 = vmatpush1.msra.mxu0 0.0
        %860 = vmatprep.subr.mxu0 0.0
        %861 = vmatpush1.msra.mxu0 0.0
        %v862 = vand.u32 %v335, 4294901760
        %863 = vmatprep.subr.mxu0 %v862
        %v864 = vand.u32 %v332, 4294901760
        %865 = vmatpush1.msra.mxu0 %v864
        %v866 = vand.u32 %v304, 4294901760
        %867 = vmatprep.subr.mxu0 %v866
        %v868 = vand.u32 %v303, 4294901760
        %869 = vmatpush1.msra.mxu0 %v868
        %870 = vmatprep.subr.mxu0 0.0
        %871 = vmatpush2.msra.mxu0 0.0
        %872 = vmatprep.subr.mxu0 0.0
        %873 = vmatpush2.msra.mxu0 0.0
        %874 = vmatprep.subr.mxu0 0.0
        %875 = vmatpush2.msra.mxu0 0.0
        %876 = vmatprep.subr.mxu0 0.0
        %877 = vmatpush2.msra.mxu0 0.0
        %878 = vmatprep.subr.mxu0 0.0
        %879 = vmatpush2.msra.mxu0 0.0
        %880 = vmatprep.subr.mxu0 0.0
        %881 = vmatpush2.msra.mxu0 0.0
        %882 = vmatprep.subr.mxu0 0.0
        %883 = vmatpush2.msra.mxu0 0.0
        %884 = vmatprep.subr.mxu0 0.0
        %885 = vmatpush2.msra.mxu0 0.0
        %886 = vmatprep.subr.mxu0 0.0
        %887 = vmatpush2.msra.mxu0 0.0
        %888 = vmatprep.subr.mxu0 0.0
        %889 = vmatpush2.msra.mxu0 0.0
        %890 = vmatprep.subr.mxu0 0.0
        %891 = vmatpush2.msra.mxu0 0.0
        %892 = vmatprep.subr.mxu0 0.0
        %893 = vmatpush2.msra.mxu0 0.0
        %894 = vmatprep.subr.mxu0 0.0
        %895 = vmatpush2.msra.mxu0 0.0
        %896 = vmatprep.subr.mxu0 0.0
        %897 = vmatpush2.msra.mxu0 0.0
        %898 = vmatprep.subr.mxu0 0.0
        %899 = vmatpush2.msra.mxu0 0.0
        %900 = vmatprep.subr.mxu0 0.0
        %901 = vmatpush2.msra.mxu0 0.0
        %902 = vmatprep.mubr.f32.mxu0 0.0
        %v903 = vand.u32 %v322, 4294901760
        %v904 = vsub.f32 %v322, %v903
        %v905 = vand.u32 %v904, 4294901760
        %v906 = vsub.f32 %v904, %v905
        %v907 = vand.u32 %v906, 4294901760
        %908 = vmatmul.mubr.f32.gmra.mxu0 %v907
        %v909 = vpop.f32.mrf.mxu0
        %v910 = vadd.f32 %v318, %v909
        %v911 = vpop.f32.mrf.mxu0
        %v912 = vadd.f32 %v318, %v911
        %913 = vdwg.mxu0
        %914 = vmatprep.subr.mxu0 0.0
        %915 = vmatpush1.msra.mxu0 0.0
        %916 = vmatprep.subr.mxu0 0.0
        %917 = vmatpush1.msra.mxu0 0.0
        %918 = vmatprep.subr.mxu0 0.0
        %919 = vmatpush1.msra.mxu0 0.0
        %920 = vmatprep.subr.mxu0 0.0
        %921 = vmatpush1.msra.mxu0 0.0
        %922 = vmatprep.subr.mxu0 0.0
        %923 = vmatpush1.msra.mxu0 0.0
        %924 = vmatprep.subr.mxu0 0.0
        %925 = vmatpush1.msra.mxu0 0.0
        %926 = vmatprep.subr.mxu0 0.0
        %927 = vmatpush1.msra.mxu0 0.0
        %928 = vmatprep.subr.mxu0 0.0
        %929 = vmatpush1.msra.mxu0 0.0
        %930 = vmatprep.subr.mxu0 0.0
        %931 = vmatpush1.msra.mxu0 0.0
        %932 = vmatprep.subr.mxu0 0.0
        %933 = vmatpush1.msra.mxu0 0.0
        %934 = vmatprep.subr.mxu0 0.0
        %935 = vmatpush1.msra.mxu0 0.0
        %936 = vmatprep.subr.mxu0 0.0
        %937 = vmatpush1.msra.mxu0 0.0
        %938 = vmatprep.subr.mxu0 0.0
        %939 = vmatpush1.msra.mxu0 0.0
        %940 = vmatprep.subr.mxu0 0.0
        %941 = vmatpush1.msra.mxu0 0.0
        %v942 = vand.u32 %v335, 4294901760
        %v943 = vsub.f32 %v335, %v942
        %v944 = vand.u32 %v943, 4294901760
        %v945 = vsub.f32 %v943, %v944
        %v946 = vand.u32 %v945, 4294901760
        %947 = vmatprep.subr.mxu0 %v946
        %v948 = vand.u32 %v332, 4294901760
        %v949 = vsub.f32 %v332, %v948
        %v950 = vand.u32 %v949, 4294901760
        %v951 = vsub.f32 %v949, %v950
        %v952 = vand.u32 %v951, 4294901760
        %953 = vmatpush1.msra.mxu0 %v952
        %v954 = vand.u32 %v304, 4294901760
        %v955 = vsub.f32 %v304, %v954
        %v956 = vand.u32 %v955, 4294901760
        %v957 = vsub.f32 %v955, %v956
        %v958 = vand.u32 %v957, 4294901760
        %959 = vmatprep.subr.mxu0 %v958
        %v960 = vand.u32 %v303, 4294901760
        %v961 = vsub.f32 %v303, %v960
        %v962 = vand.u32 %v961, 4294901760
        %v963 = vsub.f32 %v961, %v962
        %v964 = vand.u32 %v963, 4294901760
        %965 = vmatpush1.msra.mxu0 %v964
        %966 = vmatprep.subr.mxu0 0.0
        %967 = vmatpush2.msra.mxu0 0.0
        %968 = vmatprep.subr.mxu0 0.0
        %969 = vmatpush2.msra.mxu0 0.0
        %970 = vmatprep.subr.mxu0 0.0
        %971 = vmatpush2.msra.mxu0 0.0
        %972 = vmatprep.subr.mxu0 0.0
        %973 = vmatpush2.msra.mxu0 0.0
        %974 = vmatprep.subr.mxu0 0.0
        %975 = vmatpush2.msra.mxu0 0.0
        %976 = vmatprep.subr.mxu0 0.0
        %977 = vmatpush2.msra.mxu0 0.0
        %978 = vmatprep.subr.mxu0 0.0
        %979 = vmatpush2.msra.mxu0 0.0
        %980 = vmatprep.subr.mxu0 0.0
        %981 = vmatpush2.msra.mxu0 0.0
        %982 = vmatprep.subr.mxu0 0.0
        %983 = vmatpush2.msra.mxu0 0.0
        %984 = vmatprep.subr.mxu0 0.0
        %985 = vmatpush2.msra.mxu0 0.0
        %986 = vmatprep.subr.mxu0 0.0
        %987 = vmatpush2.msra.mxu0 0.0
        %988 = vmatprep.subr.mxu0 0.0
        %989 = vmatpush2.msra.mxu0 0.0
        %990 = vmatprep.subr.mxu0 0.0
        %991 = vmatpush2.msra.mxu0 0.0
        %992 = vmatprep.subr.mxu0 0.0
        %993 = vmatpush2.msra.mxu0 0.0
        %994 = vmatprep.subr.mxu0 0.0
        %995 = vmatpush2.msra.mxu0 0.0
        %996 = vmatprep.subr.mxu0 0.0
        %997 = vmatpush2.msra.mxu0 0.0
        %998 = vmatprep.mubr.f32.mxu0 0.0
        %v999 = vand.u32 %v322, 4294901760
        %1000 = vmatmul.mubr.f32.gmra.mxu0 %v999
        %v1001 = vpop.f32.mrf.mxu0
        %v1002 = vadd.f32 %v910, %v1001
        %v1003 = vpop.f32.mrf.mxu0
        %v1004 = vadd.f32 %v912, %v1003
        %1005 = vdwg.mxu0
        %1006 = vmatprep.subr.mxu0 0.0
        %1007 = vmatpush1.msra.mxu0 0.0
        %1008 = vmatprep.subr.mxu0 0.0
        %1009 = vmatpush1.msra.mxu0 0.0
        %1010 = vmatprep.subr.mxu0 0.0
        %1011 = vmatpush1.msra.mxu0 0.0
        %1012 = vmatprep.subr.mxu0 0.0
        %1013 = vmatpush1.msra.mxu0 0.0
        %1014 = vmatprep.subr.mxu0 0.0
        %1015 = vmatpush1.msra.mxu0 0.0
        %1016 = vmatprep.subr.mxu0 0.0
        %1017 = vmatpush1.msra.mxu0 0.0
        %1018 = vmatprep.subr.mxu0 0.0
        %1019 = vmatpush1.msra.mxu0 0.0
        %1020 = vmatprep.subr.mxu0 0.0
        %1021 = vmatpush1.msra.mxu0 0.0
        %1022 = vmatprep.subr.mxu0 0.0
        %1023 = vmatpush1.msra.mxu0 0.0
        %1024 = vmatprep.subr.mxu0 0.0
        %1025 = vmatpush1.msra.mxu0 0.0
        %1026 = vmatprep.subr.mxu0 0.0
        %1027 = vmatpush1.msra.mxu0 0.0
        %1028 = vmatprep.subr.mxu0 0.0
        %1029 = vmatpush1.msra.mxu0 0.0
        %1030 = vmatprep.subr.mxu0 0.0
        %1031 = vmatpush1.msra.mxu0 0.0
        %1032 = vmatprep.subr.mxu0 0.0
        %1033 = vmatpush1.msra.mxu0 0.0
        %v1034 = vand.u32 %v335, 4294901760
        %v1035 = vsub.f32 %v335, %v1034
        %1036 = vmatprep.subr.mxu0 %v1035
        %v1037 = vand.u32 %v332, 4294901760
        %v1038 = vsub.f32 %v332, %v1037
        %1039 = vmatpush1.msra.mxu0 %v1038
        %v1040 = vand.u32 %v304, 4294901760
        %v1041 = vsub.f32 %v304, %v1040
        %1042 = vmatprep.subr.mxu0 %v1041
        %v1043 = vand.u32 %v303, 4294901760
        %v1044 = vsub.f32 %v303, %v1043
        %1045 = vmatpush1.msra.mxu0 %v1044
        %1046 = vmatprep.subr.mxu0 0.0
        %1047 = vmatpush2.msra.mxu0 0.0
        %1048 = vmatprep.subr.mxu0 0.0
        %1049 = vmatpush2.msra.mxu0 0.0
        %1050 = vmatprep.subr.mxu0 0.0
        %1051 = vmatpush2.msra.mxu0 0.0
        %1052 = vmatprep.subr.mxu0 0.0
        %1053 = vmatpush2.msra.mxu0 0.0
        %1054 = vmatprep.subr.mxu0 0.0
        %1055 = vmatpush2.msra.mxu0 0.0
        %1056 = vmatprep.subr.mxu0 0.0
        %1057 = vmatpush2.msra.mxu0 0.0
        %1058 = vmatprep.subr.mxu0 0.0
        %1059 = vmatpush2.msra.mxu0 0.0
        %1060 = vmatprep.subr.mxu0 0.0
        %1061 = vmatpush2.msra.mxu0 0.0
        %1062 = vmatprep.subr.mxu0 0.0
        %1063 = vmatpush2.msra.mxu0 0.0
        %1064 = vmatprep.subr.mxu0 0.0
        %1065 = vmatpush2.msra.mxu0 0.0
        %1066 = vmatprep.subr.mxu0 0.0
        %1067 = vmatpush2.msra.mxu0 0.0
        %1068 = vmatprep.subr.mxu0 0.0
        %1069 = vmatpush2.msra.mxu0 0.0
        %1070 = vmatprep.subr.mxu0 0.0
        %1071 = vmatpush2.msra.mxu0 0.0
        %1072 = vmatprep.subr.mxu0 0.0
        %1073 = vmatpush2.msra.mxu0 0.0
        %1074 = vmatprep.subr.mxu0 0.0
        %1075 = vmatpush2.msra.mxu0 0.0
        %1076 = vmatprep.subr.mxu0 0.0
        %1077 = vmatpush2.msra.mxu0 0.0
        %1078 = vmatprep.mubr.f32.mxu0 0.0
        %v1079 = vand.u32 %v322, 4294901760
        %v1080 = vsub.f32 %v322, %v1079
        %1081 = vmatmul.mubr.f32.gmra.mxu0 %v1080
        %v1082 = vpop.f32.mrf.mxu0
        %v1083 = vadd.f32 %v1002, %v1082
        %v1084 = vpop.f32.mrf.mxu0
        %v1085 = vadd.f32 %v1004, %v1084
        %1086 = vdwg.mxu0
        %1087 = vmatprep.subr.mxu0 0.0
        %1088 = vmatpush1.msra.mxu0 0.0
        %1089 = vmatprep.subr.mxu0 0.0
        %1090 = vmatpush1.msra.mxu0 0.0
        %1091 = vmatprep.subr.mxu0 0.0
        %1092 = vmatpush1.msra.mxu0 0.0
        %1093 = vmatprep.subr.mxu0 0.0
        %1094 = vmatpush1.msra.mxu0 0.0
        %1095 = vmatprep.subr.mxu0 0.0
        %1096 = vmatpush1.msra.mxu0 0.0
        %1097 = vmatprep.subr.mxu0 0.0
        %1098 = vmatpush1.msra.mxu0 0.0
        %1099 = vmatprep.subr.mxu0 0.0
        %1100 = vmatpush1.msra.mxu0 0.0
        %1101 = vmatprep.subr.mxu0 0.0
        %1102 = vmatpush1.msra.mxu0 0.0
        %1103 = vmatprep.subr.mxu0 0.0
        %1104 = vmatpush1.msra.mxu0 0.0
        %1105 = vmatprep.subr.mxu0 0.0
        %1106 = vmatpush1.msra.mxu0 0.0
        %1107 = vmatprep.subr.mxu0 0.0
        %1108 = vmatpush1.msra.mxu0 0.0
        %1109 = vmatprep.subr.mxu0 0.0
        %1110 = vmatpush1.msra.mxu0 0.0
        %1111 = vmatprep.subr.mxu0 0.0
        %1112 = vmatpush1.msra.mxu0 0.0
        %1113 = vmatprep.subr.mxu0 0.0
        %1114 = vmatpush1.msra.mxu0 0.0
        %v1115 = vand.u32 %v335, 4294901760
        %1116 = vmatprep.subr.mxu0 %v1115
        %v1117 = vand.u32 %v332, 4294901760
        %1118 = vmatpush1.msra.mxu0 %v1117
        %v1119 = vand.u32 %v304, 4294901760
        %1120 = vmatprep.subr.mxu0 %v1119
        %v1121 = vand.u32 %v303, 4294901760
        %1122 = vmatpush1.msra.mxu0 %v1121
        %1123 = vmatprep.subr.mxu0 0.0
        %1124 = vmatpush2.msra.mxu0 0.0
        %1125 = vmatprep.subr.mxu0 0.0
        %1126 = vmatpush2.msra.mxu0 0.0
        %1127 = vmatprep.subr.mxu0 0.0
        %1128 = vmatpush2.msra.mxu0 0.0
        %1129 = vmatprep.subr.mxu0 0.0
        %1130 = vmatpush2.msra.mxu0 0.0
        %1131 = vmatprep.subr.mxu0 0.0
        %1132 = vmatpush2.msra.mxu0 0.0
        %1133 = vmatprep.subr.mxu0 0.0
        %1134 = vmatpush2.msra.mxu0 0.0
        %1135 = vmatprep.subr.mxu0 0.0
        %1136 = vmatpush2.msra.mxu0 0.0
        %1137 = vmatprep.subr.mxu0 0.0
        %1138 = vmatpush2.msra.mxu0 0.0
        %1139 = vmatprep.subr.mxu0 0.0
        %1140 = vmatpush2.msra.mxu0 0.0
        %1141 = vmatprep.subr.mxu0 0.0
        %1142 = vmatpush2.msra.mxu0 0.0
        %1143 = vmatprep.subr.mxu0 0.0
        %1144 = vmatpush2.msra.mxu0 0.0
        %1145 = vmatprep.subr.mxu0 0.0
        %1146 = vmatpush2.msra.mxu0 0.0
        %1147 = vmatprep.subr.mxu0 0.0
        %1148 = vmatpush2.msra.mxu0 0.0
        %1149 = vmatprep.subr.mxu0 0.0
        %1150 = vmatpush2.msra.mxu0 0.0
        %1151 = vmatprep.subr.mxu0 0.0
        %1152 = vmatpush2.msra.mxu0 0.0
        %1153 = vmatprep.subr.mxu0 0.0
        %1154 = vmatpush2.msra.mxu0 0.0
        %1155 = vmatprep.mubr.f32.mxu0 0.0
        %v1156 = vand.u32 %v322, 4294901760
        %v1157 = vsub.f32 %v322, %v1156
        %v1158 = vand.u32 %v1157, 4294901760
        %1159 = vmatmul.mubr.f32.gmra.mxu0 %v1158
        %v1160 = vpop.f32.mrf.mxu0
        %v1161 = vadd.f32 %v1083, %v1160
        %v1162 = vpop.f32.mrf.mxu0
        %v1163 = vadd.f32 %v1085, %v1162
        %1164 = vdwg.mxu0
        %1165 = vmatprep.subr.mxu0 0.0
        %1166 = vmatpush1.msra.mxu0 0.0
        %1167 = vmatprep.subr.mxu0 0.0
        %1168 = vmatpush1.msra.mxu0 0.0
        %1169 = vmatprep.subr.mxu0 0.0
        %1170 = vmatpush1.msra.mxu0 0.0
        %1171 = vmatprep.subr.mxu0 0.0
        %1172 = vmatpush1.msra.mxu0 0.0
        %1173 = vmatprep.subr.mxu0 0.0
        %1174 = vmatpush1.msra.mxu0 0.0
        %1175 = vmatprep.subr.mxu0 0.0
        %1176 = vmatpush1.msra.mxu0 0.0
        %1177 = vmatprep.subr.mxu0 0.0
        %1178 = vmatpush1.msra.mxu0 0.0
        %1179 = vmatprep.subr.mxu0 0.0
        %1180 = vmatpush1.msra.mxu0 0.0
        %1181 = vmatprep.subr.mxu0 0.0
        %1182 = vmatpush1.msra.mxu0 0.0
        %1183 = vmatprep.subr.mxu0 0.0
        %1184 = vmatpush1.msra.mxu0 0.0
        %1185 = vmatprep.subr.mxu0 0.0
        %1186 = vmatpush1.msra.mxu0 0.0
        %1187 = vmatprep.subr.mxu0 0.0
        %1188 = vmatpush1.msra.mxu0 0.0
        %1189 = vmatprep.subr.mxu0 0.0
        %1190 = vmatpush1.msra.mxu0 0.0
        %1191 = vmatprep.subr.mxu0 0.0
        %1192 = vmatpush1.msra.mxu0 0.0
        %v1193 = vand.u32 %v335, 4294901760
        %v1194 = vsub.f32 %v335, %v1193
        %v1195 = vand.u32 %v1194, 4294901760
        %1196 = vmatprep.subr.mxu0 %v1195
        %v1197 = vand.u32 %v332, 4294901760
        %v1198 = vsub.f32 %v332, %v1197
        %v1199 = vand.u32 %v1198, 4294901760
        %1200 = vmatpush1.msra.mxu0 %v1199
        %v1201 = vand.u32 %v304, 4294901760
        %v1202 = vsub.f32 %v304, %v1201
        %v1203 = vand.u32 %v1202, 4294901760
        %1204 = vmatprep.subr.mxu0 %v1203
        %v1205 = vand.u32 %v303, 4294901760
        %v1206 = vsub.f32 %v303, %v1205
        %v1207 = vand.u32 %v1206, 4294901760
        %1208 = vmatpush1.msra.mxu0 %v1207
        %1209 = vmatprep.subr.mxu0 0.0
        %1210 = vmatpush2.msra.mxu0 0.0
        %1211 = vmatprep.subr.mxu0 0.0
        %1212 = vmatpush2.msra.mxu0 0.0
        %1213 = vmatprep.subr.mxu0 0.0
        %1214 = vmatpush2.msra.mxu0 0.0
        %1215 = vmatprep.subr.mxu0 0.0
        %1216 = vmatpush2.msra.mxu0 0.0
        %1217 = vmatprep.subr.mxu0 0.0
        %1218 = vmatpush2.msra.mxu0 0.0
        %1219 = vmatprep.subr.mxu0 0.0
        %1220 = vmatpush2.msra.mxu0 0.0
        %1221 = vmatprep.subr.mxu0 0.0
        %1222 = vmatpush2.msra.mxu0 0.0
        %1223 = vmatprep.subr.mxu0 0.0
        %1224 = vmatpush2.msra.mxu0 0.0
        %1225 = vmatprep.subr.mxu0 0.0
        %1226 = vmatpush2.msra.mxu0 0.0
        %1227 = vmatprep.subr.mxu0 0.0
        %1228 = vmatpush2.msra.mxu0 0.0
        %1229 = vmatprep.subr.mxu0 0.0
        %1230 = vmatpush2.msra.mxu0 0.0
        %1231 = vmatprep.subr.mxu0 0.0
        %1232 = vmatpush2.msra.mxu0 0.0
        %1233 = vmatprep.subr.mxu0 0.0
        %1234 = vmatpush2.msra.mxu0 0.0
        %1235 = vmatprep.subr.mxu0 0.0
        %1236 = vmatpush2.msra.mxu0 0.0
        %1237 = vmatprep.subr.mxu0 0.0
        %1238 = vmatpush2.msra.mxu0 0.0
        %1239 = vmatprep.subr.mxu0 0.0
        %1240 = vmatpush2.msra.mxu0 0.0
        %1241 = vmatprep.mubr.f32.mxu0 0.0
        %v1242 = vand.u32 %v322, 4294901760
        %1243 = vmatmul.mubr.f32.gmra.mxu0 %v1242
        %v1244 = vpop.f32.mrf.mxu0
        %v1245 = vadd.f32 %v1161, %v1244
        %v1246 = vpop.f32.mrf.mxu0
        %v1247 = vadd.f32 %v1163, %v1246
        %1248 = vdwg.mxu0
        %1249 = vmatprep.subr.mxu0 0.0
        %1250 = vmatpush1.msra.mxu0 0.0
        %1251 = vmatprep.subr.mxu0 0.0
        %1252 = vmatpush1.msra.mxu0 0.0
        %1253 = vmatprep.subr.mxu0 0.0
        %1254 = vmatpush1.msra.mxu0 0.0
        %1255 = vmatprep.subr.mxu0 0.0
        %1256 = vmatpush1.msra.mxu0 0.0
        %1257 = vmatprep.subr.mxu0 0.0
        %1258 = vmatpush1.msra.mxu0 0.0
        %1259 = vmatprep.subr.mxu0 0.0
        %1260 = vmatpush1.msra.mxu0 0.0
        %1261 = vmatprep.subr.mxu0 0.0
        %1262 = vmatpush1.msra.mxu0 0.0
        %1263 = vmatprep.subr.mxu0 0.0
        %1264 = vmatpush1.msra.mxu0 0.0
        %1265 = vmatprep.subr.mxu0 0.0
        %1266 = vmatpush1.msra.mxu0 0.0
        %1267 = vmatprep.subr.mxu0 0.0
        %1268 = vmatpush1.msra.mxu0 0.0
        %1269 = vmatprep.subr.mxu0 0.0
        %1270 = vmatpush1.msra.mxu0 0.0
        %1271 = vmatprep.subr.mxu0 0.0
        %1272 = vmatpush1.msra.mxu0 0.0
        %1273 = vmatprep.subr.mxu0 0.0
        %1274 = vmatpush1.msra.mxu0 0.0
        %1275 = vmatprep.subr.mxu0 0.0
        %1276 = vmatpush1.msra.mxu0 0.0
        %v1277 = vand.u32 %v335, 4294901760
        %1278 = vmatprep.subr.mxu0 %v1277
        %v1279 = vand.u32 %v332, 4294901760
        %1280 = vmatpush1.msra.mxu0 %v1279
        %v1281 = vand.u32 %v304, 4294901760
        %1282 = vmatprep.subr.mxu0 %v1281
        %v1283 = vand.u32 %v303, 4294901760
        %1284 = vmatpush1.msra.mxu0 %v1283
        %1285 = vmatprep.subr.mxu0 0.0
        %1286 = vmatpush2.msra.mxu0 0.0
        %1287 = vmatprep.subr.mxu0 0.0
        %1288 = vmatpush2.msra.mxu0 0.0
        %1289 = vmatprep.subr.mxu0 0.0
        %1290 = vmatpush2.msra.mxu0 0.0
        %1291 = vmatprep.subr.mxu0 0.0
        %1292 = vmatpush2.msra.mxu0 0.0
        %1293 = vmatprep.subr.mxu0 0.0
        %1294 = vmatpush2.msra.mxu0 0.0
        %1295 = vmatprep.subr.mxu0 0.0
        %1296 = vmatpush2.msra.mxu0 0.0
        %1297 = vmatprep.subr.mxu0 0.0
        %1298 = vmatpush2.msra.mxu0 0.0
        %1299 = vmatprep.subr.mxu0 0.0
        %1300 = vmatpush2.msra.mxu0 0.0
        %1301 = vmatprep.subr.mxu0 0.0
        %1302 = vmatpush2.msra.mxu0 0.0
        %1303 = vmatprep.subr.mxu0 0.0
        %1304 = vmatpush2.msra.mxu0 0.0
        %1305 = vmatprep.subr.mxu0 0.0
        %1306 = vmatpush2.msra.mxu0 0.0
        %1307 = vmatprep.subr.mxu0 0.0
        %1308 = vmatpush2.msra.mxu0 0.0
        %1309 = vmatprep.subr.mxu0 0.0
        %1310 = vmatpush2.msra.mxu0 0.0
        %1311 = vmatprep.subr.mxu0 0.0
        %1312 = vmatpush2.msra.mxu0 0.0
        %1313 = vmatprep.subr.mxu0 0.0
        %1314 = vmatpush2.msra.mxu0 0.0
        %1315 = vmatprep.subr.mxu0 0.0
        %1316 = vmatpush2.msra.mxu0 0.0
        %1317 = vmatprep.mubr.f32.mxu0 0.0
        %v1318 = vand.u32 %v322, 4294901760
        %1319 = vmatmul.mubr.f32.gmra.mxu0 %v1318
        %v1320 = vpop.f32.mrf.mxu0
        %v1321 = vadd.f32 %v1245, %v1320
        %v1322 = vpop.f32.mrf.mxu0
        %v1323 = vadd.f32 %v1247, %v1322
        %1324 = vdwg.mxu0
        %1325 = vmatprep.subr.mxu0 0.0
        %1326 = vmatpush1.msra.mxu0 0.0
        %1327 = vmatprep.subr.mxu0 0.0
        %1328 = vmatpush1.msra.mxu0 0.0
        %1329 = vmatprep.subr.mxu0 0.0
        %1330 = vmatpush1.msra.mxu0 0.0
        %1331 = vmatprep.subr.mxu0 0.0
        %1332 = vmatpush1.msra.mxu0 0.0
        %1333 = vmatprep.subr.mxu0 0.0
        %1334 = vmatpush1.msra.mxu0 0.0
        %1335 = vmatprep.subr.mxu0 0.0
        %1336 = vmatpush1.msra.mxu0 0.0
        %1337 = vmatprep.subr.mxu0 0.0
        %1338 = vmatpush1.msra.mxu0 0.0
        %1339 = vmatprep.subr.mxu0 0.0
        %1340 = vmatpush1.msra.mxu0 0.0
        %1341 = vmatprep.subr.mxu0 0.0
        %1342 = vmatpush1.msra.mxu0 0.0
        %1343 = vmatprep.subr.mxu0 0.0
        %1344 = vmatpush1.msra.mxu0 0.0
        %1345 = vmatprep.subr.mxu0 0.0
        %1346 = vmatpush1.msra.mxu0 0.0
        %1347 = vmatprep.subr.mxu0 0.0
        %1348 = vmatpush1.msra.mxu0 0.0
        %1349 = vmatprep.subr.mxu0 0.0
        %1350 = vmatpush1.msra.mxu0 0.0
        %1351 = vmatprep.subr.mxu0 0.0
        %1352 = vmatpush1.msra.mxu0 0.0
        %v1353 = vand.u32 %v341, 4294901760
        %1354 = vmatprep.subr.mxu0 %v1353
        %v1355 = vand.u32 %v338, 4294901760
        %1356 = vmatpush1.msra.mxu0 %v1355
        %v1357 = vand.u32 %v306, 4294901760
        %1358 = vmatprep.subr.mxu0 %v1357
        %v1359 = vand.u32 %v305, 4294901760
        %1360 = vmatpush1.msra.mxu0 %v1359
        %1361 = vmatprep.subr.mxu0 0.0
        %1362 = vmatpush2.msra.mxu0 0.0
        %1363 = vmatprep.subr.mxu0 0.0
        %1364 = vmatpush2.msra.mxu0 0.0
        %1365 = vmatprep.subr.mxu0 0.0
        %1366 = vmatpush2.msra.mxu0 0.0
        %1367 = vmatprep.subr.mxu0 0.0
        %1368 = vmatpush2.msra.mxu0 0.0
        %1369 = vmatprep.subr.mxu0 0.0
        %1370 = vmatpush2.msra.mxu0 0.0
        %1371 = vmatprep.subr.mxu0 0.0
        %1372 = vmatpush2.msra.mxu0 0.0
        %1373 = vmatprep.subr.mxu0 0.0
        %1374 = vmatpush2.msra.mxu0 0.0
        %1375 = vmatprep.subr.mxu0 0.0
        %1376 = vmatpush2.msra.mxu0 0.0
        %1377 = vmatprep.subr.mxu0 0.0
        %1378 = vmatpush2.msra.mxu0 0.0
        %1379 = vmatprep.subr.mxu0 0.0
        %1380 = vmatpush2.msra.mxu0 0.0
        %1381 = vmatprep.subr.mxu0 0.0
        %1382 = vmatpush2.msra.mxu0 0.0
        %1383 = vmatprep.subr.mxu0 0.0
        %1384 = vmatpush2.msra.mxu0 0.0
        %1385 = vmatprep.subr.mxu0 0.0
        %1386 = vmatpush2.msra.mxu0 0.0
        %1387 = vmatprep.subr.mxu0 0.0
        %1388 = vmatpush2.msra.mxu0 0.0
        %1389 = vmatprep.subr.mxu0 0.0
        %1390 = vmatpush2.msra.mxu0 0.0
        %1391 = vmatprep.subr.mxu0 0.0
        %1392 = vmatpush2.msra.mxu0 0.0
        %1393 = vmatprep.mubr.f32.mxu0 0.0
        %v1394 = vand.u32 %v322, 4294901760
        %v1395 = vsub.f32 %v322, %v1394
        %v1396 = vand.u32 %v1395, 4294901760
        %v1397 = vsub.f32 %v1395, %v1396
        %v1398 = vand.u32 %v1397, 4294901760
        %1399 = vmatmul.mubr.f32.gmra.mxu0 %v1398
        %v1400 = vpop.f32.mrf.mxu0
        %v1401 = vadd.f32 %v318, %v1400
        %v1402 = vpop.f32.mrf.mxu0
        %v1403 = vadd.f32 %v318, %v1402
        %1404 = vdwg.mxu0
        %1405 = vmatprep.subr.mxu0 0.0
        %1406 = vmatpush1.msra.mxu0 0.0
        %1407 = vmatprep.subr.mxu0 0.0
        %1408 = vmatpush1.msra.mxu0 0.0
        %1409 = vmatprep.subr.mxu0 0.0
        %1410 = vmatpush1.msra.mxu0 0.0
        %1411 = vmatprep.subr.mxu0 0.0
        %1412 = vmatpush1.msra.mxu0 0.0
        %1413 = vmatprep.subr.mxu0 0.0
        %1414 = vmatpush1.msra.mxu0 0.0
        %1415 = vmatprep.subr.mxu0 0.0
        %1416 = vmatpush1.msra.mxu0 0.0
        %1417 = vmatprep.subr.mxu0 0.0
        %1418 = vmatpush1.msra.mxu0 0.0
        %1419 = vmatprep.subr.mxu0 0.0
        %1420 = vmatpush1.msra.mxu0 0.0
        %1421 = vmatprep.subr.mxu0 0.0
        %1422 = vmatpush1.msra.mxu0 0.0
        %1423 = vmatprep.subr.mxu0 0.0
        %1424 = vmatpush1.msra.mxu0 0.0
        %1425 = vmatprep.subr.mxu0 0.0
        %1426 = vmatpush1.msra.mxu0 0.0
        %1427 = vmatprep.subr.mxu0 0.0
        %1428 = vmatpush1.msra.mxu0 0.0
        %1429 = vmatprep.subr.mxu0 0.0
        %1430 = vmatpush1.msra.mxu0 0.0
        %1431 = vmatprep.subr.mxu0 0.0
        %1432 = vmatpush1.msra.mxu0 0.0
        %v1433 = vand.u32 %v341, 4294901760
        %v1434 = vsub.f32 %v341, %v1433
        %v1435 = vand.u32 %v1434, 4294901760
        %v1436 = vsub.f32 %v1434, %v1435
        %v1437 = vand.u32 %v1436, 4294901760
        %1438 = vmatprep.subr.mxu0 %v1437
        %v1439 = vand.u32 %v338, 4294901760
        %v1440 = vsub.f32 %v338, %v1439
        %v1441 = vand.u32 %v1440, 4294901760
        %v1442 = vsub.f32 %v1440, %v1441
        %v1443 = vand.u32 %v1442, 4294901760
        %1444 = vmatpush1.msra.mxu0 %v1443
        %v1445 = vand.u32 %v306, 4294901760
        %v1446 = vsub.f32 %v306, %v1445
        %v1447 = vand.u32 %v1446, 4294901760
        %v1448 = vsub.f32 %v1446, %v1447
        %v1449 = vand.u32 %v1448, 4294901760
        %1450 = vmatprep.subr.mxu0 %v1449
        %v1451 = vand.u32 %v305, 4294901760
        %v1452 = vsub.f32 %v305, %v1451
        %v1453 = vand.u32 %v1452, 4294901760
        %v1454 = vsub.f32 %v1452, %v1453
        %v1455 = vand.u32 %v1454, 4294901760
        %1456 = vmatpush1.msra.mxu0 %v1455
        %1457 = vmatprep.subr.mxu0 0.0
        %1458 = vmatpush2.msra.mxu0 0.0
        %1459 = vmatprep.subr.mxu0 0.0
        %1460 = vmatpush2.msra.mxu0 0.0
        %1461 = vmatprep.subr.mxu0 0.0
        %1462 = vmatpush2.msra.mxu0 0.0
        %1463 = vmatprep.subr.mxu0 0.0
        %1464 = vmatpush2.msra.mxu0 0.0
        %1465 = vmatprep.subr.mxu0 0.0
        %1466 = vmatpush2.msra.mxu0 0.0
        %1467 = vmatprep.subr.mxu0 0.0
        %1468 = vmatpush2.msra.mxu0 0.0
        %1469 = vmatprep.subr.mxu0 0.0
        %1470 = vmatpush2.msra.mxu0 0.0
        %1471 = vmatprep.subr.mxu0 0.0
        %1472 = vmatpush2.msra.mxu0 0.0
        %1473 = vmatprep.subr.mxu0 0.0
        %1474 = vmatpush2.msra.mxu0 0.0
        %1475 = vmatprep.subr.mxu0 0.0
        %1476 = vmatpush2.msra.mxu0 0.0
        %1477 = vmatprep.subr.mxu0 0.0
        %1478 = vmatpush2.msra.mxu0 0.0
        %1479 = vmatprep.subr.mxu0 0.0
        %1480 = vmatpush2.msra.mxu0 0.0
        %1481 = vmatprep.subr.mxu0 0.0
        %1482 = vmatpush2.msra.mxu0 0.0
        %1483 = vmatprep.subr.mxu0 0.0
        %1484 = vmatpush2.msra.mxu0 0.0
        %1485 = vmatprep.subr.mxu0 0.0
        %1486 = vmatpush2.msra.mxu0 0.0
        %1487 = vmatprep.subr.mxu0 0.0
        %1488 = vmatpush2.msra.mxu0 0.0
        %1489 = vmatprep.mubr.f32.mxu0 0.0
        %v1490 = vand.u32 %v322, 4294901760
        %1491 = vmatmul.mubr.f32.gmra.mxu0 %v1490
        %v1492 = vpop.f32.mrf.mxu0
        %v1493 = vadd.f32 %v1401, %v1492
        %v1494 = vpop.f32.mrf.mxu0
        %v1495 = vadd.f32 %v1403, %v1494
        %1496 = vdwg.mxu0
        %1497 = vmatprep.subr.mxu0 0.0
        %1498 = vmatpush1.msra.mxu0 0.0
        %1499 = vmatprep.subr.mxu0 0.0
        %1500 = vmatpush1.msra.mxu0 0.0
        %1501 = vmatprep.subr.mxu0 0.0
        %1502 = vmatpush1.msra.mxu0 0.0
        %1503 = vmatprep.subr.mxu0 0.0
        %1504 = vmatpush1.msra.mxu0 0.0
        %1505 = vmatprep.subr.mxu0 0.0
        %1506 = vmatpush1.msra.mxu0 0.0
        %1507 = vmatprep.subr.mxu0 0.0
        %1508 = vmatpush1.msra.mxu0 0.0
        %1509 = vmatprep.subr.mxu0 0.0
        %1510 = vmatpush1.msra.mxu0 0.0
        %1511 = vmatprep.subr.mxu0 0.0
        %1512 = vmatpush1.msra.mxu0 0.0
        %1513 = vmatprep.subr.mxu0 0.0
        %1514 = vmatpush1.msra.mxu0 0.0
        %1515 = vmatprep.subr.mxu0 0.0
        %1516 = vmatpush1.msra.mxu0 0.0
        %1517 = vmatprep.subr.mxu0 0.0
        %1518 = vmatpush1.msra.mxu0 0.0
        %1519 = vmatprep.subr.mxu0 0.0
        %1520 = vmatpush1.msra.mxu0 0.0
        %1521 = vmatprep.subr.mxu0 0.0
        %1522 = vmatpush1.msra.mxu0 0.0
        %1523 = vmatprep.subr.mxu0 0.0
        %1524 = vmatpush1.msra.mxu0 0.0
        %v1525 = vand.u32 %v341, 4294901760
        %v1526 = vsub.f32 %v341, %v1525
        %1527 = vmatprep.subr.mxu0 %v1526
        %v1528 = vand.u32 %v338, 4294901760
        %v1529 = vsub.f32 %v338, %v1528
        %1530 = vmatpush1.msra.mxu0 %v1529
        %v1531 = vand.u32 %v306, 4294901760
        %v1532 = vsub.f32 %v306, %v1531
        %1533 = vmatprep.subr.mxu0 %v1532
        %v1534 = vand.u32 %v305, 4294901760
        %v1535 = vsub.f32 %v305, %v1534
        %1536 = vmatpush1.msra.mxu0 %v1535
        %1537 = vmatprep.subr.mxu0 0.0
        %1538 = vmatpush2.msra.mxu0 0.0
        %1539 = vmatprep.subr.mxu0 0.0
        %1540 = vmatpush2.msra.mxu0 0.0
        %1541 = vmatprep.subr.mxu0 0.0
        %1542 = vmatpush2.msra.mxu0 0.0
        %1543 = vmatprep.subr.mxu0 0.0
        %1544 = vmatpush2.msra.mxu0 0.0
        %1545 = vmatprep.subr.mxu0 0.0
        %1546 = vmatpush2.msra.mxu0 0.0
        %1547 = vmatprep.subr.mxu0 0.0
        %1548 = vmatpush2.msra.mxu0 0.0
        %1549 = vmatprep.subr.mxu0 0.0
        %1550 = vmatpush2.msra.mxu0 0.0
        %1551 = vmatprep.subr.mxu0 0.0
        %1552 = vmatpush2.msra.mxu0 0.0
        %1553 = vmatprep.subr.mxu0 0.0
        %1554 = vmatpush2.msra.mxu0 0.0
        %1555 = vmatprep.subr.mxu0 0.0
        %1556 = vmatpush2.msra.mxu0 0.0
        %1557 = vmatprep.subr.mxu0 0.0
        %1558 = vmatpush2.msra.mxu0 0.0
        %1559 = vmatprep.subr.mxu0 0.0
        %1560 = vmatpush2.msra.mxu0 0.0
        %1561 = vmatprep.subr.mxu0 0.0
        %1562 = vmatpush2.msra.mxu0 0.0
        %1563 = vmatprep.subr.mxu0 0.0
        %1564 = vmatpush2.msra.mxu0 0.0
        %1565 = vmatprep.subr.mxu0 0.0
        %1566 = vmatpush2.msra.mxu0 0.0
        %1567 = vmatprep.subr.mxu0 0.0
        %1568 = vmatpush2.msra.mxu0 0.0
        %1569 = vmatprep.mubr.f32.mxu0 0.0
        %v1570 = vand.u32 %v322, 4294901760
        %v1571 = vsub.f32 %v322, %v1570
        %1572 = vmatmul.mubr.f32.gmra.mxu0 %v1571
        %v1573 = vpop.f32.mrf.mxu0
        %v1574 = vadd.f32 %v1493, %v1573
        %v1575 = vpop.f32.mrf.mxu0
        %v1576 = vadd.f32 %v1495, %v1575
        %1577 = vdwg.mxu0
        %1578 = vmatprep.subr.mxu0 0.0
        %1579 = vmatpush1.msra.mxu0 0.0
        %1580 = vmatprep.subr.mxu0 0.0
        %1581 = vmatpush1.msra.mxu0 0.0
        %1582 = vmatprep.subr.mxu0 0.0
        %1583 = vmatpush1.msra.mxu0 0.0
        %1584 = vmatprep.subr.mxu0 0.0
        %1585 = vmatpush1.msra.mxu0 0.0
        %1586 = vmatprep.subr.mxu0 0.0
        %1587 = vmatpush1.msra.mxu0 0.0
        %1588 = vmatprep.subr.mxu0 0.0
        %1589 = vmatpush1.msra.mxu0 0.0
        %1590 = vmatprep.subr.mxu0 0.0
        %1591 = vmatpush1.msra.mxu0 0.0
        %1592 = vmatprep.subr.mxu0 0.0
        %1593 = vmatpush1.msra.mxu0 0.0
        %1594 = vmatprep.subr.mxu0 0.0
        %1595 = vmatpush1.msra.mxu0 0.0
        %1596 = vmatprep.subr.mxu0 0.0
        %1597 = vmatpush1.msra.mxu0 0.0
        %1598 = vmatprep.subr.mxu0 0.0
        %1599 = vmatpush1.msra.mxu0 0.0
        %1600 = vmatprep.subr.mxu0 0.0
        %1601 = vmatpush1.msra.mxu0 0.0
        %1602 = vmatprep.subr.mxu0 0.0
        %1603 = vmatpush1.msra.mxu0 0.0
        %1604 = vmatprep.subr.mxu0 0.0
        %1605 = vmatpush1.msra.mxu0 0.0
        %v1606 = vand.u32 %v341, 4294901760
        %1607 = vmatprep.subr.mxu0 %v1606
        %v1608 = vand.u32 %v338, 4294901760
        %1609 = vmatpush1.msra.mxu0 %v1608
        %v1610 = vand.u32 %v306, 4294901760
        %1611 = vmatprep.subr.mxu0 %v1610
        %v1612 = vand.u32 %v305, 4294901760
        %1613 = vmatpush1.msra.mxu0 %v1612
        %1614 = vmatprep.subr.mxu0 0.0
        %1615 = vmatpush2.msra.mxu0 0.0
        %1616 = vmatprep.subr.mxu0 0.0
        %1617 = vmatpush2.msra.mxu0 0.0
        %1618 = vmatprep.subr.mxu0 0.0
        %1619 = vmatpush2.msra.mxu0 0.0
        %1620 = vmatprep.subr.mxu0 0.0
        %1621 = vmatpush2.msra.mxu0 0.0
        %1622 = vmatprep.subr.mxu0 0.0
        %1623 = vmatpush2.msra.mxu0 0.0
        %1624 = vmatprep.subr.mxu0 0.0
        %1625 = vmatpush2.msra.mxu0 0.0
        %1626 = vmatprep.subr.mxu0 0.0
        %1627 = vmatpush2.msra.mxu0 0.0
        %1628 = vmatprep.subr.mxu0 0.0
        %1629 = vmatpush2.msra.mxu0 0.0
        %1630 = vmatprep.subr.mxu0 0.0
        %1631 = vmatpush2.msra.mxu0 0.0
        %1632 = vmatprep.subr.mxu0 0.0
        %1633 = vmatpush2.msra.mxu0 0.0
        %1634 = vmatprep.subr.mxu0 0.0
        %1635 = vmatpush2.msra.mxu0 0.0
        %1636 = vmatprep.subr.mxu0 0.0
        %1637 = vmatpush2.msra.mxu0 0.0
        %1638 = vmatprep.subr.mxu0 0.0
        %1639 = vmatpush2.msra.mxu0 0.0
        %1640 = vmatprep.subr.mxu0 0.0
        %1641 = vmatpush2.msra.mxu0 0.0
        %1642 = vmatprep.subr.mxu0 0.0
        %1643 = vmatpush2.msra.mxu0 0.0
        %1644 = vmatprep.subr.mxu0 0.0
        %1645 = vmatpush2.msra.mxu0 0.0
        %1646 = vmatprep.mubr.f32.mxu0 0.0
        %v1647 = vand.u32 %v322, 4294901760
        %v1648 = vsub.f32 %v322, %v1647
        %v1649 = vand.u32 %v1648, 4294901760
        %1650 = vmatmul.mubr.f32.gmra.mxu0 %v1649
        %v1651 = vpop.f32.mrf.mxu0
        %v1652 = vadd.f32 %v1574, %v1651
        %v1653 = vpop.f32.mrf.mxu0
        %v1654 = vadd.f32 %v1576, %v1653
        %1655 = vdwg.mxu0
        %1656 = vmatprep.subr.mxu0 0.0
        %1657 = vmatpush1.msra.mxu0 0.0
        %1658 = vmatprep.subr.mxu0 0.0
        %1659 = vmatpush1.msra.mxu0 0.0
        %1660 = vmatprep.subr.mxu0 0.0
        %1661 = vmatpush1.msra.mxu0 0.0
        %1662 = vmatprep.subr.mxu0 0.0
        %1663 = vmatpush1.msra.mxu0 0.0
        %1664 = vmatprep.subr.mxu0 0.0
        %1665 = vmatpush1.msra.mxu0 0.0
        %1666 = vmatprep.subr.mxu0 0.0
        %1667 = vmatpush1.msra.mxu0 0.0
        %1668 = vmatprep.subr.mxu0 0.0
        %1669 = vmatpush1.msra.mxu0 0.0
        %1670 = vmatprep.subr.mxu0 0.0
        %1671 = vmatpush1.msra.mxu0 0.0
        %1672 = vmatprep.subr.mxu0 0.0
        %1673 = vmatpush1.msra.mxu0 0.0
        %1674 = vmatprep.subr.mxu0 0.0
        %1675 = vmatpush1.msra.mxu0 0.0
        %1676 = vmatprep.subr.mxu0 0.0
        %1677 = vmatpush1.msra.mxu0 0.0
        %1678 = vmatprep.subr.mxu0 0.0
        %1679 = vmatpush1.msra.mxu0 0.0
        %1680 = vmatprep.subr.mxu0 0.0
        %1681 = vmatpush1.msra.mxu0 0.0
        %1682 = vmatprep.subr.mxu0 0.0
        %1683 = vmatpush1.msra.mxu0 0.0
        %v1684 = vand.u32 %v341, 4294901760
        %v1685 = vsub.f32 %v341, %v1684
        %v1686 = vand.u32 %v1685, 4294901760
        %1687 = vmatprep.subr.mxu0 %v1686
        %v1688 = vand.u32 %v338, 4294901760
        %v1689 = vsub.f32 %v338, %v1688
        %v1690 = vand.u32 %v1689, 4294901760
        %1691 = vmatpush1.msra.mxu0 %v1690
        %v1692 = vand.u32 %v306, 4294901760
        %v1693 = vsub.f32 %v306, %v1692
        %v1694 = vand.u32 %v1693, 4294901760
        %1695 = vmatprep.subr.mxu0 %v1694
        %v1696 = vand.u32 %v305, 4294901760
        %v1697 = vsub.f32 %v305, %v1696
        %v1698 = vand.u32 %v1697, 4294901760
        %1699 = vmatpush1.msra.mxu0 %v1698
        %1700 = vmatprep.subr.mxu0 0.0
        %1701 = vmatpush2.msra.mxu0 0.0
        %1702 = vmatprep.subr.mxu0 0.0
        %1703 = vmatpush2.msra.mxu0 0.0
        %1704 = vmatprep.subr.mxu0 0.0
        %1705 = vmatpush2.msra.mxu0 0.0
        %1706 = vmatprep.subr.mxu0 0.0
        %1707 = vmatpush2.msra.mxu0 0.0
        %1708 = vmatprep.subr.mxu0 0.0
        %1709 = vmatpush2.msra.mxu0 0.0
        %1710 = vmatprep.subr.mxu0 0.0
        %1711 = vmatpush2.msra.mxu0 0.0
        %1712 = vmatprep.subr.mxu0 0.0
        %1713 = vmatpush2.msra.mxu0 0.0
        %1714 = vmatprep.subr.mxu0 0.0
        %1715 = vmatpush2.msra.mxu0 0.0
        %1716 = vmatprep.subr.mxu0 0.0
        %1717 = vmatpush2.msra.mxu0 0.0
        %1718 = vmatprep.subr.mxu0 0.0
        %1719 = vmatpush2.msra.mxu0 0.0
        %1720 = vmatprep.subr.mxu0 0.0
        %1721 = vmatpush2.msra.mxu0 0.0
        %1722 = vmatprep.subr.mxu0 0.0
        %1723 = vmatpush2.msra.mxu0 0.0
        %1724 = vmatprep.subr.mxu0 0.0
        %1725 = vmatpush2.msra.mxu0 0.0
        %1726 = vmatprep.subr.mxu0 0.0
        %1727 = vmatpush2.msra.mxu0 0.0
        %1728 = vmatprep.subr.mxu0 0.0
        %1729 = vmatpush2.msra.mxu0 0.0
        %1730 = vmatprep.subr.mxu0 0.0
        %1731 = vmatpush2.msra.mxu0 0.0
        %1732 = vmatprep.mubr.f32.mxu0 0.0
        %v1733 = vand.u32 %v322, 4294901760
        %1734 = vmatmul.mubr.f32.gmra.mxu0 %v1733
        %v1735 = vpop.f32.mrf.mxu0
        %v1736 = vadd.f32 %v1652, %v1735
        %v1737 = vpop.f32.mrf.mxu0
        %v1738 = vadd.f32 %v1654, %v1737
        %1739 = vdwg.mxu0
        %1740 = vmatprep.subr.mxu0 0.0
        %1741 = vmatpush1.msra.mxu0 0.0
        %1742 = vmatprep.subr.mxu0 0.0
        %1743 = vmatpush1.msra.mxu0 0.0
        %1744 = vmatprep.subr.mxu0 0.0
        %1745 = vmatpush1.msra.mxu0 0.0
        %1746 = vmatprep.subr.mxu0 0.0
        %1747 = vmatpush1.msra.mxu0 0.0
        %1748 = vmatprep.subr.mxu0 0.0
        %1749 = vmatpush1.msra.mxu0 0.0
        %1750 = vmatprep.subr.mxu0 0.0
        %1751 = vmatpush1.msra.mxu0 0.0
        %1752 = vmatprep.subr.mxu0 0.0
        %1753 = vmatpush1.msra.mxu0 0.0
        %1754 = vmatprep.subr.mxu0 0.0
        %1755 = vmatpush1.msra.mxu0 0.0
        %1756 = vmatprep.subr.mxu0 0.0
        %1757 = vmatpush1.msra.mxu0 0.0
        %1758 = vmatprep.subr.mxu0 0.0
        %1759 = vmatpush1.msra.mxu0 0.0
        %1760 = vmatprep.subr.mxu0 0.0
        %1761 = vmatpush1.msra.mxu0 0.0
        %1762 = vmatprep.subr.mxu0 0.0
        %1763 = vmatpush1.msra.mxu0 0.0
        %1764 = vmatprep.subr.mxu0 0.0
        %1765 = vmatpush1.msra.mxu0 0.0
        %1766 = vmatprep.subr.mxu0 0.0
        %1767 = vmatpush1.msra.mxu0 0.0
        %v1768 = vand.u32 %v341, 4294901760
        %1769 = vmatprep.subr.mxu0 %v1768
        %v1770 = vand.u32 %v338, 4294901760
        %1771 = vmatpush1.msra.mxu0 %v1770
        %v1772 = vand.u32 %v306, 4294901760
        %1773 = vmatprep.subr.mxu0 %v1772
        %v1774 = vand.u32 %v305, 4294901760
        %1775 = vmatpush1.msra.mxu0 %v1774
        %1776 = vmatprep.subr.mxu0 0.0
        %1777 = vmatpush2.msra.mxu0 0.0
        %1778 = vmatprep.subr.mxu0 0.0
        %1779 = vmatpush2.msra.mxu0 0.0
        %1780 = vmatprep.subr.mxu0 0.0
        %1781 = vmatpush2.msra.mxu0 0.0
        %1782 = vmatprep.subr.mxu0 0.0
        %1783 = vmatpush2.msra.mxu0 0.0
        %1784 = vmatprep.subr.mxu0 0.0
        %1785 = vmatpush2.msra.mxu0 0.0
        %1786 = vmatprep.subr.mxu0 0.0
        %1787 = vmatpush2.msra.mxu0 0.0
        %1788 = vmatprep.subr.mxu0 0.0
        %1789 = vmatpush2.msra.mxu0 0.0
        %1790 = vmatprep.subr.mxu0 0.0
        %1791 = vmatpush2.msra.mxu0 0.0
        %1792 = vmatprep.subr.mxu0 0.0
        %1793 = vmatpush2.msra.mxu0 0.0
        %1794 = vmatprep.subr.mxu0 0.0
        %1795 = vmatpush2.msra.mxu0 0.0
        %1796 = vmatprep.subr.mxu0 0.0
        %1797 = vmatpush2.msra.mxu0 0.0
        %1798 = vmatprep.subr.mxu0 0.0
        %1799 = vmatpush2.msra.mxu0 0.0
        %1800 = vmatprep.subr.mxu0 0.0
        %1801 = vmatpush2.msra.mxu0 0.0
        %1802 = vmatprep.subr.mxu0 0.0
        %1803 = vmatpush2.msra.mxu0 0.0
        %1804 = vmatprep.subr.mxu0 0.0
        %1805 = vmatpush2.msra.mxu0 0.0
        %1806 = vmatprep.subr.mxu0 0.0
        %1807 = vmatpush2.msra.mxu0 0.0
        %1808 = vmatprep.mubr.f32.mxu0 0.0
        %v1809 = vand.u32 %v322, 4294901760
        %1810 = vmatmul.mubr.f32.gmra.mxu0 %v1809
        %v1811 = vpop.f32.mrf.mxu0
        %v1812 = vadd.f32 %v1736, %v1811
        %v1813 = vpop.f32.mrf.mxu0
        %v1814 = vadd.f32 %v1738, %v1813
        %1815 = vdwg.mxu0
        %v1816 = vxor.u32 %v830, 2147483648
        %v1817 = vxor.u32 %v832, 2147483648
        %v1818 = vxor.u32 %v1321, 2147483648
        %v1819 = vxor.u32 %v1323, 2147483648
        %v1820 = vxor.u32 %v1812, 2147483648
        %v1821 = vxor.u32 %v1814, 2147483648
        %v1822 = vmul.f32 %v1816, 1.442695
        %v1823 = vpow.pop %v1822
        %v1824 = vmul.f32 %v1817, 1.442695
        %v1825 = vpow.pop %v1824
        %v1826 = vmul.f32 %v1818, 1.442695
        %v1827 = vpow.pop %v1826
        %v1828 = vmul.f32 %v1819, 1.442695
        %v1829 = vpow.pop %v1828
        %v1830 = vmul.f32 %v1820, 1.442695
        %v1831 = vpow.pop %v1830
        %v1832 = vmul.f32 %v1821, 1.442695
        %v1833 = vpow.pop %v1832
        %v1834 = vadd.f32 %v1823, 1.0
        %v1835 = vadd.f32 %v1825, 1.0
        %v1836 = vadd.f32 %v1827, 1.0
        %v1837 = vadd.f32 %v1829, 1.0
        %v1838 = vadd.f32 %v1831, 1.0
        %v1839 = vadd.f32 %v1833, 1.0
        %v1840 = vrcp.pop %v1834
        %v1841 = vmul.f32 1.0, %v1840
        %v1842 = vrcp.pop %v1835
        %v1843 = vmul.f32 1.0, %v1842
        %v1844 = vrcp.pop %v1836
        %v1845 = vmul.f32 1.0, %v1844
        %v1846 = vrcp.pop %v1837
        %v1847 = vmul.f32 1.0, %v1846
        %v1848 = vrcp.pop %v1838
        %v1849 = vmul.f32 1.0, %v1848
        %v1850 = vrcp.pop %v1839
        %v1851 = vmul.f32 1.0, %v1850
        %v1852 = vld [vmem:[%s3] sm:$0xf]
        %v1853 = vld [vmem:[%s4] sm:$0xf]
        %1855 = vset.pattern.permute.xlu0 0
        %1856 = vperm.xlu0 %1855, %v1853
        %v1857 = vpop.permute.xlu0 %1856
        %vm1859 = vcmask 48128
        %v1861 = vsel %vm1859, %v1852, 0
        %vm1863 = vcmask 1045504
        %v1865 = vsel %vm1863, %v1841, 0
        %v1868 = vsel %vm1863, %v1843, 0
        %v1871 = vsel %vm1863, %v1845, 0
        %v1874 = vsel %vm1863, %v1847, 0
        %v1877 = vsel %vm1863, %v1849, 0
        %v1880 = vsel %vm1863, %v1851, 0
        %1882 = vmatprep.subr.mxu0 0.0
        %1883 = vmatpush1.msra.mxu0 0.0
        %1884 = vmatprep.subr.mxu0 0.0
        %1885 = vmatpush1.msra.mxu0 0.0
        %1886 = vmatprep.subr.mxu0 0.0
        %1887 = vmatpush1.msra.mxu0 0.0
        %1888 = vmatprep.subr.mxu0 0.0
        %1889 = vmatpush1.msra.mxu0 0.0
        %1890 = vmatprep.subr.mxu0 0.0
        %1891 = vmatpush1.msra.mxu0 0.0
        %1892 = vmatprep.subr.mxu0 0.0
        %1893 = vmatpush1.msra.mxu0 0.0
        %1894 = vmatprep.subr.mxu0 0.0
        %1895 = vmatpush1.msra.mxu0 0.0
        %1896 = vmatprep.subr.mxu0 0.0
        %1897 = vmatpush1.msra.mxu0 0.0
        %1898 = vmatprep.subr.mxu0 0.0
        %1899 = vmatpush1.msra.mxu0 0.0
        %1900 = vmatprep.subr.mxu0 0.0
        %1901 = vmatpush1.msra.mxu0 0.0
        %1902 = vmatprep.subr.mxu0 0.0
        %1903 = vmatpush1.msra.mxu0 0.0
        %1904 = vmatprep.subr.mxu0 0.0
        %1905 = vmatpush1.msra.mxu0 0.0
        %1906 = vmatprep.subr.mxu0 0.0
        %1907 = vmatpush1.msra.mxu0 0.0
        %1908 = vmatprep.subr.mxu0 0.0
        %1909 = vmatpush1.msra.mxu0 0.0
        %1910 = vmatprep.subr.mxu0 0.0
        %1911 = vmatpush1.msra.mxu0 0.0
        %v1912 = vand.u32 %v1868, 4294901760
        %1913 = vmatprep.subr.mxu0 %v1912
        %v1914 = vand.u32 %v1865, 4294901760
        %1915 = vmatpush1.msra.mxu0 %v1914
        %1916 = vmatprep.subr.mxu0 0.0
        %1917 = vmatpush2.msra.mxu0 0.0
        %1918 = vmatprep.subr.mxu0 0.0
        %1919 = vmatpush2.msra.mxu0 0.0
        %1920 = vmatprep.subr.mxu0 0.0
        %1921 = vmatpush2.msra.mxu0 0.0
        %1922 = vmatprep.subr.mxu0 0.0
        %1923 = vmatpush2.msra.mxu0 0.0
        %1924 = vmatprep.subr.mxu0 0.0
        %1925 = vmatpush2.msra.mxu0 0.0
        %1926 = vmatprep.subr.mxu0 0.0
        %1927 = vmatpush2.msra.mxu0 0.0
        %1928 = vmatprep.subr.mxu0 0.0
        %1929 = vmatpush2.msra.mxu0 0.0
        %1930 = vmatprep.subr.mxu0 0.0
        %1931 = vmatpush2.msra.mxu0 0.0
        %1932 = vmatprep.subr.mxu0 0.0
        %1933 = vmatpush2.msra.mxu0 0.0
        %1934 = vmatprep.subr.mxu0 0.0
        %1935 = vmatpush2.msra.mxu0 0.0
        %1936 = vmatprep.subr.mxu0 0.0
        %1937 = vmatpush2.msra.mxu0 0.0
        %1938 = vmatprep.subr.mxu0 0.0
        %1939 = vmatpush2.msra.mxu0 0.0
        %1940 = vmatprep.subr.mxu0 0.0
        %1941 = vmatpush2.msra.mxu0 0.0
        %1942 = vmatprep.subr.mxu0 0.0
        %1943 = vmatpush2.msra.mxu0 0.0
        %1944 = vmatprep.subr.mxu0 0.0
        %1945 = vmatpush2.msra.mxu0 0.0
        %1946 = vmatprep.subr.mxu0 0.0
        %1947 = vmatpush2.msra.mxu0 0.0
        %1948 = vmatprep.mubr.f32.mxu0 0.0
        %v1949 = vand.u32 %v1861, 4294901760
        %v1950 = vsub.f32 %v1861, %v1949
        %v1951 = vand.u32 %v1950, 4294901760
        %v1952 = vsub.f32 %v1950, %v1951
        %v1953 = vand.u32 %v1952, 4294901760
        %1954 = vmatmul.mubr.f32.gmra.mxu0 %v1953
        %v1955 = vpop.f32.mrf.mxu0
        %v1956 = vadd.f32 %v1857, %v1955
        %v1957 = vpop.f32.mrf.mxu0
        %v1958 = vadd.f32 %v1857, %v1957
        %1959 = vdwg.mxu0
        %1960 = vmatprep.subr.mxu0 0.0
        %1961 = vmatpush1.msra.mxu0 0.0
        %1962 = vmatprep.subr.mxu0 0.0
        %1963 = vmatpush1.msra.mxu0 0.0
        %1964 = vmatprep.subr.mxu0 0.0
        %1965 = vmatpush1.msra.mxu0 0.0
        %1966 = vmatprep.subr.mxu0 0.0
        %1967 = vmatpush1.msra.mxu0 0.0
        %1968 = vmatprep.subr.mxu0 0.0
        %1969 = vmatpush1.msra.mxu0 0.0
        %1970 = vmatprep.subr.mxu0 0.0
        %1971 = vmatpush1.msra.mxu0 0.0
        %1972 = vmatprep.subr.mxu0 0.0
        %1973 = vmatpush1.msra.mxu0 0.0
        %1974 = vmatprep.subr.mxu0 0.0
        %1975 = vmatpush1.msra.mxu0 0.0
        %1976 = vmatprep.subr.mxu0 0.0
        %1977 = vmatpush1.msra.mxu0 0.0
        %1978 = vmatprep.subr.mxu0 0.0
        %1979 = vmatpush1.msra.mxu0 0.0
        %1980 = vmatprep.subr.mxu0 0.0
        %1981 = vmatpush1.msra.mxu0 0.0
        %1982 = vmatprep.subr.mxu0 0.0
        %1983 = vmatpush1.msra.mxu0 0.0
        %1984 = vmatprep.subr.mxu0 0.0
        %1985 = vmatpush1.msra.mxu0 0.0
        %1986 = vmatprep.subr.mxu0 0.0
        %1987 = vmatpush1.msra.mxu0 0.0
        %1988 = vmatprep.subr.mxu0 0.0
        %1989 = vmatpush1.msra.mxu0 0.0
        %v1990 = vand.u32 %v1868, 4294901760
        %v1991 = vsub.f32 %v1868, %v1990
        %v1992 = vand.u32 %v1991, 4294901760
        %v1993 = vsub.f32 %v1991, %v1992
        %v1994 = vand.u32 %v1993, 4294901760
        %1995 = vmatprep.subr.mxu0 %v1994
        %v1996 = vand.u32 %v1865, 4294901760
        %v1997 = vsub.f32 %v1865, %v1996
        %v1998 = vand.u32 %v1997, 4294901760
        %v1999 = vsub.f32 %v1997, %v1998
        %v2000 = vand.u32 %v1999, 4294901760
        %2001 = vmatpush1.msra.mxu0 %v2000
        %2002 = vmatprep.subr.mxu0 0.0
        %2003 = vmatpush2.msra.mxu0 0.0
        %2004 = vmatprep.subr.mxu0 0.0
        %2005 = vmatpush2.msra.mxu0 0.0
        %2006 = vmatprep.subr.mxu0 0.0
        %2007 = vmatpush2.msra.mxu0 0.0
        %2008 = vmatprep.subr.mxu0 0.0
        %2009 = vmatpush2.msra.mxu0 0.0
        %2010 = vmatprep.subr.mxu0 0.0
        %2011 = vmatpush2.msra.mxu0 0.0
        %2012 = vmatprep.subr.mxu0 0.0
        %2013 = vmatpush2.msra.mxu0 0.0
        %2014 = vmatprep.subr.mxu0 0.0
        %2015 = vmatpush2.msra.mxu0 0.0
        %2016 = vmatprep.subr.mxu0 0.0
        %2017 = vmatpush2.msra.mxu0 0.0
        %2018 = vmatprep.subr.mxu0 0.0
        %2019 = vmatpush2.msra.mxu0 0.0
        %2020 = vmatprep.subr.mxu0 0.0
        %2021 = vmatpush2.msra.mxu0 0.0
        %2022 = vmatprep.subr.mxu0 0.0
        %2023 = vmatpush2.msra.mxu0 0.0
        %2024 = vmatprep.subr.mxu0 0.0
        %2025 = vmatpush2.msra.mxu0 0.0
        %2026 = vmatprep.subr.mxu0 0.0
        %2027 = vmatpush2.msra.mxu0 0.0
        %2028 = vmatprep.subr.mxu0 0.0
        %2029 = vmatpush2.msra.mxu0 0.0
        %2030 = vmatprep.subr.mxu0 0.0
        %2031 = vmatpush2.msra.mxu0 0.0
        %2032 = vmatprep.subr.mxu0 0.0
        %2033 = vmatpush2.msra.mxu0 0.0
        %2034 = vmatprep.mubr.f32.mxu0 0.0
        %v2035 = vand.u32 %v1861, 4294901760
        %2036 = vmatmul.mubr.f32.gmra.mxu0 %v2035
        %v2037 = vpop.f32.mrf.mxu0
        %v2038 = vadd.f32 %v1956, %v2037
        %v2039 = vpop.f32.mrf.mxu0
        %v2040 = vadd.f32 %v1958, %v2039
        %2041 = vdwg.mxu0
        %2042 = vmatprep.subr.mxu0 0.0
        %2043 = vmatpush1.msra.mxu0 0.0
        %2044 = vmatprep.subr.mxu0 0.0
        %2045 = vmatpush1.msra.mxu0 0.0
        %2046 = vmatprep.subr.mxu0 0.0
        %2047 = vmatpush1.msra.mxu0 0.0
        %2048 = vmatprep.subr.mxu0 0.0
        %2049 = vmatpush1.msra.mxu0 0.0
        %2050 = vmatprep.subr.mxu0 0.0
        %2051 = vmatpush1.msra.mxu0 0.0
        %2052 = vmatprep.subr.mxu0 0.0
        %2053 = vmatpush1.msra.mxu0 0.0
        %2054 = vmatprep.subr.mxu0 0.0
        %2055 = vmatpush1.msra.mxu0 0.0
        %2056 = vmatprep.subr.mxu0 0.0
        %2057 = vmatpush1.msra.mxu0 0.0
        %2058 = vmatprep.subr.mxu0 0.0
        %2059 = vmatpush1.msra.mxu0 0.0
        %2060 = vmatprep.subr.mxu0 0.0
        %2061 = vmatpush1.msra.mxu0 0.0
        %2062 = vmatprep.subr.mxu0 0.0
        %2063 = vmatpush1.msra.mxu0 0.0
        %2064 = vmatprep.subr.mxu0 0.0
        %2065 = vmatpush1.msra.mxu0 0.0
        %2066 = vmatprep.subr.mxu0 0.0
        %2067 = vmatpush1.msra.mxu0 0.0
        %2068 = vmatprep.subr.mxu0 0.0
        %2069 = vmatpush1.msra.mxu0 0.0
        %2070 = vmatprep.subr.mxu0 0.0
        %2071 = vmatpush1.msra.mxu0 0.0
        %v2072 = vand.u32 %v1868, 4294901760
        %v2073 = vsub.f32 %v1868, %v2072
        %2074 = vmatprep.subr.mxu0 %v2073
        %v2075 = vand.u32 %v1865, 4294901760
        %v2076 = vsub.f32 %v1865, %v2075
        %2077 = vmatpush1.msra.mxu0 %v2076
        %2078 = vmatprep.subr.mxu0 0.0
        %2079 = vmatpush2.msra.mxu0 0.0
        %2080 = vmatprep.subr.mxu0 0.0
        %2081 = vmatpush2.msra.mxu0 0.0
        %2082 = vmatprep.subr.mxu0 0.0
        %2083 = vmatpush2.msra.mxu0 0.0
        %2084 = vmatprep.subr.mxu0 0.0
        %2085 = vmatpush2.msra.mxu0 0.0
        %2086 = vmatprep.subr.mxu0 0.0
        %2087 = vmatpush2.msra.mxu0 0.0
        %2088 = vmatprep.subr.mxu0 0.0
        %2089 = vmatpush2.msra.mxu0 0.0
        %2090 = vmatprep.subr.mxu0 0.0
        %2091 = vmatpush2.msra.mxu0 0.0
        %2092 = vmatprep.subr.mxu0 0.0
        %2093 = vmatpush2.msra.mxu0 0.0
        %2094 = vmatprep.subr.mxu0 0.0
        %2095 = vmatpush2.msra.mxu0 0.0
        %2096 = vmatprep.subr.mxu0 0.0
        %2097 = vmatpush2.msra.mxu0 0.0
        %2098 = vmatprep.subr.mxu0 0.0
        %2099 = vmatpush2.msra.mxu0 0.0
        %2100 = vmatprep.subr.mxu0 0.0
        %2101 = vmatpush2.msra.mxu0 0.0
        %2102 = vmatprep.subr.mxu0 0.0
        %2103 = vmatpush2.msra.mxu0 0.0
        %2104 = vmatprep.subr.mxu0 0.0
        %2105 = vmatpush2.msra.mxu0 0.0
        %2106 = vmatprep.subr.mxu0 0.0
        %2107 = vmatpush2.msra.mxu0 0.0
        %2108 = vmatprep.subr.mxu0 0.0
        %2109 = vmatpush2.msra.mxu0 0.0
        %2110 = vmatprep.mubr.f32.mxu0 0.0
        %v2111 = vand.u32 %v1861, 4294901760
        %v2112 = vsub.f32 %v1861, %v2111
        %2113 = vmatmul.mubr.f32.gmra.mxu0 %v2112
        %v2114 = vpop.f32.mrf.mxu0
        %v2115 = vadd.f32 %v2038, %v2114
        %v2116 = vpop.f32.mrf.mxu0
        %v2117 = vadd.f32 %v2040, %v2116
        %2118 = vdwg.mxu0
        %2119 = vmatprep.subr.mxu0 0.0
        %2120 = vmatpush1.msra.mxu0 0.0
        %2121 = vmatprep.subr.mxu0 0.0
        %2122 = vmatpush1.msra.mxu0 0.0
        %2123 = vmatprep.subr.mxu0 0.0
        %2124 = vmatpush1.msra.mxu0 0.0
        %2125 = vmatprep.subr.mxu0 0.0
        %2126 = vmatpush1.msra.mxu0 0.0
        %2127 = vmatprep.subr.mxu0 0.0
        %2128 = vmatpush1.msra.mxu0 0.0
        %2129 = vmatprep.subr.mxu0 0.0
        %2130 = vmatpush1.msra.mxu0 0.0
        %2131 = vmatprep.subr.mxu0 0.0
        %2132 = vmatpush1.msra.mxu0 0.0
        %2133 = vmatprep.subr.mxu0 0.0
        %2134 = vmatpush1.msra.mxu0 0.0
        %2135 = vmatprep.subr.mxu0 0.0
        %2136 = vmatpush1.msra.mxu0 0.0
        %2137 = vmatprep.subr.mxu0 0.0
        %2138 = vmatpush1.msra.mxu0 0.0
        %2139 = vmatprep.subr.mxu0 0.0
        %2140 = vmatpush1.msra.mxu0 0.0
        %2141 = vmatprep.subr.mxu0 0.0
        %2142 = vmatpush1.msra.mxu0 0.0
        %2143 = vmatprep.subr.mxu0 0.0
        %2144 = vmatpush1.msra.mxu0 0.0
        %2145 = vmatprep.subr.mxu0 0.0
        %2146 = vmatpush1.msra.mxu0 0.0
        %2147 = vmatprep.subr.mxu0 0.0
        %2148 = vmatpush1.msra.mxu0 0.0
        %v2149 = vand.u32 %v1868, 4294901760
        %2150 = vmatprep.subr.mxu0 %v2149
        %v2151 = vand.u32 %v1865, 4294901760
        %2152 = vmatpush1.msra.mxu0 %v2151
        %2153 = vmatprep.subr.mxu0 0.0
        %2154 = vmatpush2.msra.mxu0 0.0
        %2155 = vmatprep.subr.mxu0 0.0
        %2156 = vmatpush2.msra.mxu0 0.0
        %2157 = vmatprep.subr.mxu0 0.0
        %2158 = vmatpush2.msra.mxu0 0.0
        %2159 = vmatprep.subr.mxu0 0.0
        %2160 = vmatpush2.msra.mxu0 0.0
        %2161 = vmatprep.subr.mxu0 0.0
        %2162 = vmatpush2.msra.mxu0 0.0
        %2163 = vmatprep.subr.mxu0 0.0
        %2164 = vmatpush2.msra.mxu0 0.0
        %2165 = vmatprep.subr.mxu0 0.0
        %2166 = vmatpush2.msra.mxu0 0.0
        %2167 = vmatprep.subr.mxu0 0.0
        %2168 = vmatpush2.msra.mxu0 0.0
        %2169 = vmatprep.subr.mxu0 0.0
        %2170 = vmatpush2.msra.mxu0 0.0
        %2171 = vmatprep.subr.mxu0 0.0
        %2172 = vmatpush2.msra.mxu0 0.0
        %2173 = vmatprep.subr.mxu0 0.0
        %2174 = vmatpush2.msra.mxu0 0.0
        %2175 = vmatprep.subr.mxu0 0.0
        %2176 = vmatpush2.msra.mxu0 0.0
        %2177 = vmatprep.subr.mxu0 0.0
        %2178 = vmatpush2.msra.mxu0 0.0
        %2179 = vmatprep.subr.mxu0 0.0
        %2180 = vmatpush2.msra.mxu0 0.0
        %2181 = vmatprep.subr.mxu0 0.0
        %2182 = vmatpush2.msra.mxu0 0.0
        %2183 = vmatprep.subr.mxu0 0.0
        %2184 = vmatpush2.msra.mxu0 0.0
        %2185 = vmatprep.mubr.f32.mxu0 0.0
        %v2186 = vand.u32 %v1861, 4294901760
        %v2187 = vsub.f32 %v1861, %v2186
        %v2188 = vand.u32 %v2187, 4294901760
        %2189 = vmatmul.mubr.f32.gmra.mxu0 %v2188
        %v2190 = vpop.f32.mrf.mxu0
        %v2191 = vadd.f32 %v2115, %v2190
        %v2192 = vpop.f32.mrf.mxu0
        %v2193 = vadd.f32 %v2117, %v2192
        %2194 = vdwg.mxu0
        %2195 = vmatprep.subr.mxu0 0.0
        %2196 = vmatpush1.msra.mxu0 0.0
        %2197 = vmatprep.subr.mxu0 0.0
        %2198 = vmatpush1.msra.mxu0 0.0
        %2199 = vmatprep.subr.mxu0 0.0
        %2200 = vmatpush1.msra.mxu0 0.0
        %2201 = vmatprep.subr.mxu0 0.0
        %2202 = vmatpush1.msra.mxu0 0.0
        %2203 = vmatprep.subr.mxu0 0.0
        %2204 = vmatpush1.msra.mxu0 0.0
        %2205 = vmatprep.subr.mxu0 0.0
        %2206 = vmatpush1.msra.mxu0 0.0
        %2207 = vmatprep.subr.mxu0 0.0
        %2208 = vmatpush1.msra.mxu0 0.0
        %2209 = vmatprep.subr.mxu0 0.0
        %2210 = vmatpush1.msra.mxu0 0.0
        %2211 = vmatprep.subr.mxu0 0.0
        %2212 = vmatpush1.msra.mxu0 0.0
        %2213 = vmatprep.subr.mxu0 0.0
        %2214 = vmatpush1.msra.mxu0 0.0
        %2215 = vmatprep.subr.mxu0 0.0
        %2216 = vmatpush1.msra.mxu0 0.0
        %2217 = vmatprep.subr.mxu0 0.0
        %2218 = vmatpush1.msra.mxu0 0.0
        %2219 = vmatprep.subr.mxu0 0.0
        %2220 = vmatpush1.msra.mxu0 0.0
        %2221 = vmatprep.subr.mxu0 0.0
        %2222 = vmatpush1.msra.mxu0 0.0
        %2223 = vmatprep.subr.mxu0 0.0
        %2224 = vmatpush1.msra.mxu0 0.0
        %v2225 = vand.u32 %v1868, 4294901760
        %v2226 = vsub.f32 %v1868, %v2225
        %v2227 = vand.u32 %v2226, 4294901760
        %2228 = vmatprep.subr.mxu0 %v2227
        %v2229 = vand.u32 %v1865, 4294901760
        %v2230 = vsub.f32 %v1865, %v2229
        %v2231 = vand.u32 %v2230, 4294901760
        %2232 = vmatpush1.msra.mxu0 %v2231
        %2233 = vmatprep.subr.mxu0 0.0
        %2234 = vmatpush2.msra.mxu0 0.0
        %2235 = vmatprep.subr.mxu0 0.0
        %2236 = vmatpush2.msra.mxu0 0.0
        %2237 = vmatprep.subr.mxu0 0.0
        %2238 = vmatpush2.msra.mxu0 0.0
        %2239 = vmatprep.subr.mxu0 0.0
        %2240 = vmatpush2.msra.mxu0 0.0
        %2241 = vmatprep.subr.mxu0 0.0
        %2242 = vmatpush2.msra.mxu0 0.0
        %2243 = vmatprep.subr.mxu0 0.0
        %2244 = vmatpush2.msra.mxu0 0.0
        %2245 = vmatprep.subr.mxu0 0.0
        %2246 = vmatpush2.msra.mxu0 0.0
        %2247 = vmatprep.subr.mxu0 0.0
        %2248 = vmatpush2.msra.mxu0 0.0
        %2249 = vmatprep.subr.mxu0 0.0
        %2250 = vmatpush2.msra.mxu0 0.0
        %2251 = vmatprep.subr.mxu0 0.0
        %2252 = vmatpush2.msra.mxu0 0.0
        %2253 = vmatprep.subr.mxu0 0.0
        %2254 = vmatpush2.msra.mxu0 0.0
        %2255 = vmatprep.subr.mxu0 0.0
        %2256 = vmatpush2.msra.mxu0 0.0
        %2257 = vmatprep.subr.mxu0 0.0
        %2258 = vmatpush2.msra.mxu0 0.0
        %2259 = vmatprep.subr.mxu0 0.0
        %2260 = vmatpush2.msra.mxu0 0.0
        %2261 = vmatprep.subr.mxu0 0.0
        %2262 = vmatpush2.msra.mxu0 0.0
        %2263 = vmatprep.subr.mxu0 0.0
        %2264 = vmatpush2.msra.mxu0 0.0
        %2265 = vmatprep.mubr.f32.mxu0 0.0
        %v2266 = vand.u32 %v1861, 4294901760
        %2267 = vmatmul.mubr.f32.gmra.mxu0 %v2266
        %v2268 = vpop.f32.mrf.mxu0
        %v2269 = vadd.f32 %v2191, %v2268
        %v2270 = vpop.f32.mrf.mxu0
        %v2271 = vadd.f32 %v2193, %v2270
        %2272 = vdwg.mxu0
        %2273 = vmatprep.subr.mxu0 0.0
        %2274 = vmatpush1.msra.mxu0 0.0
        %2275 = vmatprep.subr.mxu0 0.0
        %2276 = vmatpush1.msra.mxu0 0.0
        %2277 = vmatprep.subr.mxu0 0.0
        %2278 = vmatpush1.msra.mxu0 0.0
        %2279 = vmatprep.subr.mxu0 0.0
        %2280 = vmatpush1.msra.mxu0 0.0
        %2281 = vmatprep.subr.mxu0 0.0
        %2282 = vmatpush1.msra.mxu0 0.0
        %2283 = vmatprep.subr.mxu0 0.0
        %2284 = vmatpush1.msra.mxu0 0.0
        %2285 = vmatprep.subr.mxu0 0.0
        %2286 = vmatpush1.msra.mxu0 0.0
        %2287 = vmatprep.subr.mxu0 0.0
        %2288 = vmatpush1.msra.mxu0 0.0
        %2289 = vmatprep.subr.mxu0 0.0
        %2290 = vmatpush1.msra.mxu0 0.0
        %2291 = vmatprep.subr.mxu0 0.0
        %2292 = vmatpush1.msra.mxu0 0.0
        %2293 = vmatprep.subr.mxu0 0.0
        %2294 = vmatpush1.msra.mxu0 0.0
        %2295 = vmatprep.subr.mxu0 0.0
        %2296 = vmatpush1.msra.mxu0 0.0
        %2297 = vmatprep.subr.mxu0 0.0
        %2298 = vmatpush1.msra.mxu0 0.0
        %2299 = vmatprep.subr.mxu0 0.0
        %2300 = vmatpush1.msra.mxu0 0.0
        %2301 = vmatprep.subr.mxu0 0.0
        %2302 = vmatpush1.msra.mxu0 0.0
        %v2303 = vand.u32 %v1868, 4294901760
        %2304 = vmatprep.subr.mxu0 %v2303
        %v2305 = vand.u32 %v1865, 4294901760
        %2306 = vmatpush1.msra.mxu0 %v2305
        %2307 = vmatprep.subr.mxu0 0.0
        %2308 = vmatpush2.msra.mxu0 0.0
        %2309 = vmatprep.subr.mxu0 0.0
        %2310 = vmatpush2.msra.mxu0 0.0
        %2311 = vmatprep.subr.mxu0 0.0
        %2312 = vmatpush2.msra.mxu0 0.0
        %2313 = vmatprep.subr.mxu0 0.0
        %2314 = vmatpush2.msra.mxu0 0.0
        %2315 = vmatprep.subr.mxu0 0.0
        %2316 = vmatpush2.msra.mxu0 0.0
        %2317 = vmatprep.subr.mxu0 0.0
        %2318 = vmatpush2.msra.mxu0 0.0
        %2319 = vmatprep.subr.mxu0 0.0
        %2320 = vmatpush2.msra.mxu0 0.0
        %2321 = vmatprep.subr.mxu0 0.0
        %2322 = vmatpush2.msra.mxu0 0.0
        %2323 = vmatprep.subr.mxu0 0.0
        %2324 = vmatpush2.msra.mxu0 0.0
        %2325 = vmatprep.subr.mxu0 0.0
        %2326 = vmatpush2.msra.mxu0 0.0
        %2327 = vmatprep.subr.mxu0 0.0
        %2328 = vmatpush2.msra.mxu0 0.0
        %2329 = vmatprep.subr.mxu0 0.0
        %2330 = vmatpush2.msra.mxu0 0.0
        %2331 = vmatprep.subr.mxu0 0.0
        %2332 = vmatpush2.msra.mxu0 0.0
        %2333 = vmatprep.subr.mxu0 0.0
        %2334 = vmatpush2.msra.mxu0 0.0
        %2335 = vmatprep.subr.mxu0 0.0
        %2336 = vmatpush2.msra.mxu0 0.0
        %2337 = vmatprep.subr.mxu0 0.0
        %2338 = vmatpush2.msra.mxu0 0.0
        %2339 = vmatprep.mubr.f32.mxu0 0.0
        %v2340 = vand.u32 %v1861, 4294901760
        %2341 = vmatmul.mubr.f32.gmra.mxu0 %v2340
        %v2342 = vpop.f32.mrf.mxu0
        %v2343 = vadd.f32 %v2269, %v2342
        %v2344 = vpop.f32.mrf.mxu0
        %v2345 = vadd.f32 %v2271, %v2344
        %2346 = vdwg.mxu0
        %2347 = vmatprep.subr.mxu0 0.0
        %2348 = vmatpush1.msra.mxu0 0.0
        %2349 = vmatprep.subr.mxu0 0.0
        %2350 = vmatpush1.msra.mxu0 0.0
        %2351 = vmatprep.subr.mxu0 0.0
        %2352 = vmatpush1.msra.mxu0 0.0
        %2353 = vmatprep.subr.mxu0 0.0
        %2354 = vmatpush1.msra.mxu0 0.0
        %2355 = vmatprep.subr.mxu0 0.0
        %2356 = vmatpush1.msra.mxu0 0.0
        %2357 = vmatprep.subr.mxu0 0.0
        %2358 = vmatpush1.msra.mxu0 0.0
        %2359 = vmatprep.subr.mxu0 0.0
        %2360 = vmatpush1.msra.mxu0 0.0
        %2361 = vmatprep.subr.mxu0 0.0
        %2362 = vmatpush1.msra.mxu0 0.0
        %2363 = vmatprep.subr.mxu0 0.0
        %2364 = vmatpush1.msra.mxu0 0.0
        %2365 = vmatprep.subr.mxu0 0.0
        %2366 = vmatpush1.msra.mxu0 0.0
        %2367 = vmatprep.subr.mxu0 0.0
        %2368 = vmatpush1.msra.mxu0 0.0
        %2369 = vmatprep.subr.mxu0 0.0
        %2370 = vmatpush1.msra.mxu0 0.0
        %2371 = vmatprep.subr.mxu0 0.0
        %2372 = vmatpush1.msra.mxu0 0.0
        %2373 = vmatprep.subr.mxu0 0.0
        %2374 = vmatpush1.msra.mxu0 0.0
        %2375 = vmatprep.subr.mxu0 0.0
        %2376 = vmatpush1.msra.mxu0 0.0
        %v2377 = vand.u32 %v1874, 4294901760
        %2378 = vmatprep.subr.mxu0 %v2377
        %v2379 = vand.u32 %v1871, 4294901760
        %2380 = vmatpush1.msra.mxu0 %v2379
        %2381 = vmatprep.subr.mxu0 0.0
        %2382 = vmatpush2.msra.mxu0 0.0
        %2383 = vmatprep.subr.mxu0 0.0
        %2384 = vmatpush2.msra.mxu0 0.0
        %2385 = vmatprep.subr.mxu0 0.0
        %2386 = vmatpush2.msra.mxu0 0.0
        %2387 = vmatprep.subr.mxu0 0.0
        %2388 = vmatpush2.msra.mxu0 0.0
        %2389 = vmatprep.subr.mxu0 0.0
        %2390 = vmatpush2.msra.mxu0 0.0
        %2391 = vmatprep.subr.mxu0 0.0
        %2392 = vmatpush2.msra.mxu0 0.0
        %2393 = vmatprep.subr.mxu0 0.0
        %2394 = vmatpush2.msra.mxu0 0.0
        %2395 = vmatprep.subr.mxu0 0.0
        %2396 = vmatpush2.msra.mxu0 0.0
        %2397 = vmatprep.subr.mxu0 0.0
        %2398 = vmatpush2.msra.mxu0 0.0
        %2399 = vmatprep.subr.mxu0 0.0
        %2400 = vmatpush2.msra.mxu0 0.0
        %2401 = vmatprep.subr.mxu0 0.0
        %2402 = vmatpush2.msra.mxu0 0.0
        %2403 = vmatprep.subr.mxu0 0.0
        %2404 = vmatpush2.msra.mxu0 0.0
        %2405 = vmatprep.subr.mxu0 0.0
        %2406 = vmatpush2.msra.mxu0 0.0
        %2407 = vmatprep.subr.mxu0 0.0
        %2408 = vmatpush2.msra.mxu0 0.0
        %2409 = vmatprep.subr.mxu0 0.0
        %2410 = vmatpush2.msra.mxu0 0.0
        %2411 = vmatprep.subr.mxu0 0.0
        %2412 = vmatpush2.msra.mxu0 0.0
        %2413 = vmatprep.mubr.f32.mxu0 0.0
        %v2414 = vand.u32 %v1861, 4294901760
        %v2415 = vsub.f32 %v1861, %v2414
        %v2416 = vand.u32 %v2415, 4294901760
        %v2417 = vsub.f32 %v2415, %v2416
        %v2418 = vand.u32 %v2417, 4294901760
        %2419 = vmatmul.mubr.f32.gmra.mxu0 %v2418
        %v2420 = vpop.f32.mrf.mxu0
        %v2421 = vadd.f32 %v1857, %v2420
        %v2422 = vpop.f32.mrf.mxu0
        %v2423 = vadd.f32 %v1857, %v2422
        %2424 = vdwg.mxu0
        %2425 = vmatprep.subr.mxu0 0.0
        %2426 = vmatpush1.msra.mxu0 0.0
        %2427 = vmatprep.subr.mxu0 0.0
        %2428 = vmatpush1.msra.mxu0 0.0
        %2429 = vmatprep.subr.mxu0 0.0
        %2430 = vmatpush1.msra.mxu0 0.0
        %2431 = vmatprep.subr.mxu0 0.0
        %2432 = vmatpush1.msra.mxu0 0.0
        %2433 = vmatprep.subr.mxu0 0.0
        %2434 = vmatpush1.msra.mxu0 0.0
        %2435 = vmatprep.subr.mxu0 0.0
        %2436 = vmatpush1.msra.mxu0 0.0
        %2437 = vmatprep.subr.mxu0 0.0
        %2438 = vmatpush1.msra.mxu0 0.0
        %2439 = vmatprep.subr.mxu0 0.0
        %2440 = vmatpush1.msra.mxu0 0.0
        %2441 = vmatprep.subr.mxu0 0.0
        %2442 = vmatpush1.msra.mxu0 0.0
        %2443 = vmatprep.subr.mxu0 0.0
        %2444 = vmatpush1.msra.mxu0 0.0
        %2445 = vmatprep.subr.mxu0 0.0
        %2446 = vmatpush1.msra.mxu0 0.0
        %2447 = vmatprep.subr.mxu0 0.0
        %2448 = vmatpush1.msra.mxu0 0.0
        %2449 = vmatprep.subr.mxu0 0.0
        %2450 = vmatpush1.msra.mxu0 0.0
        %2451 = vmatprep.subr.mxu0 0.0
        %2452 = vmatpush1.msra.mxu0 0.0
        %2453 = vmatprep.subr.mxu0 0.0
        %2454 = vmatpush1.msra.mxu0 0.0
        %v2455 = vand.u32 %v1874, 4294901760
        %v2456 = vsub.f32 %v1874, %v2455
        %v2457 = vand.u32 %v2456, 4294901760
        %v2458 = vsub.f32 %v2456, %v2457
        %v2459 = vand.u32 %v2458, 4294901760
        %2460 = vmatprep.subr.mxu0 %v2459
        %v2461 = vand.u32 %v1871, 4294901760
        %v2462 = vsub.f32 %v1871, %v2461
        %v2463 = vand.u32 %v2462, 4294901760
        %v2464 = vsub.f32 %v2462, %v2463
        %v2465 = vand.u32 %v2464, 4294901760
        %2466 = vmatpush1.msra.mxu0 %v2465
        %2467 = vmatprep.subr.mxu0 0.0
        %2468 = vmatpush2.msra.mxu0 0.0
        %2469 = vmatprep.subr.mxu0 0.0
        %2470 = vmatpush2.msra.mxu0 0.0
        %2471 = vmatprep.subr.mxu0 0.0
        %2472 = vmatpush2.msra.mxu0 0.0
        %2473 = vmatprep.subr.mxu0 0.0
        %2474 = vmatpush2.msra.mxu0 0.0
        %2475 = vmatprep.subr.mxu0 0.0
        %2476 = vmatpush2.msra.mxu0 0.0
        %2477 = vmatprep.subr.mxu0 0.0
        %2478 = vmatpush2.msra.mxu0 0.0
        %2479 = vmatprep.subr.mxu0 0.0
        %2480 = vmatpush2.msra.mxu0 0.0
        %2481 = vmatprep.subr.mxu0 0.0
        %2482 = vmatpush2.msra.mxu0 0.0
        %2483 = vmatprep.subr.mxu0 0.0
        %2484 = vmatpush2.msra.mxu0 0.0
        %2485 = vmatprep.subr.mxu0 0.0
        %2486 = vmatpush2.msra.mxu0 0.0
        %2487 = vmatprep.subr.mxu0 0.0
        %2488 = vmatpush2.msra.mxu0 0.0
        %2489 = vmatprep.subr.mxu0 0.0
        %2490 = vmatpush2.msra.mxu0 0.0
        %2491 = vmatprep.subr.mxu0 0.0
        %2492 = vmatpush2.msra.mxu0 0.0
        %2493 = vmatprep.subr.mxu0 0.0
        %2494 = vmatpush2.msra.mxu0 0.0
        %2495 = vmatprep.subr.mxu0 0.0
        %2496 = vmatpush2.msra.mxu0 0.0
        %2497 = vmatprep.subr.mxu0 0.0
        %2498 = vmatpush2.msra.mxu0 0.0
        %2499 = vmatprep.mubr.f32.mxu0 0.0
        %v2500 = vand.u32 %v1861, 4294901760
        %2501 = vmatmul.mubr.f32.gmra.mxu0 %v2500
        %v2502 = vpop.f32.mrf.mxu0
        %v2503 = vadd.f32 %v2421, %v2502
        %v2504 = vpop.f32.mrf.mxu0
        %v2505 = vadd.f32 %v2423, %v2504
        %2506 = vdwg.mxu0
        %2507 = vmatprep.subr.mxu0 0.0
        %2508 = vmatpush1.msra.mxu0 0.0
        %2509 = vmatprep.subr.mxu0 0.0
        %2510 = vmatpush1.msra.mxu0 0.0
        %2511 = vmatprep.subr.mxu0 0.0
        %2512 = vmatpush1.msra.mxu0 0.0
        %2513 = vmatprep.subr.mxu0 0.0
        %2514 = vmatpush1.msra.mxu0 0.0
        %2515 = vmatprep.subr.mxu0 0.0
        %2516 = vmatpush1.msra.mxu0 0.0
        %2517 = vmatprep.subr.mxu0 0.0
        %2518 = vmatpush1.msra.mxu0 0.0
        %2519 = vmatprep.subr.mxu0 0.0
        %2520 = vmatpush1.msra.mxu0 0.0
        %2521 = vmatprep.subr.mxu0 0.0
        %2522 = vmatpush1.msra.mxu0 0.0
        %2523 = vmatprep.subr.mxu0 0.0
        %2524 = vmatpush1.msra.mxu0 0.0
        %2525 = vmatprep.subr.mxu0 0.0
        %2526 = vmatpush1.msra.mxu0 0.0
        %2527 = vmatprep.subr.mxu0 0.0
        %2528 = vmatpush1.msra.mxu0 0.0
        %2529 = vmatprep.subr.mxu0 0.0
        %2530 = vmatpush1.msra.mxu0 0.0
        %2531 = vmatprep.subr.mxu0 0.0
        %2532 = vmatpush1.msra.mxu0 0.0
        %2533 = vmatprep.subr.mxu0 0.0
        %2534 = vmatpush1.msra.mxu0 0.0
        %2535 = vmatprep.subr.mxu0 0.0
        %2536 = vmatpush1.msra.mxu0 0.0
        %v2537 = vand.u32 %v1874, 4294901760
        %v2538 = vsub.f32 %v1874, %v2537
        %2539 = vmatprep.subr.mxu0 %v2538
        %v2540 = vand.u32 %v1871, 4294901760
        %v2541 = vsub.f32 %v1871, %v2540
        %2542 = vmatpush1.msra.mxu0 %v2541
        %2543 = vmatprep.subr.mxu0 0.0
        %2544 = vmatpush2.msra.mxu0 0.0
        %2545 = vmatprep.subr.mxu0 0.0
        %2546 = vmatpush2.msra.mxu0 0.0
        %2547 = vmatprep.subr.mxu0 0.0
        %2548 = vmatpush2.msra.mxu0 0.0
        %2549 = vmatprep.subr.mxu0 0.0
        %2550 = vmatpush2.msra.mxu0 0.0
        %2551 = vmatprep.subr.mxu0 0.0
        %2552 = vmatpush2.msra.mxu0 0.0
        %2553 = vmatprep.subr.mxu0 0.0
        %2554 = vmatpush2.msra.mxu0 0.0
        %2555 = vmatprep.subr.mxu0 0.0
        %2556 = vmatpush2.msra.mxu0 0.0
        %2557 = vmatprep.subr.mxu0 0.0
        %2558 = vmatpush2.msra.mxu0 0.0
        %2559 = vmatprep.subr.mxu0 0.0
        %2560 = vmatpush2.msra.mxu0 0.0
        %2561 = vmatprep.subr.mxu0 0.0
        %2562 = vmatpush2.msra.mxu0 0.0
        %2563 = vmatprep.subr.mxu0 0.0
        %2564 = vmatpush2.msra.mxu0 0.0
        %2565 = vmatprep.subr.mxu0 0.0
        %2566 = vmatpush2.msra.mxu0 0.0
        %2567 = vmatprep.subr.mxu0 0.0
        %2568 = vmatpush2.msra.mxu0 0.0
        %2569 = vmatprep.subr.mxu0 0.0
        %2570 = vmatpush2.msra.mxu0 0.0
        %2571 = vmatprep.subr.mxu0 0.0
        %2572 = vmatpush2.msra.mxu0 0.0
        %2573 = vmatprep.subr.mxu0 0.0
        %2574 = vmatpush2.msra.mxu0 0.0
        %2575 = vmatprep.mubr.f32.mxu0 0.0
        %v2576 = vand.u32 %v1861, 4294901760
        %v2577 = vsub.f32 %v1861, %v2576
        %2578 = vmatmul.mubr.f32.gmra.mxu0 %v2577
        %v2579 = vpop.f32.mrf.mxu0
        %v2580 = vadd.f32 %v2503, %v2579
        %v2581 = vpop.f32.mrf.mxu0
        %v2582 = vadd.f32 %v2505, %v2581
        %2583 = vdwg.mxu0
        %2584 = vmatprep.subr.mxu0 0.0
        %2585 = vmatpush1.msra.mxu0 0.0
        %2586 = vmatprep.subr.mxu0 0.0
        %2587 = vmatpush1.msra.mxu0 0.0
        %2588 = vmatprep.subr.mxu0 0.0
        %2589 = vmatpush1.msra.mxu0 0.0
        %2590 = vmatprep.subr.mxu0 0.0
        %2591 = vmatpush1.msra.mxu0 0.0
        %2592 = vmatprep.subr.mxu0 0.0
        %2593 = vmatpush1.msra.mxu0 0.0
        %2594 = vmatprep.subr.mxu0 0.0
        %2595 = vmatpush1.msra.mxu0 0.0
        %2596 = vmatprep.subr.mxu0 0.0
        %2597 = vmatpush1.msra.mxu0 0.0
        %2598 = vmatprep.subr.mxu0 0.0
        %2599 = vmatpush1.msra.mxu0 0.0
        %2600 = vmatprep.subr.mxu0 0.0
        %2601 = vmatpush1.msra.mxu0 0.0
        %2602 = vmatprep.subr.mxu0 0.0
        %2603 = vmatpush1.msra.mxu0 0.0
        %2604 = vmatprep.subr.mxu0 0.0
        %2605 = vmatpush1.msra.mxu0 0.0
        %2606 = vmatprep.subr.mxu0 0.0
        %2607 = vmatpush1.msra.mxu0 0.0
        %2608 = vmatprep.subr.mxu0 0.0
        %2609 = vmatpush1.msra.mxu0 0.0
        %2610 = vmatprep.subr.mxu0 0.0
        %2611 = vmatpush1.msra.mxu0 0.0
        %2612 = vmatprep.subr.mxu0 0.0
        %2613 = vmatpush1.msra.mxu0 0.0
        %v2614 = vand.u32 %v1874, 4294901760
        %2615 = vmatprep.subr.mxu0 %v2614
        %v2616 = vand.u32 %v1871, 4294901760
        %2617 = vmatpush1.msra.mxu0 %v2616
        %2618 = vmatprep.subr.mxu0 0.0
        %2619 = vmatpush2.msra.mxu0 0.0
        %2620 = vmatprep.subr.mxu0 0.0
        %2621 = vmatpush2.msra.mxu0 0.0
        %2622 = vmatprep.subr.mxu0 0.0
        %2623 = vmatpush2.msra.mxu0 0.0
        %2624 = vmatprep.subr.mxu0 0.0
        %2625 = vmatpush2.msra.mxu0 0.0
        %2626 = vmatprep.subr.mxu0 0.0
        %2627 = vmatpush2.msra.mxu0 0.0
        %2628 = vmatprep.subr.mxu0 0.0
        %2629 = vmatpush2.msra.mxu0 0.0
        %2630 = vmatprep.subr.mxu0 0.0
        %2631 = vmatpush2.msra.mxu0 0.0
        %2632 = vmatprep.subr.mxu0 0.0
        %2633 = vmatpush2.msra.mxu0 0.0
        %2634 = vmatprep.subr.mxu0 0.0
        %2635 = vmatpush2.msra.mxu0 0.0
        %2636 = vmatprep.subr.mxu0 0.0
        %2637 = vmatpush2.msra.mxu0 0.0
        %2638 = vmatprep.subr.mxu0 0.0
        %2639 = vmatpush2.msra.mxu0 0.0
        %2640 = vmatprep.subr.mxu0 0.0
        %2641 = vmatpush2.msra.mxu0 0.0
        %2642 = vmatprep.subr.mxu0 0.0
        %2643 = vmatpush2.msra.mxu0 0.0
        %2644 = vmatprep.subr.mxu0 0.0
        %2645 = vmatpush2.msra.mxu0 0.0
        %2646 = vmatprep.subr.mxu0 0.0
        %2647 = vmatpush2.msra.mxu0 0.0
        %2648 = vmatprep.subr.mxu0 0.0
        %2649 = vmatpush2.msra.mxu0 0.0
        %2650 = vmatprep.mubr.f32.mxu0 0.0
        %v2651 = vand.u32 %v1861, 4294901760
        %v2652 = vsub.f32 %v1861, %v2651
        %v2653 = vand.u32 %v2652, 4294901760
        %2654 = vmatmul.mubr.f32.gmra.mxu0 %v2653
        %v2655 = vpop.f32.mrf.mxu0
        %v2656 = vadd.f32 %v2580, %v2655
        %v2657 = vpop.f32.mrf.mxu0
        %v2658 = vadd.f32 %v2582, %v2657
        %2659 = vdwg.mxu0
        %2660 = vmatprep.subr.mxu0 0.0
        %2661 = vmatpush1.msra.mxu0 0.0
        %2662 = vmatprep.subr.mxu0 0.0
        %2663 = vmatpush1.msra.mxu0 0.0
        %2664 = vmatprep.subr.mxu0 0.0
        %2665 = vmatpush1.msra.mxu0 0.0
        %2666 = vmatprep.subr.mxu0 0.0
        %2667 = vmatpush1.msra.mxu0 0.0
        %2668 = vmatprep.subr.mxu0 0.0
        %2669 = vmatpush1.msra.mxu0 0.0
        %2670 = vmatprep.subr.mxu0 0.0
        %2671 = vmatpush1.msra.mxu0 0.0
        %2672 = vmatprep.subr.mxu0 0.0
        %2673 = vmatpush1.msra.mxu0 0.0
        %2674 = vmatprep.subr.mxu0 0.0
        %2675 = vmatpush1.msra.mxu0 0.0
        %2676 = vmatprep.subr.mxu0 0.0
        %2677 = vmatpush1.msra.mxu0 0.0
        %2678 = vmatprep.subr.mxu0 0.0
        %2679 = vmatpush1.msra.mxu0 0.0
        %2680 = vmatprep.subr.mxu0 0.0
        %2681 = vmatpush1.msra.mxu0 0.0
        %2682 = vmatprep.subr.mxu0 0.0
        %2683 = vmatpush1.msra.mxu0 0.0
        %2684 = vmatprep.subr.mxu0 0.0
        %2685 = vmatpush1.msra.mxu0 0.0
        %2686 = vmatprep.subr.mxu0 0.0
        %2687 = vmatpush1.msra.mxu0 0.0
        %2688 = vmatprep.subr.mxu0 0.0
        %2689 = vmatpush1.msra.mxu0 0.0
        %v2690 = vand.u32 %v1874, 4294901760
        %v2691 = vsub.f32 %v1874, %v2690
        %v2692 = vand.u32 %v2691, 4294901760
        %2693 = vmatprep.subr.mxu0 %v2692
        %v2694 = vand.u32 %v1871, 4294901760
        %v2695 = vsub.f32 %v1871, %v2694
        %v2696 = vand.u32 %v2695, 4294901760
        %2697 = vmatpush1.msra.mxu0 %v2696
        %2698 = vmatprep.subr.mxu0 0.0
        %2699 = vmatpush2.msra.mxu0 0.0
        %2700 = vmatprep.subr.mxu0 0.0
        %2701 = vmatpush2.msra.mxu0 0.0
        %2702 = vmatprep.subr.mxu0 0.0
        %2703 = vmatpush2.msra.mxu0 0.0
        %2704 = vmatprep.subr.mxu0 0.0
        %2705 = vmatpush2.msra.mxu0 0.0
        %2706 = vmatprep.subr.mxu0 0.0
        %2707 = vmatpush2.msra.mxu0 0.0
        %2708 = vmatprep.subr.mxu0 0.0
        %2709 = vmatpush2.msra.mxu0 0.0
        %2710 = vmatprep.subr.mxu0 0.0
        %2711 = vmatpush2.msra.mxu0 0.0
        %2712 = vmatprep.subr.mxu0 0.0
        %2713 = vmatpush2.msra.mxu0 0.0
        %2714 = vmatprep.subr.mxu0 0.0
        %2715 = vmatpush2.msra.mxu0 0.0
        %2716 = vmatprep.subr.mxu0 0.0
        %2717 = vmatpush2.msra.mxu0 0.0
        %2718 = vmatprep.subr.mxu0 0.0
        %2719 = vmatpush2.msra.mxu0 0.0
        %2720 = vmatprep.subr.mxu0 0.0
        %2721 = vmatpush2.msra.mxu0 0.0
        %2722 = vmatprep.subr.mxu0 0.0
        %2723 = vmatpush2.msra.mxu0 0.0
        %2724 = vmatprep.subr.mxu0 0.0
        %2725 = vmatpush2.msra.mxu0 0.0
        %2726 = vmatprep.subr.mxu0 0.0
        %2727 = vmatpush2.msra.mxu0 0.0
        %2728 = vmatprep.subr.mxu0 0.0
        %2729 = vmatpush2.msra.mxu0 0.0
        %2730 = vmatprep.mubr.f32.mxu0 0.0
        %v2731 = vand.u32 %v1861, 4294901760
        %2732 = vmatmul.mubr.f32.gmra.mxu0 %v2731
        %v2733 = vpop.f32.mrf.mxu0
        %v2734 = vadd.f32 %v2656, %v2733
        %v2735 = vpop.f32.mrf.mxu0
        %v2736 = vadd.f32 %v2658, %v2735
        %2737 = vdwg.mxu0
        %2738 = vmatprep.subr.mxu0 0.0
        %2739 = vmatpush1.msra.mxu0 0.0
        %2740 = vmatprep.subr.mxu0 0.0
        %2741 = vmatpush1.msra.mxu0 0.0
        %2742 = vmatprep.subr.mxu0 0.0
        %2743 = vmatpush1.msra.mxu0 0.0
        %2744 = vmatprep.subr.mxu0 0.0
        %2745 = vmatpush1.msra.mxu0 0.0
        %2746 = vmatprep.subr.mxu0 0.0
        %2747 = vmatpush1.msra.mxu0 0.0
        %2748 = vmatprep.subr.mxu0 0.0
        %2749 = vmatpush1.msra.mxu0 0.0
        %2750 = vmatprep.subr.mxu0 0.0
        %2751 = vmatpush1.msra.mxu0 0.0
        %2752 = vmatprep.subr.mxu0 0.0
        %2753 = vmatpush1.msra.mxu0 0.0
        %2754 = vmatprep.subr.mxu0 0.0
        %2755 = vmatpush1.msra.mxu0 0.0
        %2756 = vmatprep.subr.mxu0 0.0
        %2757 = vmatpush1.msra.mxu0 0.0
        %2758 = vmatprep.subr.mxu0 0.0
        %2759 = vmatpush1.msra.mxu0 0.0
        %2760 = vmatprep.subr.mxu0 0.0
        %2761 = vmatpush1.msra.mxu0 0.0
        %2762 = vmatprep.subr.mxu0 0.0
        %2763 = vmatpush1.msra.mxu0 0.0
        %2764 = vmatprep.subr.mxu0 0.0
        %2765 = vmatpush1.msra.mxu0 0.0
        %2766 = vmatprep.subr.mxu0 0.0
        %2767 = vmatpush1.msra.mxu0 0.0
        %v2768 = vand.u32 %v1874, 4294901760
        %2769 = vmatprep.subr.mxu0 %v2768
        %v2770 = vand.u32 %v1871, 4294901760
        %2771 = vmatpush1.msra.mxu0 %v2770
        %2772 = vmatprep.subr.mxu0 0.0
        %2773 = vmatpush2.msra.mxu0 0.0
        %2774 = vmatprep.subr.mxu0 0.0
        %2775 = vmatpush2.msra.mxu0 0.0
        %2776 = vmatprep.subr.mxu0 0.0
        %2777 = vmatpush2.msra.mxu0 0.0
        %2778 = vmatprep.subr.mxu0 0.0
        %2779 = vmatpush2.msra.mxu0 0.0
        %2780 = vmatprep.subr.mxu0 0.0
        %2781 = vmatpush2.msra.mxu0 0.0
        %2782 = vmatprep.subr.mxu0 0.0
        %2783 = vmatpush2.msra.mxu0 0.0
        %2784 = vmatprep.subr.mxu0 0.0
        %2785 = vmatpush2.msra.mxu0 0.0
        %2786 = vmatprep.subr.mxu0 0.0
        %2787 = vmatpush2.msra.mxu0 0.0
        %2788 = vmatprep.subr.mxu0 0.0
        %2789 = vmatpush2.msra.mxu0 0.0
        %2790 = vmatprep.subr.mxu0 0.0
        %2791 = vmatpush2.msra.mxu0 0.0
        %2792 = vmatprep.subr.mxu0 0.0
        %2793 = vmatpush2.msra.mxu0 0.0
        %2794 = vmatprep.subr.mxu0 0.0
        %2795 = vmatpush2.msra.mxu0 0.0
        %2796 = vmatprep.subr.mxu0 0.0
        %2797 = vmatpush2.msra.mxu0 0.0
        %2798 = vmatprep.subr.mxu0 0.0
        %2799 = vmatpush2.msra.mxu0 0.0
        %2800 = vmatprep.subr.mxu0 0.0
        %2801 = vmatpush2.msra.mxu0 0.0
        %2802 = vmatprep.subr.mxu0 0.0
        %2803 = vmatpush2.msra.mxu0 0.0
        %2804 = vmatprep.mubr.f32.mxu0 0.0
        %v2805 = vand.u32 %v1861, 4294901760
        %2806 = vmatmul.mubr.f32.gmra.mxu0 %v2805
        %v2807 = vpop.f32.mrf.mxu0
        %v2808 = vadd.f32 %v2734, %v2807
        %v2809 = vpop.f32.mrf.mxu0
        %v2810 = vadd.f32 %v2736, %v2809
        %2811 = vdwg.mxu0
        %2812 = vmatprep.subr.mxu0 0.0
        %2813 = vmatpush1.msra.mxu0 0.0
        %2814 = vmatprep.subr.mxu0 0.0
        %2815 = vmatpush1.msra.mxu0 0.0
        %2816 = vmatprep.subr.mxu0 0.0
        %2817 = vmatpush1.msra.mxu0 0.0
        %2818 = vmatprep.subr.mxu0 0.0
        %2819 = vmatpush1.msra.mxu0 0.0
        %2820 = vmatprep.subr.mxu0 0.0
        %2821 = vmatpush1.msra.mxu0 0.0
        %2822 = vmatprep.subr.mxu0 0.0
        %2823 = vmatpush1.msra.mxu0 0.0
        %2824 = vmatprep.subr.mxu0 0.0
        %2825 = vmatpush1.msra.mxu0 0.0
        %2826 = vmatprep.subr.mxu0 0.0
        %2827 = vmatpush1.msra.mxu0 0.0
        %2828 = vmatprep.subr.mxu0 0.0
        %2829 = vmatpush1.msra.mxu0 0.0
        %2830 = vmatprep.subr.mxu0 0.0
        %2831 = vmatpush1.msra.mxu0 0.0
        %2832 = vmatprep.subr.mxu0 0.0
        %2833 = vmatpush1.msra.mxu0 0.0
        %2834 = vmatprep.subr.mxu0 0.0
        %2835 = vmatpush1.msra.mxu0 0.0
        %2836 = vmatprep.subr.mxu0 0.0
        %2837 = vmatpush1.msra.mxu0 0.0
        %2838 = vmatprep.subr.mxu0 0.0
        %2839 = vmatpush1.msra.mxu0 0.0
        %2840 = vmatprep.subr.mxu0 0.0
        %2841 = vmatpush1.msra.mxu0 0.0
        %v2842 = vand.u32 %v1880, 4294901760
        %2843 = vmatprep.subr.mxu0 %v2842
        %v2844 = vand.u32 %v1877, 4294901760
        %2845 = vmatpush1.msra.mxu0 %v2844
        %2846 = vmatprep.subr.mxu0 0.0
        %2847 = vmatpush2.msra.mxu0 0.0
        %2848 = vmatprep.subr.mxu0 0.0
        %2849 = vmatpush2.msra.mxu0 0.0
        %2850 = vmatprep.subr.mxu0 0.0
        %2851 = vmatpush2.msra.mxu0 0.0
        %2852 = vmatprep.subr.mxu0 0.0
        %2853 = vmatpush2.msra.mxu0 0.0
        %2854 = vmatprep.subr.mxu0 0.0
        %2855 = vmatpush2.msra.mxu0 0.0
        %2856 = vmatprep.subr.mxu0 0.0
        %2857 = vmatpush2.msra.mxu0 0.0
        %2858 = vmatprep.subr.mxu0 0.0
        %2859 = vmatpush2.msra.mxu0 0.0
        %2860 = vmatprep.subr.mxu0 0.0
        %2861 = vmatpush2.msra.mxu0 0.0
        %2862 = vmatprep.subr.mxu0 0.0
        %2863 = vmatpush2.msra.mxu0 0.0
        %2864 = vmatprep.subr.mxu0 0.0
        %2865 = vmatpush2.msra.mxu0 0.0
        %2866 = vmatprep.subr.mxu0 0.0
        %2867 = vmatpush2.msra.mxu0 0.0
        %2868 = vmatprep.subr.mxu0 0.0
        %2869 = vmatpush2.msra.mxu0 0.0
        %2870 = vmatprep.subr.mxu0 0.0
        %2871 = vmatpush2.msra.mxu0 0.0
        %2872 = vmatprep.subr.mxu0 0.0
        %2873 = vmatpush2.msra.mxu0 0.0
        %2874 = vmatprep.subr.mxu0 0.0
        %2875 = vmatpush2.msra.mxu0 0.0
        %2876 = vmatprep.subr.mxu0 0.0
        %2877 = vmatpush2.msra.mxu0 0.0
        %2878 = vmatprep.mubr.f32.mxu0 0.0
        %v2879 = vand.u32 %v1861, 4294901760
        %v2880 = vsub.f32 %v1861, %v2879
        %v2881 = vand.u32 %v2880, 4294901760
        %v2882 = vsub.f32 %v2880, %v2881
        %v2883 = vand.u32 %v2882, 4294901760
        %2884 = vmatmul.mubr.f32.gmra.mxu0 %v2883
        %v2885 = vpop.f32.mrf.mxu0
        %v2886 = vadd.f32 %v1857, %v2885
        %v2887 = vpop.f32.mrf.mxu0
        %v2888 = vadd.f32 %v1857, %v2887
        %2889 = vdwg.mxu0
        %2890 = vmatprep.subr.mxu0 0.0
        %2891 = vmatpush1.msra.mxu0 0.0
        %2892 = vmatprep.subr.mxu0 0.0
        %2893 = vmatpush1.msra.mxu0 0.0
        %2894 = vmatprep.subr.mxu0 0.0
        %2895 = vmatpush1.msra.mxu0 0.0
        %2896 = vmatprep.subr.mxu0 0.0
        %2897 = vmatpush1.msra.mxu0 0.0
        %2898 = vmatprep.subr.mxu0 0.0
        %2899 = vmatpush1.msra.mxu0 0.0
        %2900 = vmatprep.subr.mxu0 0.0
        %2901 = vmatpush1.msra.mxu0 0.0
        %2902 = vmatprep.subr.mxu0 0.0
        %2903 = vmatpush1.msra.mxu0 0.0
        %2904 = vmatprep.subr.mxu0 0.0
        %2905 = vmatpush1.msra.mxu0 0.0
        %2906 = vmatprep.subr.mxu0 0.0
        %2907 = vmatpush1.msra.mxu0 0.0
        %2908 = vmatprep.subr.mxu0 0.0
        %2909 = vmatpush1.msra.mxu0 0.0
        %2910 = vmatprep.subr.mxu0 0.0
        %2911 = vmatpush1.msra.mxu0 0.0
        %2912 = vmatprep.subr.mxu0 0.0
        %2913 = vmatpush1.msra.mxu0 0.0
        %2914 = vmatprep.subr.mxu0 0.0
        %2915 = vmatpush1.msra.mxu0 0.0
        %2916 = vmatprep.subr.mxu0 0.0
        %2917 = vmatpush1.msra.mxu0 0.0
        %2918 = vmatprep.subr.mxu0 0.0
        %2919 = vmatpush1.msra.mxu0 0.0
        %v2920 = vand.u32 %v1880, 4294901760
        %v2921 = vsub.f32 %v1880, %v2920
        %v2922 = vand.u32 %v2921, 4294901760
        %v2923 = vsub.f32 %v2921, %v2922
        %v2924 = vand.u32 %v2923, 4294901760
        %2925 = vmatprep.subr.mxu0 %v2924
        %v2926 = vand.u32 %v1877, 4294901760
        %v2927 = vsub.f32 %v1877, %v2926
        %v2928 = vand.u32 %v2927, 4294901760
        %v2929 = vsub.f32 %v2927, %v2928
        %v2930 = vand.u32 %v2929, 4294901760
        %2931 = vmatpush1.msra.mxu0 %v2930
        %2932 = vmatprep.subr.mxu0 0.0
        %2933 = vmatpush2.msra.mxu0 0.0
        %2934 = vmatprep.subr.mxu0 0.0
        %2935 = vmatpush2.msra.mxu0 0.0
        %2936 = vmatprep.subr.mxu0 0.0
        %2937 = vmatpush2.msra.mxu0 0.0
        %2938 = vmatprep.subr.mxu0 0.0
        %2939 = vmatpush2.msra.mxu0 0.0
        %2940 = vmatprep.subr.mxu0 0.0
        %2941 = vmatpush2.msra.mxu0 0.0
        %2942 = vmatprep.subr.mxu0 0.0
        %2943 = vmatpush2.msra.mxu0 0.0
        %2944 = vmatprep.subr.mxu0 0.0
        %2945 = vmatpush2.msra.mxu0 0.0
        %2946 = vmatprep.subr.mxu0 0.0
        %2947 = vmatpush2.msra.mxu0 0.0
        %2948 = vmatprep.subr.mxu0 0.0
        %2949 = vmatpush2.msra.mxu0 0.0
        %2950 = vmatprep.subr.mxu0 0.0
        %2951 = vmatpush2.msra.mxu0 0.0
        %2952 = vmatprep.subr.mxu0 0.0
        %2953 = vmatpush2.msra.mxu0 0.0
        %2954 = vmatprep.subr.mxu0 0.0
        %2955 = vmatpush2.msra.mxu0 0.0
        %2956 = vmatprep.subr.mxu0 0.0
        %2957 = vmatpush2.msra.mxu0 0.0
        %2958 = vmatprep.subr.mxu0 0.0
        %2959 = vmatpush2.msra.mxu0 0.0
        %2960 = vmatprep.subr.mxu0 0.0
        %2961 = vmatpush2.msra.mxu0 0.0
        %2962 = vmatprep.subr.mxu0 0.0
        %2963 = vmatpush2.msra.mxu0 0.0
        %2964 = vmatprep.mubr.f32.mxu0 0.0
        %v2965 = vand.u32 %v1861, 4294901760
        %2966 = vmatmul.mubr.f32.gmra.mxu0 %v2965
        %v2967 = vpop.f32.mrf.mxu0
        %v2968 = vadd.f32 %v2886, %v2967
        %v2969 = vpop.f32.mrf.mxu0
        %v2970 = vadd.f32 %v2888, %v2969
        %2971 = vdwg.mxu0
        %2972 = vmatprep.subr.mxu0 0.0
        %2973 = vmatpush1.msra.mxu0 0.0
        %2974 = vmatprep.subr.mxu0 0.0
        %2975 = vmatpush1.msra.mxu0 0.0
        %2976 = vmatprep.subr.mxu0 0.0
        %2977 = vmatpush1.msra.mxu0 0.0
        %2978 = vmatprep.subr.mxu0 0.0
        %2979 = vmatpush1.msra.mxu0 0.0
        %2980 = vmatprep.subr.mxu0 0.0
        %2981 = vmatpush1.msra.mxu0 0.0
        %2982 = vmatprep.subr.mxu0 0.0
        %2983 = vmatpush1.msra.mxu0 0.0
        %2984 = vmatprep.subr.mxu0 0.0
        %2985 = vmatpush1.msra.mxu0 0.0
        %2986 = vmatprep.subr.mxu0 0.0
        %2987 = vmatpush1.msra.mxu0 0.0
        %2988 = vmatprep.subr.mxu0 0.0
        %2989 = vmatpush1.msra.mxu0 0.0
        %2990 = vmatprep.subr.mxu0 0.0
        %2991 = vmatpush1.msra.mxu0 0.0
        %2992 = vmatprep.subr.mxu0 0.0
        %2993 = vmatpush1.msra.mxu0 0.0
        %2994 = vmatprep.subr.mxu0 0.0
        %2995 = vmatpush1.msra.mxu0 0.0
        %2996 = vmatprep.subr.mxu0 0.0
        %2997 = vmatpush1.msra.mxu0 0.0
        %2998 = vmatprep.subr.mxu0 0.0
        %2999 = vmatpush1.msra.mxu0 0.0
        %3000 = vmatprep.subr.mxu0 0.0
        %3001 = vmatpush1.msra.mxu0 0.0
        %v3002 = vand.u32 %v1880, 4294901760
        %v3003 = vsub.f32 %v1880, %v3002
        %3004 = vmatprep.subr.mxu0 %v3003
        %v3005 = vand.u32 %v1877, 4294901760
        %v3006 = vsub.f32 %v1877, %v3005
        %3007 = vmatpush1.msra.mxu0 %v3006
        %3008 = vmatprep.subr.mxu0 0.0
        %3009 = vmatpush2.msra.mxu0 0.0
        %3010 = vmatprep.subr.mxu0 0.0
        %3011 = vmatpush2.msra.mxu0 0.0
        %3012 = vmatprep.subr.mxu0 0.0
        %3013 = vmatpush2.msra.mxu0 0.0
        %3014 = vmatprep.subr.mxu0 0.0
        %3015 = vmatpush2.msra.mxu0 0.0
        %3016 = vmatprep.subr.mxu0 0.0
        %3017 = vmatpush2.msra.mxu0 0.0
        %3018 = vmatprep.subr.mxu0 0.0
        %3019 = vmatpush2.msra.mxu0 0.0
        %3020 = vmatprep.subr.mxu0 0.0
        %3021 = vmatpush2.msra.mxu0 0.0
        %3022 = vmatprep.subr.mxu0 0.0
        %3023 = vmatpush2.msra.mxu0 0.0
        %3024 = vmatprep.subr.mxu0 0.0
        %3025 = vmatpush2.msra.mxu0 0.0
        %3026 = vmatprep.subr.mxu0 0.0
        %3027 = vmatpush2.msra.mxu0 0.0
        %3028 = vmatprep.subr.mxu0 0.0
        %3029 = vmatpush2.msra.mxu0 0.0
        %3030 = vmatprep.subr.mxu0 0.0
        %3031 = vmatpush2.msra.mxu0 0.0
        %3032 = vmatprep.subr.mxu0 0.0
        %3033 = vmatpush2.msra.mxu0 0.0
        %3034 = vmatprep.subr.mxu0 0.0
        %3035 = vmatpush2.msra.mxu0 0.0
        %3036 = vmatprep.subr.mxu0 0.0
        %3037 = vmatpush2.msra.mxu0 0.0
        %3038 = vmatprep.subr.mxu0 0.0
        %3039 = vmatpush2.msra.mxu0 0.0
        %3040 = vmatprep.mubr.f32.mxu0 0.0
        %v3041 = vand.u32 %v1861, 4294901760
        %v3042 = vsub.f32 %v1861, %v3041
        %3043 = vmatmul.mubr.f32.gmra.mxu0 %v3042
        %v3044 = vpop.f32.mrf.mxu0
        %v3045 = vadd.f32 %v2968, %v3044
        %v3046 = vpop.f32.mrf.mxu0
        %v3047 = vadd.f32 %v2970, %v3046
        %3048 = vdwg.mxu0
        %3049 = vmatprep.subr.mxu0 0.0
        %3050 = vmatpush1.msra.mxu0 0.0
        %3051 = vmatprep.subr.mxu0 0.0
        %3052 = vmatpush1.msra.mxu0 0.0
        %3053 = vmatprep.subr.mxu0 0.0
        %3054 = vmatpush1.msra.mxu0 0.0
        %3055 = vmatprep.subr.mxu0 0.0
        %3056 = vmatpush1.msra.mxu0 0.0
        %3057 = vmatprep.subr.mxu0 0.0
        %3058 = vmatpush1.msra.mxu0 0.0
        %3059 = vmatprep.subr.mxu0 0.0
        %3060 = vmatpush1.msra.mxu0 0.0
        %3061 = vmatprep.subr.mxu0 0.0
        %3062 = vmatpush1.msra.mxu0 0.0
        %3063 = vmatprep.subr.mxu0 0.0
        %3064 = vmatpush1.msra.mxu0 0.0
        %3065 = vmatprep.subr.mxu0 0.0
        %3066 = vmatpush1.msra.mxu0 0.0
        %3067 = vmatprep.subr.mxu0 0.0
        %3068 = vmatpush1.msra.mxu0 0.0
        %3069 = vmatprep.subr.mxu0 0.0
        %3070 = vmatpush1.msra.mxu0 0.0
        %3071 = vmatprep.subr.mxu0 0.0
        %3072 = vmatpush1.msra.mxu0 0.0
        %3073 = vmatprep.subr.mxu0 0.0
        %3074 = vmatpush1.msra.mxu0 0.0
        %3075 = vmatprep.subr.mxu0 0.0
        %3076 = vmatpush1.msra.mxu0 0.0
        %3077 = vmatprep.subr.mxu0 0.0
        %3078 = vmatpush1.msra.mxu0 0.0
        %v3079 = vand.u32 %v1880, 4294901760
        %3080 = vmatprep.subr.mxu0 %v3079
        %v3081 = vand.u32 %v1877, 4294901760
        %3082 = vmatpush1.msra.mxu0 %v3081
        %3083 = vmatprep.subr.mxu0 0.0
        %3084 = vmatpush2.msra.mxu0 0.0
        %3085 = vmatprep.subr.mxu0 0.0
        %3086 = vmatpush2.msra.mxu0 0.0
        %3087 = vmatprep.subr.mxu0 0.0
        %3088 = vmatpush2.msra.mxu0 0.0
        %3089 = vmatprep.subr.mxu0 0.0
        %3090 = vmatpush2.msra.mxu0 0.0
        %3091 = vmatprep.subr.mxu0 0.0
        %3092 = vmatpush2.msra.mxu0 0.0
        %3093 = vmatprep.subr.mxu0 0.0
        %3094 = vmatpush2.msra.mxu0 0.0
        %3095 = vmatprep.subr.mxu0 0.0
        %3096 = vmatpush2.msra.mxu0 0.0
        %3097 = vmatprep.subr.mxu0 0.0
        %3098 = vmatpush2.msra.mxu0 0.0
        %3099 = vmatprep.subr.mxu0 0.0
        %3100 = vmatpush2.msra.mxu0 0.0
        %3101 = vmatprep.subr.mxu0 0.0
        %3102 = vmatpush2.msra.mxu0 0.0
        %3103 = vmatprep.subr.mxu0 0.0
        %3104 = vmatpush2.msra.mxu0 0.0
        %3105 = vmatprep.subr.mxu0 0.0
        %3106 = vmatpush2.msra.mxu0 0.0
        %3107 = vmatprep.subr.mxu0 0.0
        %3108 = vmatpush2.msra.mxu0 0.0
        %3109 = vmatprep.subr.mxu0 0.0
        %3110 = vmatpush2.msra.mxu0 0.0
        %3111 = vmatprep.subr.mxu0 0.0
        %3112 = vmatpush2.msra.mxu0 0.0
        %3113 = vmatprep.subr.mxu0 0.0
        %3114 = vmatpush2.msra.mxu0 0.0
        %3115 = vmatprep.mubr.f32.mxu0 0.0
        %v3116 = vand.u32 %v1861, 4294901760
        %v3117 = vsub.f32 %v1861, %v3116
        %v3118 = vand.u32 %v3117, 4294901760
        %3119 = vmatmul.mubr.f32.gmra.mxu0 %v3118
        %v3120 = vpop.f32.mrf.mxu0
        %v3121 = vadd.f32 %v3045, %v3120
        %v3122 = vpop.f32.mrf.mxu0
        %v3123 = vadd.f32 %v3047, %v3122
        %3124 = vdwg.mxu0
        %3125 = vmatprep.subr.mxu0 0.0
        %3126 = vmatpush1.msra.mxu0 0.0
        %3127 = vmatprep.subr.mxu0 0.0
        %3128 = vmatpush1.msra.mxu0 0.0
        %3129 = vmatprep.subr.mxu0 0.0
        %3130 = vmatpush1.msra.mxu0 0.0
        %3131 = vmatprep.subr.mxu0 0.0
        %3132 = vmatpush1.msra.mxu0 0.0
        %3133 = vmatprep.subr.mxu0 0.0
        %3134 = vmatpush1.msra.mxu0 0.0
        %3135 = vmatprep.subr.mxu0 0.0
        %3136 = vmatpush1.msra.mxu0 0.0
        %3137 = vmatprep.subr.mxu0 0.0
        %3138 = vmatpush1.msra.mxu0 0.0
        %3139 = vmatprep.subr.mxu0 0.0
        %3140 = vmatpush1.msra.mxu0 0.0
        %3141 = vmatprep.subr.mxu0 0.0
        %3142 = vmatpush1.msra.mxu0 0.0
        %3143 = vmatprep.subr.mxu0 0.0
        %3144 = vmatpush1.msra.mxu0 0.0
        %3145 = vmatprep.subr.mxu0 0.0
        %3146 = vmatpush1.msra.mxu0 0.0
        %3147 = vmatprep.subr.mxu0 0.0
        %3148 = vmatpush1.msra.mxu0 0.0
        %3149 = vmatprep.subr.mxu0 0.0
        %3150 = vmatpush1.msra.mxu0 0.0
        %3151 = vmatprep.subr.mxu0 0.0
        %3152 = vmatpush1.msra.mxu0 0.0
        %3153 = vmatprep.subr.mxu0 0.0
        %3154 = vmatpush1.msra.mxu0 0.0
        %v3155 = vand.u32 %v1880, 4294901760
        %v3156 = vsub.f32 %v1880, %v3155
        %v3157 = vand.u32 %v3156, 4294901760
        %3158 = vmatprep.subr.mxu0 %v3157
        %v3159 = vand.u32 %v1877, 4294901760
        %v3160 = vsub.f32 %v1877, %v3159
        %v3161 = vand.u32 %v3160, 4294901760
        %3162 = vmatpush1.msra.mxu0 %v3161
        %3163 = vmatprep.subr.mxu0 0.0
        %3164 = vmatpush2.msra.mxu0 0.0
        %3165 = vmatprep.subr.mxu0 0.0
        %3166 = vmatpush2.msra.mxu0 0.0
        %3167 = vmatprep.subr.mxu0 0.0
        %3168 = vmatpush2.msra.mxu0 0.0
        %3169 = vmatprep.subr.mxu0 0.0
        %3170 = vmatpush2.msra.mxu0 0.0
        %3171 = vmatprep.subr.mxu0 0.0
        %3172 = vmatpush2.msra.mxu0 0.0
        %3173 = vmatprep.subr.mxu0 0.0
        %3174 = vmatpush2.msra.mxu0 0.0
        %3175 = vmatprep.subr.mxu0 0.0
        %3176 = vmatpush2.msra.mxu0 0.0
        %3177 = vmatprep.subr.mxu0 0.0
        %3178 = vmatpush2.msra.mxu0 0.0
        %3179 = vmatprep.subr.mxu0 0.0
        %3180 = vmatpush2.msra.mxu0 0.0
        %3181 = vmatprep.subr.mxu0 0.0
        %3182 = vmatpush2.msra.mxu0 0.0
        %3183 = vmatprep.subr.mxu0 0.0
        %3184 = vmatpush2.msra.mxu0 0.0
        %3185 = vmatprep.subr.mxu0 0.0
        %3186 = vmatpush2.msra.mxu0 0.0
        %3187 = vmatprep.subr.mxu0 0.0
        %3188 = vmatpush2.msra.mxu0 0.0
        %3189 = vmatprep.subr.mxu0 0.0
        %3190 = vmatpush2.msra.mxu0 0.0
        %3191 = vmatprep.subr.mxu0 0.0
        %3192 = vmatpush2.msra.mxu0 0.0
        %3193 = vmatprep.subr.mxu0 0.0
        %3194 = vmatpush2.msra.mxu0 0.0
        %3195 = vmatprep.mubr.f32.mxu0 0.0
        %v3196 = vand.u32 %v1861, 4294901760
        %3197 = vmatmul.mubr.f32.gmra.mxu0 %v3196
        %v3198 = vpop.f32.mrf.mxu0
        %v3199 = vadd.f32 %v3121, %v3198
        %v3200 = vpop.f32.mrf.mxu0
        %v3201 = vadd.f32 %v3123, %v3200
        %3202 = vdwg.mxu0
        %3203 = vmatprep.subr.mxu0 0.0
        %3204 = vmatpush1.msra.mxu0 0.0
        %3205 = vmatprep.subr.mxu0 0.0
        %3206 = vmatpush1.msra.mxu0 0.0
        %3207 = vmatprep.subr.mxu0 0.0
        %3208 = vmatpush1.msra.mxu0 0.0
        %3209 = vmatprep.subr.mxu0 0.0
        %3210 = vmatpush1.msra.mxu0 0.0
        %3211 = vmatprep.subr.mxu0 0.0
        %3212 = vmatpush1.msra.mxu0 0.0
        %3213 = vmatprep.subr.mxu0 0.0
        %3214 = vmatpush1.msra.mxu0 0.0
        %3215 = vmatprep.subr.mxu0 0.0
        %3216 = vmatpush1.msra.mxu0 0.0
        %3217 = vmatprep.subr.mxu0 0.0
        %3218 = vmatpush1.msra.mxu0 0.0
        %3219 = vmatprep.subr.mxu0 0.0
        %3220 = vmatpush1.msra.mxu0 0.0
        %3221 = vmatprep.subr.mxu0 0.0
        %3222 = vmatpush1.msra.mxu0 0.0
        %3223 = vmatprep.subr.mxu0 0.0
        %3224 = vmatpush1.msra.mxu0 0.0
        %3225 = vmatprep.subr.mxu0 0.0
        %3226 = vmatpush1.msra.mxu0 0.0
        %3227 = vmatprep.subr.mxu0 0.0
        %3228 = vmatpush1.msra.mxu0 0.0
        %3229 = vmatprep.subr.mxu0 0.0
        %3230 = vmatpush1.msra.mxu0 0.0
        %3231 = vmatprep.subr.mxu0 0.0
        %3232 = vmatpush1.msra.mxu0 0.0
        %v3233 = vand.u32 %v1880, 4294901760
        %3234 = vmatprep.subr.mxu0 %v3233
        %v3235 = vand.u32 %v1877, 4294901760
        %3236 = vmatpush1.msra.mxu0 %v3235
        %3237 = vmatprep.subr.mxu0 0.0
        %3238 = vmatpush2.msra.mxu0 0.0
        %3239 = vmatprep.subr.mxu0 0.0
        %3240 = vmatpush2.msra.mxu0 0.0
        %3241 = vmatprep.subr.mxu0 0.0
        %3242 = vmatpush2.msra.mxu0 0.0
        %3243 = vmatprep.subr.mxu0 0.0
        %3244 = vmatpush2.msra.mxu0 0.0
        %3245 = vmatprep.subr.mxu0 0.0
        %3246 = vmatpush2.msra.mxu0 0.0
        %3247 = vmatprep.subr.mxu0 0.0
        %3248 = vmatpush2.msra.mxu0 0.0
        %3249 = vmatprep.subr.mxu0 0.0
        %3250 = vmatpush2.msra.mxu0 0.0
        %3251 = vmatprep.subr.mxu0 0.0
        %3252 = vmatpush2.msra.mxu0 0.0
        %3253 = vmatprep.subr.mxu0 0.0
        %3254 = vmatpush2.msra.mxu0 0.0
        %3255 = vmatprep.subr.mxu0 0.0
        %3256 = vmatpush2.msra.mxu0 0.0
        %3257 = vmatprep.subr.mxu0 0.0
        %3258 = vmatpush2.msra.mxu0 0.0
        %3259 = vmatprep.subr.mxu0 0.0
        %3260 = vmatpush2.msra.mxu0 0.0
        %3261 = vmatprep.subr.mxu0 0.0
        %3262 = vmatpush2.msra.mxu0 0.0
        %3263 = vmatprep.subr.mxu0 0.0
        %3264 = vmatpush2.msra.mxu0 0.0
        %3265 = vmatprep.subr.mxu0 0.0
        %3266 = vmatpush2.msra.mxu0 0.0
        %3267 = vmatprep.subr.mxu0 0.0
        %3268 = vmatpush2.msra.mxu0 0.0
        %3269 = vmatprep.mubr.f32.mxu0 0.0
        %v3270 = vand.u32 %v1861, 4294901760
        %3271 = vmatmul.mubr.f32.gmra.mxu0 %v3270
        %v3272 = vpop.f32.mrf.mxu0
        %v3273 = vadd.f32 %v3199, %v3272
        %v3274 = vpop.f32.mrf.mxu0
        %v3275 = vadd.f32 %v3201, %v3274
        %3276 = vdwg.mxu0
        %v3277 = vxor.u32 %v2343, 2147483648
        %v3278 = vxor.u32 %v2345, 2147483648
        %v3279 = vxor.u32 %v2808, 2147483648
        %v3280 = vxor.u32 %v2810, 2147483648
        %v3281 = vxor.u32 %v3273, 2147483648
        %v3282 = vxor.u32 %v3275, 2147483648
        %v3283 = vmul.f32 %v3277, 1.442695
        %v3284 = vpow.pop %v3283
        %v3285 = vmul.f32 %v3278, 1.442695
        %v3286 = vpow.pop %v3285
        %v3287 = vmul.f32 %v3279, 1.442695
        %v3288 = vpow.pop %v3287
        %v3289 = vmul.f32 %v3280, 1.442695
        %v3290 = vpow.pop %v3289
        %v3291 = vmul.f32 %v3281, 1.442695
        %v3292 = vpow.pop %v3291
        %v3293 = vmul.f32 %v3282, 1.442695
        %v3294 = vpow.pop %v3293
        %v3295 = vadd.f32 %v3284, 1.0
        %v3296 = vadd.f32 %v3286, 1.0
        %v3297 = vadd.f32 %v3288, 1.0
        %v3298 = vadd.f32 %v3290, 1.0
        %v3299 = vadd.f32 %v3292, 1.0
        %v3300 = vadd.f32 %v3294, 1.0
        %v3301 = vrcp.pop %v3295
        %v3302 = vmul.f32 1.0, %v3301
        %v3303 = vrcp.pop %v3296
        %v3304 = vmul.f32 1.0, %v3303
        %v3305 = vrcp.pop %v3297
        %v3306 = vmul.f32 1.0, %v3305
        %v3307 = vrcp.pop %v3298
        %v3308 = vmul.f32 1.0, %v3307
        %v3309 = vrcp.pop %v3299
        %v3310 = vmul.f32 1.0, %v3309
        %v3311 = vrcp.pop %v3300
        %v3312 = vmul.f32 1.0, %v3311
        %v3313 = vld [vmem:[%s5] sm:$0x1]
        %v3314 = vld [vmem:[#allocation2] sm:$0x1]
        %3316 = vset.pattern.permute.xlu0 0
        %3317 = vperm.xlu0 %3316, %v3314
        %v3318 = vpop.permute.xlu0 %3317
        %v3320 = vlaneseq
        %v3321 = vshrl.u32 %v3320, 7
        %v3322 = vsub.s32 0, %v3321
        %v3323 = vrot.slane %v3318, %v3322
        %vm3324 = vcmask 31744
        %v3326 = vsel %vm3324, %v3313, 0
        %vm3328 = vcmask 1043456
        %v3330 = vsel %vm3328, %v3302, 0
        %v3333 = vsel %vm3328, %v3304, 0
        %v3336 = vsel %vm3328, %v3306, 0
        %v3339 = vsel %vm3328, %v3308, 0
        %v3342 = vsel %vm3328, %v3310, 0
        %v3345 = vsel %vm3328, %v3312, 0
        %3347 = vmatprep.subr.mxu0 0.0
        %3348 = vmatpush1.msra.mxu0 0.0
        %3349 = vmatprep.subr.mxu0 0.0
        %3350 = vmatpush1.msra.mxu0 0.0
        %3351 = vmatprep.subr.mxu0 0.0
        %3352 = vmatpush1.msra.mxu0 0.0
        %3353 = vmatprep.subr.mxu0 0.0
        %3354 = vmatpush1.msra.mxu0 0.0
        %3355 = vmatprep.subr.mxu0 0.0
        %3356 = vmatpush1.msra.mxu0 0.0
        %3357 = vmatprep.subr.mxu0 0.0
        %3358 = vmatpush1.msra.mxu0 0.0
        %3359 = vmatprep.subr.mxu0 0.0
        %3360 = vmatpush1.msra.mxu0 0.0
        %3361 = vmatprep.subr.mxu0 0.0
        %3362 = vmatpush1.msra.mxu0 0.0
        %3363 = vmatprep.subr.mxu0 0.0
        %3364 = vmatpush1.msra.mxu0 0.0
        %3365 = vmatprep.subr.mxu0 0.0
        %3366 = vmatpush1.msra.mxu0 0.0
        %3367 = vmatprep.subr.mxu0 0.0
        %3368 = vmatpush1.msra.mxu0 0.0
        %3369 = vmatprep.subr.mxu0 0.0
        %3370 = vmatpush1.msra.mxu0 0.0
        %3371 = vmatprep.subr.mxu0 0.0
        %3372 = vmatpush1.msra.mxu0 0.0
        %3373 = vmatprep.subr.mxu0 0.0
        %3374 = vmatpush1.msra.mxu0 0.0
        %3375 = vmatprep.subr.mxu0 0.0
        %3376 = vmatpush1.msra.mxu0 0.0
        %v3377 = vand.u32 %v3333, 4294901760
        %3378 = vmatprep.subr.mxu0 %v3377
        %v3379 = vand.u32 %v3330, 4294901760
        %3380 = vmatpush1.msra.mxu0 %v3379
        %3381 = vmatprep.subr.mxu0 0.0
        %3382 = vmatpush2.msra.mxu0 0.0
        %3383 = vmatprep.subr.mxu0 0.0
        %3384 = vmatpush2.msra.mxu0 0.0
        %3385 = vmatprep.subr.mxu0 0.0
        %3386 = vmatpush2.msra.mxu0 0.0
        %3387 = vmatprep.subr.mxu0 0.0
        %3388 = vmatpush2.msra.mxu0 0.0
        %3389 = vmatprep.subr.mxu0 0.0
        %3390 = vmatpush2.msra.mxu0 0.0
        %3391 = vmatprep.subr.mxu0 0.0
        %3392 = vmatpush2.msra.mxu0 0.0
        %3393 = vmatprep.subr.mxu0 0.0
        %3394 = vmatpush2.msra.mxu0 0.0
        %3395 = vmatprep.subr.mxu0 0.0
        %3396 = vmatpush2.msra.mxu0 0.0
        %3397 = vmatprep.subr.mxu0 0.0
        %3398 = vmatpush2.msra.mxu0 0.0
        %3399 = vmatprep.subr.mxu0 0.0
        %3400 = vmatpush2.msra.mxu0 0.0
        %3401 = vmatprep.subr.mxu0 0.0
        %3402 = vmatpush2.msra.mxu0 0.0
        %3403 = vmatprep.subr.mxu0 0.0
        %3404 = vmatpush2.msra.mxu0 0.0
        %3405 = vmatprep.subr.mxu0 0.0
        %3406 = vmatpush2.msra.mxu0 0.0
        %3407 = vmatprep.subr.mxu0 0.0
        %3408 = vmatpush2.msra.mxu0 0.0
        %3409 = vmatprep.subr.mxu0 0.0
        %3410 = vmatpush2.msra.mxu0 0.0
        %3411 = vmatprep.subr.mxu0 0.0
        %3412 = vmatpush2.msra.mxu0 0.0
        %3413 = vmatprep.mubr.f32.mxu0 0.0
        %v3414 = vand.u32 %v3326, 4294901760
        %v3415 = vsub.f32 %v3326, %v3414
        %v3416 = vand.u32 %v3415, 4294901760
        %v3417 = vsub.f32 %v3415, %v3416
        %v3418 = vand.u32 %v3417, 4294901760
        %3419 = vmatmul.mubr.f32.gmra.mxu0 %v3418
        %v3420 = vpop.f32.mrf.mxu0
        %v3421 = vadd.f32 %v3323, %v3420
        %v3422 = vpop.f32.mrf.mxu0
        %v3423 = vadd.f32 %v3323, %v3422
        %3424 = vdwg.mxu0
        %3425 = vmatprep.subr.mxu0 0.0
        %3426 = vmatpush1.msra.mxu0 0.0
        %3427 = vmatprep.subr.mxu0 0.0
        %3428 = vmatpush1.msra.mxu0 0.0
        %3429 = vmatprep.subr.mxu0 0.0
        %3430 = vmatpush1.msra.mxu0 0.0
        %3431 = vmatprep.subr.mxu0 0.0
        %3432 = vmatpush1.msra.mxu0 0.0
        %3433 = vmatprep.subr.mxu0 0.0
        %3434 = vmatpush1.msra.mxu0 0.0
        %3435 = vmatprep.subr.mxu0 0.0
        %3436 = vmatpush1.msra.mxu0 0.0
        %3437 = vmatprep.subr.mxu0 0.0
        %3438 = vmatpush1.msra.mxu0 0.0
        %3439 = vmatprep.subr.mxu0 0.0
        %3440 = vmatpush1.msra.mxu0 0.0
        %3441 = vmatprep.subr.mxu0 0.0
        %3442 = vmatpush1.msra.mxu0 0.0
        %3443 = vmatprep.subr.mxu0 0.0
        %3444 = vmatpush1.msra.mxu0 0.0
        %3445 = vmatprep.subr.mxu0 0.0
        %3446 = vmatpush1.msra.mxu0 0.0
        %3447 = vmatprep.subr.mxu0 0.0
        %3448 = vmatpush1.msra.mxu0 0.0
        %3449 = vmatprep.subr.mxu0 0.0
        %3450 = vmatpush1.msra.mxu0 0.0
        %3451 = vmatprep.subr.mxu0 0.0
        %3452 = vmatpush1.msra.mxu0 0.0
        %3453 = vmatprep.subr.mxu0 0.0
        %3454 = vmatpush1.msra.mxu0 0.0
        %v3455 = vand.u32 %v3333, 4294901760
        %v3456 = vsub.f32 %v3333, %v3455
        %v3457 = vand.u32 %v3456, 4294901760
        %v3458 = vsub.f32 %v3456, %v3457
        %v3459 = vand.u32 %v3458, 4294901760
        %3460 = vmatprep.subr.mxu0 %v3459
        %v3461 = vand.u32 %v3330, 4294901760
        %v3462 = vsub.f32 %v3330, %v3461
        %v3463 = vand.u32 %v3462, 4294901760
        %v3464 = vsub.f32 %v3462, %v3463
        %v3465 = vand.u32 %v3464, 4294901760
        %3466 = vmatpush1.msra.mxu0 %v3465
        %3467 = vmatprep.subr.mxu0 0.0
        %3468 = vmatpush2.msra.mxu0 0.0
        %3469 = vmatprep.subr.mxu0 0.0
        %3470 = vmatpush2.msra.mxu0 0.0
        %3471 = vmatprep.subr.mxu0 0.0
        %3472 = vmatpush2.msra.mxu0 0.0
        %3473 = vmatprep.subr.mxu0 0.0
        %3474 = vmatpush2.msra.mxu0 0.0
        %3475 = vmatprep.subr.mxu0 0.0
        %3476 = vmatpush2.msra.mxu0 0.0
        %3477 = vmatprep.subr.mxu0 0.0
        %3478 = vmatpush2.msra.mxu0 0.0
        %3479 = vmatprep.subr.mxu0 0.0
        %3480 = vmatpush2.msra.mxu0 0.0
        %3481 = vmatprep.subr.mxu0 0.0
        %3482 = vmatpush2.msra.mxu0 0.0
        %3483 = vmatprep.subr.mxu0 0.0
        %3484 = vmatpush2.msra.mxu0 0.0
        %3485 = vmatprep.subr.mxu0 0.0
        %3486 = vmatpush2.msra.mxu0 0.0
        %3487 = vmatprep.subr.mxu0 0.0
        %3488 = vmatpush2.msra.mxu0 0.0
        %3489 = vmatprep.subr.mxu0 0.0
        %3490 = vmatpush2.msra.mxu0 0.0
        %3491 = vmatprep.subr.mxu0 0.0
        %3492 = vmatpush2.msra.mxu0 0.0
        %3493 = vmatprep.subr.mxu0 0.0
        %3494 = vmatpush2.msra.mxu0 0.0
        %3495 = vmatprep.subr.mxu0 0.0
        %3496 = vmatpush2.msra.mxu0 0.0
        %3497 = vmatprep.subr.mxu0 0.0
        %3498 = vmatpush2.msra.mxu0 0.0
        %3499 = vmatprep.mubr.f32.mxu0 0.0
        %v3500 = vand.u32 %v3326, 4294901760
        %3501 = vmatmul.mubr.f32.gmra.mxu0 %v3500
        %v3502 = vpop.f32.mrf.mxu0
        %v3503 = vadd.f32 %v3421, %v3502
        %v3504 = vpop.f32.mrf.mxu0
        %v3505 = vadd.f32 %v3423, %v3504
        %3506 = vdwg.mxu0
        %3507 = vmatprep.subr.mxu0 0.0
        %3508 = vmatpush1.msra.mxu0 0.0
        %3509 = vmatprep.subr.mxu0 0.0
        %3510 = vmatpush1.msra.mxu0 0.0
        %3511 = vmatprep.subr.mxu0 0.0
        %3512 = vmatpush1.msra.mxu0 0.0
        %3513 = vmatprep.subr.mxu0 0.0
        %3514 = vmatpush1.msra.mxu0 0.0
        %3515 = vmatprep.subr.mxu0 0.0
        %3516 = vmatpush1.msra.mxu0 0.0
        %3517 = vmatprep.subr.mxu0 0.0
        %3518 = vmatpush1.msra.mxu0 0.0
        %3519 = vmatprep.subr.mxu0 0.0
        %3520 = vmatpush1.msra.mxu0 0.0
        %3521 = vmatprep.subr.mxu0 0.0
        %3522 = vmatpush1.msra.mxu0 0.0
        %3523 = vmatprep.subr.mxu0 0.0
        %3524 = vmatpush1.msra.mxu0 0.0
        %3525 = vmatprep.subr.mxu0 0.0
        %3526 = vmatpush1.msra.mxu0 0.0
        %3527 = vmatprep.subr.mxu0 0.0
        %3528 = vmatpush1.msra.mxu0 0.0
        %3529 = vmatprep.subr.mxu0 0.0
        %3530 = vmatpush1.msra.mxu0 0.0
        %3531 = vmatprep.subr.mxu0 0.0
        %3532 = vmatpush1.msra.mxu0 0.0
        %3533 = vmatprep.subr.mxu0 0.0
        %3534 = vmatpush1.msra.mxu0 0.0
        %3535 = vmatprep.subr.mxu0 0.0
        %3536 = vmatpush1.msra.mxu0 0.0
        %v3537 = vand.u32 %v3333, 4294901760
        %v3538 = vsub.f32 %v3333, %v3537
        %3539 = vmatprep.subr.mxu0 %v3538
        %v3540 = vand.u32 %v3330, 4294901760
        %v3541 = vsub.f32 %v3330, %v3540
        %3542 = vmatpush1.msra.mxu0 %v3541
        %3543 = vmatprep.subr.mxu0 0.0
        %3544 = vmatpush2.msra.mxu0 0.0
        %3545 = vmatprep.subr.mxu0 0.0
        %3546 = vmatpush2.msra.mxu0 0.0
        %3547 = vmatprep.subr.mxu0 0.0
        %3548 = vmatpush2.msra.mxu0 0.0
        %3549 = vmatprep.subr.mxu0 0.0
        %3550 = vmatpush2.msra.mxu0 0.0
        %3551 = vmatprep.subr.mxu0 0.0
        %3552 = vmatpush2.msra.mxu0 0.0
        %3553 = vmatprep.subr.mxu0 0.0
        %3554 = vmatpush2.msra.mxu0 0.0
        %3555 = vmatprep.subr.mxu0 0.0
        %3556 = vmatpush2.msra.mxu0 0.0
        %3557 = vmatprep.subr.mxu0 0.0
        %3558 = vmatpush2.msra.mxu0 0.0
        %3559 = vmatprep.subr.mxu0 0.0
        %3560 = vmatpush2.msra.mxu0 0.0
        %3561 = vmatprep.subr.mxu0 0.0
        %3562 = vmatpush2.msra.mxu0 0.0
        %3563 = vmatprep.subr.mxu0 0.0
        %3564 = vmatpush2.msra.mxu0 0.0
        %3565 = vmatprep.subr.mxu0 0.0
        %3566 = vmatpush2.msra.mxu0 0.0
        %3567 = vmatprep.subr.mxu0 0.0
        %3568 = vmatpush2.msra.mxu0 0.0
        %3569 = vmatprep.subr.mxu0 0.0
        %3570 = vmatpush2.msra.mxu0 0.0
        %3571 = vmatprep.subr.mxu0 0.0
        %3572 = vmatpush2.msra.mxu0 0.0
        %3573 = vmatprep.subr.mxu0 0.0
        %3574 = vmatpush2.msra.mxu0 0.0
        %3575 = vmatprep.mubr.f32.mxu0 0.0
        %v3576 = vand.u32 %v3326, 4294901760
        %v3577 = vsub.f32 %v3326, %v3576
        %3578 = vmatmul.mubr.f32.gmra.mxu0 %v3577
        %v3579 = vpop.f32.mrf.mxu0
        %v3580 = vadd.f32 %v3503, %v3579
        %v3581 = vpop.f32.mrf.mxu0
        %v3582 = vadd.f32 %v3505, %v3581
        %3583 = vdwg.mxu0
        %3584 = vmatprep.subr.mxu0 0.0
        %3585 = vmatpush1.msra.mxu0 0.0
        %3586 = vmatprep.subr.mxu0 0.0
        %3587 = vmatpush1.msra.mxu0 0.0
        %3588 = vmatprep.subr.mxu0 0.0
        %3589 = vmatpush1.msra.mxu0 0.0
        %3590 = vmatprep.subr.mxu0 0.0
        %3591 = vmatpush1.msra.mxu0 0.0
        %3592 = vmatprep.subr.mxu0 0.0
        %3593 = vmatpush1.msra.mxu0 0.0
        %3594 = vmatprep.subr.mxu0 0.0
        %3595 = vmatpush1.msra.mxu0 0.0
        %3596 = vmatprep.subr.mxu0 0.0
        %3597 = vmatpush1.msra.mxu0 0.0
        %3598 = vmatprep.subr.mxu0 0.0
        %3599 = vmatpush1.msra.mxu0 0.0
        %3600 = vmatprep.subr.mxu0 0.0
        %3601 = vmatpush1.msra.mxu0 0.0
        %3602 = vmatprep.subr.mxu0 0.0
        %3603 = vmatpush1.msra.mxu0 0.0
        %3604 = vmatprep.subr.mxu0 0.0
        %3605 = vmatpush1.msra.mxu0 0.0
        %3606 = vmatprep.subr.mxu0 0.0
        %3607 = vmatpush1.msra.mxu0 0.0
        %3608 = vmatprep.subr.mxu0 0.0
        %3609 = vmatpush1.msra.mxu0 0.0
        %3610 = vmatprep.subr.mxu0 0.0
        %3611 = vmatpush1.msra.mxu0 0.0
        %3612 = vmatprep.subr.mxu0 0.0
        %3613 = vmatpush1.msra.mxu0 0.0
        %v3614 = vand.u32 %v3333, 4294901760
        %3615 = vmatprep.subr.mxu0 %v3614
        %v3616 = vand.u32 %v3330, 4294901760
        %3617 = vmatpush1.msra.mxu0 %v3616
        %3618 = vmatprep.subr.mxu0 0.0
        %3619 = vmatpush2.msra.mxu0 0.0
        %3620 = vmatprep.subr.mxu0 0.0
        %3621 = vmatpush2.msra.mxu0 0.0
        %3622 = vmatprep.subr.mxu0 0.0
        %3623 = vmatpush2.msra.mxu0 0.0
        %3624 = vmatprep.subr.mxu0 0.0
        %3625 = vmatpush2.msra.mxu0 0.0
        %3626 = vmatprep.subr.mxu0 0.0
        %3627 = vmatpush2.msra.mxu0 0.0
        %3628 = vmatprep.subr.mxu0 0.0
        %3629 = vmatpush2.msra.mxu0 0.0
        %3630 = vmatprep.subr.mxu0 0.0
        %3631 = vmatpush2.msra.mxu0 0.0
        %3632 = vmatprep.subr.mxu0 0.0
        %3633 = vmatpush2.msra.mxu0 0.0
        %3634 = vmatprep.subr.mxu0 0.0
        %3635 = vmatpush2.msra.mxu0 0.0
        %3636 = vmatprep.subr.mxu0 0.0
        %3637 = vmatpush2.msra.mxu0 0.0
        %3638 = vmatprep.subr.mxu0 0.0
        %3639 = vmatpush2.msra.mxu0 0.0
        %3640 = vmatprep.subr.mxu0 0.0
        %3641 = vmatpush2.msra.mxu0 0.0
        %3642 = vmatprep.subr.mxu0 0.0
        %3643 = vmatpush2.msra.mxu0 0.0
        %3644 = vmatprep.subr.mxu0 0.0
        %3645 = vmatpush2.msra.mxu0 0.0
        %3646 = vmatprep.subr.mxu0 0.0
        %3647 = vmatpush2.msra.mxu0 0.0
        %3648 = vmatprep.subr.mxu0 0.0
        %3649 = vmatpush2.msra.mxu0 0.0
        %3650 = vmatprep.mubr.f32.mxu0 0.0
        %v3651 = vand.u32 %v3326, 4294901760
        %v3652 = vsub.f32 %v3326, %v3651
        %v3653 = vand.u32 %v3652, 4294901760
        %3654 = vmatmul.mubr.f32.gmra.mxu0 %v3653
        %v3655 = vpop.f32.mrf.mxu0
        %v3656 = vadd.f32 %v3580, %v3655
        %v3657 = vpop.f32.mrf.mxu0
        %v3658 = vadd.f32 %v3582, %v3657
        %3659 = vdwg.mxu0
        %3660 = vmatprep.subr.mxu0 0.0
        %3661 = vmatpush1.msra.mxu0 0.0
        %3662 = vmatprep.subr.mxu0 0.0
        %3663 = vmatpush1.msra.mxu0 0.0
        %3664 = vmatprep.subr.mxu0 0.0
        %3665 = vmatpush1.msra.mxu0 0.0
        %3666 = vmatprep.subr.mxu0 0.0
        %3667 = vmatpush1.msra.mxu0 0.0
        %3668 = vmatprep.subr.mxu0 0.0
        %3669 = vmatpush1.msra.mxu0 0.0
        %3670 = vmatprep.subr.mxu0 0.0
        %3671 = vmatpush1.msra.mxu0 0.0
        %3672 = vmatprep.subr.mxu0 0.0
        %3673 = vmatpush1.msra.mxu0 0.0
        %3674 = vmatprep.subr.mxu0 0.0
        %3675 = vmatpush1.msra.mxu0 0.0
        %3676 = vmatprep.subr.mxu0 0.0
        %3677 = vmatpush1.msra.mxu0 0.0
        %3678 = vmatprep.subr.mxu0 0.0
        %3679 = vmatpush1.msra.mxu0 0.0
        %3680 = vmatprep.subr.mxu0 0.0
        %3681 = vmatpush1.msra.mxu0 0.0
        %3682 = vmatprep.subr.mxu0 0.0
        %3683 = vmatpush1.msra.mxu0 0.0
        %3684 = vmatprep.subr.mxu0 0.0
        %3685 = vmatpush1.msra.mxu0 0.0
        %3686 = vmatprep.subr.mxu0 0.0
        %3687 = vmatpush1.msra.mxu0 0.0
        %3688 = vmatprep.subr.mxu0 0.0
        %3689 = vmatpush1.msra.mxu0 0.0
        %v3690 = vand.u32 %v3333, 4294901760
        %v3691 = vsub.f32 %v3333, %v3690
        %v3692 = vand.u32 %v3691, 4294901760
        %3693 = vmatprep.subr.mxu0 %v3692
        %v3694 = vand.u32 %v3330, 4294901760
        %v3695 = vsub.f32 %v3330, %v3694
        %v3696 = vand.u32 %v3695, 4294901760
        %3697 = vmatpush1.msra.mxu0 %v3696
        %3698 = vmatprep.subr.mxu0 0.0
        %3699 = vmatpush2.msra.mxu0 0.0
        %3700 = vmatprep.subr.mxu0 0.0
        %3701 = vmatpush2.msra.mxu0 0.0
        %3702 = vmatprep.subr.mxu0 0.0
        %3703 = vmatpush2.msra.mxu0 0.0
        %3704 = vmatprep.subr.mxu0 0.0
        %3705 = vmatpush2.msra.mxu0 0.0
        %3706 = vmatprep.subr.mxu0 0.0
        %3707 = vmatpush2.msra.mxu0 0.0
        %3708 = vmatprep.subr.mxu0 0.0
        %3709 = vmatpush2.msra.mxu0 0.0
        %3710 = vmatprep.subr.mxu0 0.0
        %3711 = vmatpush2.msra.mxu0 0.0
        %3712 = vmatprep.subr.mxu0 0.0
        %3713 = vmatpush2.msra.mxu0 0.0
        %3714 = vmatprep.subr.mxu0 0.0
        %3715 = vmatpush2.msra.mxu0 0.0
        %3716 = vmatprep.subr.mxu0 0.0
        %3717 = vmatpush2.msra.mxu0 0.0
        %3718 = vmatprep.subr.mxu0 0.0
        %3719 = vmatpush2.msra.mxu0 0.0
        %3720 = vmatprep.subr.mxu0 0.0
        %3721 = vmatpush2.msra.mxu0 0.0
        %3722 = vmatprep.subr.mxu0 0.0
        %3723 = vmatpush2.msra.mxu0 0.0
        %3724 = vmatprep.subr.mxu0 0.0
        %3725 = vmatpush2.msra.mxu0 0.0
        %3726 = vmatprep.subr.mxu0 0.0
        %3727 = vmatpush2.msra.mxu0 0.0
        %3728 = vmatprep.subr.mxu0 0.0
        %3729 = vmatpush2.msra.mxu0 0.0
        %3730 = vmatprep.mubr.f32.mxu0 0.0
        %v3731 = vand.u32 %v3326, 4294901760
        %3732 = vmatmul.mubr.f32.gmra.mxu0 %v3731
        %v3733 = vpop.f32.mrf.mxu0
        %v3734 = vadd.f32 %v3656, %v3733
        %v3735 = vpop.f32.mrf.mxu0
        %v3736 = vadd.f32 %v3658, %v3735
        %3737 = vdwg.mxu0
        %3738 = vmatprep.subr.mxu0 0.0
        %3739 = vmatpush1.msra.mxu0 0.0
        %3740 = vmatprep.subr.mxu0 0.0
        %3741 = vmatpush1.msra.mxu0 0.0
        %3742 = vmatprep.subr.mxu0 0.0
        %3743 = vmatpush1.msra.mxu0 0.0
        %3744 = vmatprep.subr.mxu0 0.0
        %3745 = vmatpush1.msra.mxu0 0.0
        %3746 = vmatprep.subr.mxu0 0.0
        %3747 = vmatpush1.msra.mxu0 0.0
        %3748 = vmatprep.subr.mxu0 0.0
        %3749 = vmatpush1.msra.mxu0 0.0
        %3750 = vmatprep.subr.mxu0 0.0
        %3751 = vmatpush1.msra.mxu0 0.0
        %3752 = vmatprep.subr.mxu0 0.0
        %3753 = vmatpush1.msra.mxu0 0.0
        %3754 = vmatprep.subr.mxu0 0.0
        %3755 = vmatpush1.msra.mxu0 0.0
        %3756 = vmatprep.subr.mxu0 0.0
        %3757 = vmatpush1.msra.mxu0 0.0
        %3758 = vmatprep.subr.mxu0 0.0
        %3759 = vmatpush1.msra.mxu0 0.0
        %3760 = vmatprep.subr.mxu0 0.0
        %3761 = vmatpush1.msra.mxu0 0.0
        %3762 = vmatprep.subr.mxu0 0.0
        %3763 = vmatpush1.msra.mxu0 0.0
        %3764 = vmatprep.subr.mxu0 0.0
        %3765 = vmatpush1.msra.mxu0 0.0
        %3766 = vmatprep.subr.mxu0 0.0
        %3767 = vmatpush1.msra.mxu0 0.0
        %v3768 = vand.u32 %v3333, 4294901760
        %3769 = vmatprep.subr.mxu0 %v3768
        %v3770 = vand.u32 %v3330, 4294901760
        %3771 = vmatpush1.msra.mxu0 %v3770
        %3772 = vmatprep.subr.mxu0 0.0
        %3773 = vmatpush2.msra.mxu0 0.0
        %3774 = vmatprep.subr.mxu0 0.0
        %3775 = vmatpush2.msra.mxu0 0.0
        %3776 = vmatprep.subr.mxu0 0.0
        %3777 = vmatpush2.msra.mxu0 0.0
        %3778 = vmatprep.subr.mxu0 0.0
        %3779 = vmatpush2.msra.mxu0 0.0
        %3780 = vmatprep.subr.mxu0 0.0
        %3781 = vmatpush2.msra.mxu0 0.0
        %3782 = vmatprep.subr.mxu0 0.0
        %3783 = vmatpush2.msra.mxu0 0.0
        %3784 = vmatprep.subr.mxu0 0.0
        %3785 = vmatpush2.msra.mxu0 0.0
        %3786 = vmatprep.subr.mxu0 0.0
        %3787 = vmatpush2.msra.mxu0 0.0
        %3788 = vmatprep.subr.mxu0 0.0
        %3789 = vmatpush2.msra.mxu0 0.0
        %3790 = vmatprep.subr.mxu0 0.0
        %3791 = vmatpush2.msra.mxu0 0.0
        %3792 = vmatprep.subr.mxu0 0.0
        %3793 = vmatpush2.msra.mxu0 0.0
        %3794 = vmatprep.subr.mxu0 0.0
        %3795 = vmatpush2.msra.mxu0 0.0
        %3796 = vmatprep.subr.mxu0 0.0
        %3797 = vmatpush2.msra.mxu0 0.0
        %3798 = vmatprep.subr.mxu0 0.0
        %3799 = vmatpush2.msra.mxu0 0.0
        %3800 = vmatprep.subr.mxu0 0.0
        %3801 = vmatpush2.msra.mxu0 0.0
        %3802 = vmatprep.subr.mxu0 0.0
        %3803 = vmatpush2.msra.mxu0 0.0
        %3804 = vmatprep.mubr.f32.mxu0 0.0
        %v3805 = vand.u32 %v3326, 4294901760
        %3806 = vmatmul.mubr.f32.gmra.mxu0 %v3805
        %v3807 = vpop.f32.mrf.mxu0
        %v3808 = vadd.f32 %v3734, %v3807
        %v3809 = vpop.f32.mrf.mxu0
        %v3810 = vadd.f32 %v3736, %v3809
        %3811 = vdwg.mxu0
        %3812 = vmatprep.subr.mxu0 0.0
        %3813 = vmatpush1.msra.mxu0 0.0
        %3814 = vmatprep.subr.mxu0 0.0
        %3815 = vmatpush1.msra.mxu0 0.0
        %3816 = vmatprep.subr.mxu0 0.0
        %3817 = vmatpush1.msra.mxu0 0.0
        %3818 = vmatprep.subr.mxu0 0.0
        %3819 = vmatpush1.msra.mxu0 0.0
        %3820 = vmatprep.subr.mxu0 0.0
        %3821 = vmatpush1.msra.mxu0 0.0
        %3822 = vmatprep.subr.mxu0 0.0
        %3823 = vmatpush1.msra.mxu0 0.0
        %3824 = vmatprep.subr.mxu0 0.0
        %3825 = vmatpush1.msra.mxu0 0.0
        %3826 = vmatprep.subr.mxu0 0.0
        %3827 = vmatpush1.msra.mxu0 0.0
        %3828 = vmatprep.subr.mxu0 0.0
        %3829 = vmatpush1.msra.mxu0 0.0
        %3830 = vmatprep.subr.mxu0 0.0
        %3831 = vmatpush1.msra.mxu0 0.0
        %3832 = vmatprep.subr.mxu0 0.0
        %3833 = vmatpush1.msra.mxu0 0.0
        %3834 = vmatprep.subr.mxu0 0.0
        %3835 = vmatpush1.msra.mxu0 0.0
        %3836 = vmatprep.subr.mxu0 0.0
        %3837 = vmatpush1.msra.mxu0 0.0
        %3838 = vmatprep.subr.mxu0 0.0
        %3839 = vmatpush1.msra.mxu0 0.0
        %3840 = vmatprep.subr.mxu0 0.0
        %3841 = vmatpush1.msra.mxu0 0.0
        %v3842 = vand.u32 %v3339, 4294901760
        %3843 = vmatprep.subr.mxu0 %v3842
        %v3844 = vand.u32 %v3336, 4294901760
        %3845 = vmatpush1.msra.mxu0 %v3844
        %3846 = vmatprep.subr.mxu0 0.0
        %3847 = vmatpush2.msra.mxu0 0.0
        %3848 = vmatprep.subr.mxu0 0.0
        %3849 = vmatpush2.msra.mxu0 0.0
        %3850 = vmatprep.subr.mxu0 0.0
        %3851 = vmatpush2.msra.mxu0 0.0
        %3852 = vmatprep.subr.mxu0 0.0
        %3853 = vmatpush2.msra.mxu0 0.0
        %3854 = vmatprep.subr.mxu0 0.0
        %3855 = vmatpush2.msra.mxu0 0.0
        %3856 = vmatprep.subr.mxu0 0.0
        %3857 = vmatpush2.msra.mxu0 0.0
        %3858 = vmatprep.subr.mxu0 0.0
        %3859 = vmatpush2.msra.mxu0 0.0
        %3860 = vmatprep.subr.mxu0 0.0
        %3861 = vmatpush2.msra.mxu0 0.0
        %3862 = vmatprep.subr.mxu0 0.0
        %3863 = vmatpush2.msra.mxu0 0.0
        %3864 = vmatprep.subr.mxu0 0.0
        %3865 = vmatpush2.msra.mxu0 0.0
        %3866 = vmatprep.subr.mxu0 0.0
        %3867 = vmatpush2.msra.mxu0 0.0
        %3868 = vmatprep.subr.mxu0 0.0
        %3869 = vmatpush2.msra.mxu0 0.0
        %3870 = vmatprep.subr.mxu0 0.0
        %3871 = vmatpush2.msra.mxu0 0.0
        %3872 = vmatprep.subr.mxu0 0.0
        %3873 = vmatpush2.msra.mxu0 0.0
        %3874 = vmatprep.subr.mxu0 0.0
        %3875 = vmatpush2.msra.mxu0 0.0
        %3876 = vmatprep.subr.mxu0 0.0
        %3877 = vmatpush2.msra.mxu0 0.0
        %3878 = vmatprep.mubr.f32.mxu0 0.0
        %v3879 = vand.u32 %v3326, 4294901760
        %v3880 = vsub.f32 %v3326, %v3879
        %v3881 = vand.u32 %v3880, 4294901760
        %v3882 = vsub.f32 %v3880, %v3881
        %v3883 = vand.u32 %v3882, 4294901760
        %3884 = vmatmul.mubr.f32.gmra.mxu0 %v3883
        %v3885 = vpop.f32.mrf.mxu0
        %v3886 = vadd.f32 %v3323, %v3885
        %v3887 = vpop.f32.mrf.mxu0
        %v3888 = vadd.f32 %v3323, %v3887
        %3889 = vdwg.mxu0
        %3890 = vmatprep.subr.mxu0 0.0
        %3891 = vmatpush1.msra.mxu0 0.0
        %3892 = vmatprep.subr.mxu0 0.0
        %3893 = vmatpush1.msra.mxu0 0.0
        %3894 = vmatprep.subr.mxu0 0.0
        %3895 = vmatpush1.msra.mxu0 0.0
        %3896 = vmatprep.subr.mxu0 0.0
        %3897 = vmatpush1.msra.mxu0 0.0
        %3898 = vmatprep.subr.mxu0 0.0
        %3899 = vmatpush1.msra.mxu0 0.0
        %3900 = vmatprep.subr.mxu0 0.0
        %3901 = vmatpush1.msra.mxu0 0.0
        %3902 = vmatprep.subr.mxu0 0.0
        %3903 = vmatpush1.msra.mxu0 0.0
        %3904 = vmatprep.subr.mxu0 0.0
        %3905 = vmatpush1.msra.mxu0 0.0
        %3906 = vmatprep.subr.mxu0 0.0
        %3907 = vmatpush1.msra.mxu0 0.0
        %3908 = vmatprep.subr.mxu0 0.0
        %3909 = vmatpush1.msra.mxu0 0.0
        %3910 = vmatprep.subr.mxu0 0.0
        %3911 = vmatpush1.msra.mxu0 0.0
        %3912 = vmatprep.subr.mxu0 0.0
        %3913 = vmatpush1.msra.mxu0 0.0
        %3914 = vmatprep.subr.mxu0 0.0
        %3915 = vmatpush1.msra.mxu0 0.0
        %3916 = vmatprep.subr.mxu0 0.0
        %3917 = vmatpush1.msra.mxu0 0.0
        %3918 = vmatprep.subr.mxu0 0.0
        %3919 = vmatpush1.msra.mxu0 0.0
        %v3920 = vand.u32 %v3339, 4294901760
        %v3921 = vsub.f32 %v3339, %v3920
        %v3922 = vand.u32 %v3921, 4294901760
        %v3923 = vsub.f32 %v3921, %v3922
        %v3924 = vand.u32 %v3923, 4294901760
        %3925 = vmatprep.subr.mxu0 %v3924
        %v3926 = vand.u32 %v3336, 4294901760
        %v3927 = vsub.f32 %v3336, %v3926
        %v3928 = vand.u32 %v3927, 4294901760
        %v3929 = vsub.f32 %v3927, %v3928
        %v3930 = vand.u32 %v3929, 4294901760
        %3931 = vmatpush1.msra.mxu0 %v3930
        %3932 = vmatprep.subr.mxu0 0.0
        %3933 = vmatpush2.msra.mxu0 0.0
        %3934 = vmatprep.subr.mxu0 0.0
        %3935 = vmatpush2.msra.mxu0 0.0
        %3936 = vmatprep.subr.mxu0 0.0
        %3937 = vmatpush2.msra.mxu0 0.0
        %3938 = vmatprep.subr.mxu0 0.0
        %3939 = vmatpush2.msra.mxu0 0.0
        %3940 = vmatprep.subr.mxu0 0.0
        %3941 = vmatpush2.msra.mxu0 0.0
        %3942 = vmatprep.subr.mxu0 0.0
        %3943 = vmatpush2.msra.mxu0 0.0
        %3944 = vmatprep.subr.mxu0 0.0
        %3945 = vmatpush2.msra.mxu0 0.0
        %3946 = vmatprep.subr.mxu0 0.0
        %3947 = vmatpush2.msra.mxu0 0.0
        %3948 = vmatprep.subr.mxu0 0.0
        %3949 = vmatpush2.msra.mxu0 0.0
        %3950 = vmatprep.subr.mxu0 0.0
        %3951 = vmatpush2.msra.mxu0 0.0
        %3952 = vmatprep.subr.mxu0 0.0
        %3953 = vmatpush2.msra.mxu0 0.0
        %3954 = vmatprep.subr.mxu0 0.0
        %3955 = vmatpush2.msra.mxu0 0.0
        %3956 = vmatprep.subr.mxu0 0.0
        %3957 = vmatpush2.msra.mxu0 0.0
        %3958 = vmatprep.subr.mxu0 0.0
        %3959 = vmatpush2.msra.mxu0 0.0
        %3960 = vmatprep.subr.mxu0 0.0
        %3961 = vmatpush2.msra.mxu0 0.0
        %3962 = vmatprep.subr.mxu0 0.0
        %3963 = vmatpush2.msra.mxu0 0.0
        %3964 = vmatprep.mubr.f32.mxu0 0.0
        %v3965 = vand.u32 %v3326, 4294901760
        %3966 = vmatmul.mubr.f32.gmra.mxu0 %v3965
        %v3967 = vpop.f32.mrf.mxu0
        %v3968 = vadd.f32 %v3886, %v3967
        %v3969 = vpop.f32.mrf.mxu0
        %v3970 = vadd.f32 %v3888, %v3969
        %3971 = vdwg.mxu0
        %3972 = vmatprep.subr.mxu0 0.0
        %3973 = vmatpush1.msra.mxu0 0.0
        %3974 = vmatprep.subr.mxu0 0.0
        %3975 = vmatpush1.msra.mxu0 0.0
        %3976 = vmatprep.subr.mxu0 0.0
        %3977 = vmatpush1.msra.mxu0 0.0
        %3978 = vmatprep.subr.mxu0 0.0
        %3979 = vmatpush1.msra.mxu0 0.0
        %3980 = vmatprep.subr.mxu0 0.0
        %3981 = vmatpush1.msra.mxu0 0.0
        %3982 = vmatprep.subr.mxu0 0.0
        %3983 = vmatpush1.msra.mxu0 0.0
        %3984 = vmatprep.subr.mxu0 0.0
        %3985 = vmatpush1.msra.mxu0 0.0
        %3986 = vmatprep.subr.mxu0 0.0
        %3987 = vmatpush1.msra.mxu0 0.0
        %3988 = vmatprep.subr.mxu0 0.0
        %3989 = vmatpush1.msra.mxu0 0.0
        %3990 = vmatprep.subr.mxu0 0.0
        %3991 = vmatpush1.msra.mxu0 0.0
        %3992 = vmatprep.subr.mxu0 0.0
        %3993 = vmatpush1.msra.mxu0 0.0
        %3994 = vmatprep.subr.mxu0 0.0
        %3995 = vmatpush1.msra.mxu0 0.0
        %3996 = vmatprep.subr.mxu0 0.0
        %3997 = vmatpush1.msra.mxu0 0.0
        %3998 = vmatprep.subr.mxu0 0.0
        %3999 = vmatpush1.msra.mxu0 0.0
        %4000 = vmatprep.subr.mxu0 0.0
        %4001 = vmatpush1.msra.mxu0 0.0
        %v4002 = vand.u32 %v3339, 4294901760
        %v4003 = vsub.f32 %v3339, %v4002
        %4004 = vmatprep.subr.mxu0 %v4003
        %v4005 = vand.u32 %v3336, 4294901760
        %v4006 = vsub.f32 %v3336, %v4005
        %4007 = vmatpush1.msra.mxu0 %v4006
        %4008 = vmatprep.subr.mxu0 0.0
        %4009 = vmatpush2.msra.mxu0 0.0
        %4010 = vmatprep.subr.mxu0 0.0
        %4011 = vmatpush2.msra.mxu0 0.0
        %4012 = vmatprep.subr.mxu0 0.0
        %4013 = vmatpush2.msra.mxu0 0.0
        %4014 = vmatprep.subr.mxu0 0.0
        %4015 = vmatpush2.msra.mxu0 0.0
        %4016 = vmatprep.subr.mxu0 0.0
        %4017 = vmatpush2.msra.mxu0 0.0
        %4018 = vmatprep.subr.mxu0 0.0
        %4019 = vmatpush2.msra.mxu0 0.0
        %4020 = vmatprep.subr.mxu0 0.0
        %4021 = vmatpush2.msra.mxu0 0.0
        %4022 = vmatprep.subr.mxu0 0.0
        %4023 = vmatpush2.msra.mxu0 0.0
        %4024 = vmatprep.subr.mxu0 0.0
        %4025 = vmatpush2.msra.mxu0 0.0
        %4026 = vmatprep.subr.mxu0 0.0
        %4027 = vmatpush2.msra.mxu0 0.0
        %4028 = vmatprep.subr.mxu0 0.0
        %4029 = vmatpush2.msra.mxu0 0.0
        %4030 = vmatprep.subr.mxu0 0.0
        %4031 = vmatpush2.msra.mxu0 0.0
        %4032 = vmatprep.subr.mxu0 0.0
        %4033 = vmatpush2.msra.mxu0 0.0
        %4034 = vmatprep.subr.mxu0 0.0
        %4035 = vmatpush2.msra.mxu0 0.0
        %4036 = vmatprep.subr.mxu0 0.0
        %4037 = vmatpush2.msra.mxu0 0.0
        %4038 = vmatprep.subr.mxu0 0.0
        %4039 = vmatpush2.msra.mxu0 0.0
        %4040 = vmatprep.mubr.f32.mxu0 0.0
        %v4041 = vand.u32 %v3326, 4294901760
        %v4042 = vsub.f32 %v3326, %v4041
        %4043 = vmatmul.mubr.f32.gmra.mxu0 %v4042
        %v4044 = vpop.f32.mrf.mxu0
        %v4045 = vadd.f32 %v3968, %v4044
        %v4046 = vpop.f32.mrf.mxu0
        %v4047 = vadd.f32 %v3970, %v4046
        %4048 = vdwg.mxu0
        %4049 = vmatprep.subr.mxu0 0.0
        %4050 = vmatpush1.msra.mxu0 0.0
        %4051 = vmatprep.subr.mxu0 0.0
        %4052 = vmatpush1.msra.mxu0 0.0
        %4053 = vmatprep.subr.mxu0 0.0
        %4054 = vmatpush1.msra.mxu0 0.0
        %4055 = vmatprep.subr.mxu0 0.0
        %4056 = vmatpush1.msra.mxu0 0.0
        %4057 = vmatprep.subr.mxu0 0.0
        %4058 = vmatpush1.msra.mxu0 0.0
        %4059 = vmatprep.subr.mxu0 0.0
        %4060 = vmatpush1.msra.mxu0 0.0
        %4061 = vmatprep.subr.mxu0 0.0
        %4062 = vmatpush1.msra.mxu0 0.0
        %4063 = vmatprep.subr.mxu0 0.0
        %4064 = vmatpush1.msra.mxu0 0.0
        %4065 = vmatprep.subr.mxu0 0.0
        %4066 = vmatpush1.msra.mxu0 0.0
        %4067 = vmatprep.subr.mxu0 0.0
        %4068 = vmatpush1.msra.mxu0 0.0
        %4069 = vmatprep.subr.mxu0 0.0
        %4070 = vmatpush1.msra.mxu0 0.0
        %4071 = vmatprep.subr.mxu0 0.0
        %4072 = vmatpush1.msra.mxu0 0.0
        %4073 = vmatprep.subr.mxu0 0.0
        %4074 = vmatpush1.msra.mxu0 0.0
        %4075 = vmatprep.subr.mxu0 0.0
        %4076 = vmatpush1.msra.mxu0 0.0
        %4077 = vmatprep.subr.mxu0 0.0
        %4078 = vmatpush1.msra.mxu0 0.0
        %v4079 = vand.u32 %v3339, 4294901760
        %4080 = vmatprep.subr.mxu0 %v4079
        %v4081 = vand.u32 %v3336, 4294901760
        %4082 = vmatpush1.msra.mxu0 %v4081
        %4083 = vmatprep.subr.mxu0 0.0
        %4084 = vmatpush2.msra.mxu0 0.0
        %4085 = vmatprep.subr.mxu0 0.0
        %4086 = vmatpush2.msra.mxu0 0.0
        %4087 = vmatprep.subr.mxu0 0.0
        %4088 = vmatpush2.msra.mxu0 0.0
        %4089 = vmatprep.subr.mxu0 0.0
        %4090 = vmatpush2.msra.mxu0 0.0
        %4091 = vmatprep.subr.mxu0 0.0
        %4092 = vmatpush2.msra.mxu0 0.0
        %4093 = vmatprep.subr.mxu0 0.0
        %4094 = vmatpush2.msra.mxu0 0.0
        %4095 = vmatprep.subr.mxu0 0.0
        %4096 = vmatpush2.msra.mxu0 0.0
        %4097 = vmatprep.subr.mxu0 0.0
        %4098 = vmatpush2.msra.mxu0 0.0
        %4099 = vmatprep.subr.mxu0 0.0
        %4100 = vmatpush2.msra.mxu0 0.0
        %4101 = vmatprep.subr.mxu0 0.0
        %4102 = vmatpush2.msra.mxu0 0.0
        %4103 = vmatprep.subr.mxu0 0.0
        %4104 = vmatpush2.msra.mxu0 0.0
        %4105 = vmatprep.subr.mxu0 0.0
        %4106 = vmatpush2.msra.mxu0 0.0
        %4107 = vmatprep.subr.mxu0 0.0
        %4108 = vmatpush2.msra.mxu0 0.0
        %4109 = vmatprep.subr.mxu0 0.0
        %4110 = vmatpush2.msra.mxu0 0.0
        %4111 = vmatprep.subr.mxu0 0.0
        %4112 = vmatpush2.msra.mxu0 0.0
        %4113 = vmatprep.subr.mxu0 0.0
        %4114 = vmatpush2.msra.mxu0 0.0
        %4115 = vmatprep.mubr.f32.mxu0 0.0
        %v4116 = vand.u32 %v3326, 4294901760
        %v4117 = vsub.f32 %v3326, %v4116
        %v4118 = vand.u32 %v4117, 4294901760
        %4119 = vmatmul.mubr.f32.gmra.mxu0 %v4118
        %v4120 = vpop.f32.mrf.mxu0
        %v4121 = vadd.f32 %v4045, %v4120
        %v4122 = vpop.f32.mrf.mxu0
        %v4123 = vadd.f32 %v4047, %v4122
        %4124 = vdwg.mxu0
        %4125 = vmatprep.subr.mxu0 0.0
        %4126 = vmatpush1.msra.mxu0 0.0
        %4127 = vmatprep.subr.mxu0 0.0
        %4128 = vmatpush1.msra.mxu0 0.0
        %4129 = vmatprep.subr.mxu0 0.0
        %4130 = vmatpush1.msra.mxu0 0.0
        %4131 = vmatprep.subr.mxu0 0.0
        %4132 = vmatpush1.msra.mxu0 0.0
        %4133 = vmatprep.subr.mxu0 0.0
        %4134 = vmatpush1.msra.mxu0 0.0
        %4135 = vmatprep.subr.mxu0 0.0
        %4136 = vmatpush1.msra.mxu0 0.0
        %4137 = vmatprep.subr.mxu0 0.0
        %4138 = vmatpush1.msra.mxu0 0.0
        %4139 = vmatprep.subr.mxu0 0.0
        %4140 = vmatpush1.msra.mxu0 0.0
        %4141 = vmatprep.subr.mxu0 0.0
        %4142 = vmatpush1.msra.mxu0 0.0
        %4143 = vmatprep.subr.mxu0 0.0
        %4144 = vmatpush1.msra.mxu0 0.0
        %4145 = vmatprep.subr.mxu0 0.0
        %4146 = vmatpush1.msra.mxu0 0.0
        %4147 = vmatprep.subr.mxu0 0.0
        %4148 = vmatpush1.msra.mxu0 0.0
        %4149 = vmatprep.subr.mxu0 0.0
        %4150 = vmatpush1.msra.mxu0 0.0
        %4151 = vmatprep.subr.mxu0 0.0
        %4152 = vmatpush1.msra.mxu0 0.0
        %4153 = vmatprep.subr.mxu0 0.0
        %4154 = vmatpush1.msra.mxu0 0.0
        %v4155 = vand.u32 %v3339, 4294901760
        %v4156 = vsub.f32 %v3339, %v4155
        %v4157 = vand.u32 %v4156, 4294901760
        %4158 = vmatprep.subr.mxu0 %v4157
        %v4159 = vand.u32 %v3336, 4294901760
        %v4160 = vsub.f32 %v3336, %v4159
        %v4161 = vand.u32 %v4160, 4294901760
        %4162 = vmatpush1.msra.mxu0 %v4161
        %4163 = vmatprep.subr.mxu0 0.0
        %4164 = vmatpush2.msra.mxu0 0.0
        %4165 = vmatprep.subr.mxu0 0.0
        %4166 = vmatpush2.msra.mxu0 0.0
        %4167 = vmatprep.subr.mxu0 0.0
        %4168 = vmatpush2.msra.mxu0 0.0
        %4169 = vmatprep.subr.mxu0 0.0
        %4170 = vmatpush2.msra.mxu0 0.0
        %4171 = vmatprep.subr.mxu0 0.0
        %4172 = vmatpush2.msra.mxu0 0.0
        %4173 = vmatprep.subr.mxu0 0.0
        %4174 = vmatpush2.msra.mxu0 0.0
        %4175 = vmatprep.subr.mxu0 0.0
        %4176 = vmatpush2.msra.mxu0 0.0
        %4177 = vmatprep.subr.mxu0 0.0
        %4178 = vmatpush2.msra.mxu0 0.0
        %4179 = vmatprep.subr.mxu0 0.0
        %4180 = vmatpush2.msra.mxu0 0.0
        %4181 = vmatprep.subr.mxu0 0.0
        %4182 = vmatpush2.msra.mxu0 0.0
        %4183 = vmatprep.subr.mxu0 0.0
        %4184 = vmatpush2.msra.mxu0 0.0
        %4185 = vmatprep.subr.mxu0 0.0
        %4186 = vmatpush2.msra.mxu0 0.0
        %4187 = vmatprep.subr.mxu0 0.0
        %4188 = vmatpush2.msra.mxu0 0.0
        %4189 = vmatprep.subr.mxu0 0.0
        %4190 = vmatpush2.msra.mxu0 0.0
        %4191 = vmatprep.subr.mxu0 0.0
        %4192 = vmatpush2.msra.mxu0 0.0
        %4193 = vmatprep.subr.mxu0 0.0
        %4194 = vmatpush2.msra.mxu0 0.0
        %4195 = vmatprep.mubr.f32.mxu0 0.0
        %v4196 = vand.u32 %v3326, 4294901760
        %4197 = vmatmul.mubr.f32.gmra.mxu0 %v4196
        %v4198 = vpop.f32.mrf.mxu0
        %v4199 = vadd.f32 %v4121, %v4198
        %v4200 = vpop.f32.mrf.mxu0
        %v4201 = vadd.f32 %v4123, %v4200
        %4202 = vdwg.mxu0
        %4203 = vmatprep.subr.mxu0 0.0
        %4204 = vmatpush1.msra.mxu0 0.0
        %4205 = vmatprep.subr.mxu0 0.0
        %4206 = vmatpush1.msra.mxu0 0.0
        %4207 = vmatprep.subr.mxu0 0.0
        %4208 = vmatpush1.msra.mxu0 0.0
        %4209 = vmatprep.subr.mxu0 0.0
        %4210 = vmatpush1.msra.mxu0 0.0
        %4211 = vmatprep.subr.mxu0 0.0
        %4212 = vmatpush1.msra.mxu0 0.0
        %4213 = vmatprep.subr.mxu0 0.0
        %4214 = vmatpush1.msra.mxu0 0.0
        %4215 = vmatprep.subr.mxu0 0.0
        %4216 = vmatpush1.msra.mxu0 0.0
        %4217 = vmatprep.subr.mxu0 0.0
        %4218 = vmatpush1.msra.mxu0 0.0
        %4219 = vmatprep.subr.mxu0 0.0
        %4220 = vmatpush1.msra.mxu0 0.0
        %4221 = vmatprep.subr.mxu0 0.0
        %4222 = vmatpush1.msra.mxu0 0.0
        %4223 = vmatprep.subr.mxu0 0.0
        %4224 = vmatpush1.msra.mxu0 0.0
        %4225 = vmatprep.subr.mxu0 0.0
        %4226 = vmatpush1.msra.mxu0 0.0
        %4227 = vmatprep.subr.mxu0 0.0
        %4228 = vmatpush1.msra.mxu0 0.0
        %4229 = vmatprep.subr.mxu0 0.0
        %4230 = vmatpush1.msra.mxu0 0.0
        %4231 = vmatprep.subr.mxu0 0.0
        %4232 = vmatpush1.msra.mxu0 0.0
        %v4233 = vand.u32 %v3339, 4294901760
        %4234 = vmatprep.subr.mxu0 %v4233
        %v4235 = vand.u32 %v3336, 4294901760
        %4236 = vmatpush1.msra.mxu0 %v4235
        %4237 = vmatprep.subr.mxu0 0.0
        %4238 = vmatpush2.msra.mxu0 0.0
        %4239 = vmatprep.subr.mxu0 0.0
        %4240 = vmatpush2.msra.mxu0 0.0
        %4241 = vmatprep.subr.mxu0 0.0
        %4242 = vmatpush2.msra.mxu0 0.0
        %4243 = vmatprep.subr.mxu0 0.0
        %4244 = vmatpush2.msra.mxu0 0.0
        %4245 = vmatprep.subr.mxu0 0.0
        %4246 = vmatpush2.msra.mxu0 0.0
        %4247 = vmatprep.subr.mxu0 0.0
        %4248 = vmatpush2.msra.mxu0 0.0
        %4249 = vmatprep.subr.mxu0 0.0
        %4250 = vmatpush2.msra.mxu0 0.0
        %4251 = vmatprep.subr.mxu0 0.0
        %4252 = vmatpush2.msra.mxu0 0.0
        %4253 = vmatprep.subr.mxu0 0.0
        %4254 = vmatpush2.msra.mxu0 0.0
        %4255 = vmatprep.subr.mxu0 0.0
        %4256 = vmatpush2.msra.mxu0 0.0
        %4257 = vmatprep.subr.mxu0 0.0
        %4258 = vmatpush2.msra.mxu0 0.0
        %4259 = vmatprep.subr.mxu0 0.0
        %4260 = vmatpush2.msra.mxu0 0.0
        %4261 = vmatprep.subr.mxu0 0.0
        %4262 = vmatpush2.msra.mxu0 0.0
        %4263 = vmatprep.subr.mxu0 0.0
        %4264 = vmatpush2.msra.mxu0 0.0
        %4265 = vmatprep.subr.mxu0 0.0
        %4266 = vmatpush2.msra.mxu0 0.0
        %4267 = vmatprep.subr.mxu0 0.0
        %4268 = vmatpush2.msra.mxu0 0.0
        %4269 = vmatprep.mubr.f32.mxu0 0.0
        %v4270 = vand.u32 %v3326, 4294901760
        %4271 = vmatmul.mubr.f32.gmra.mxu0 %v4270
        %v4272 = vpop.f32.mrf.mxu0
        %v4273 = vadd.f32 %v4199, %v4272
        %v4274 = vpop.f32.mrf.mxu0
        %v4275 = vadd.f32 %v4201, %v4274
        %4276 = vdwg.mxu0
        %4277 = vmatprep.subr.mxu0 0.0
        %4278 = vmatpush1.msra.mxu0 0.0
        %4279 = vmatprep.subr.mxu0 0.0
        %4280 = vmatpush1.msra.mxu0 0.0
        %4281 = vmatprep.subr.mxu0 0.0
        %4282 = vmatpush1.msra.mxu0 0.0
        %4283 = vmatprep.subr.mxu0 0.0
        %4284 = vmatpush1.msra.mxu0 0.0
        %4285 = vmatprep.subr.mxu0 0.0
        %4286 = vmatpush1.msra.mxu0 0.0
        %4287 = vmatprep.subr.mxu0 0.0
        %4288 = vmatpush1.msra.mxu0 0.0
        %4289 = vmatprep.subr.mxu0 0.0
        %4290 = vmatpush1.msra.mxu0 0.0
        %4291 = vmatprep.subr.mxu0 0.0
        %4292 = vmatpush1.msra.mxu0 0.0
        %4293 = vmatprep.subr.mxu0 0.0
        %4294 = vmatpush1.msra.mxu0 0.0
        %4295 = vmatprep.subr.mxu0 0.0
        %4296 = vmatpush1.msra.mxu0 0.0
        %4297 = vmatprep.subr.mxu0 0.0
        %4298 = vmatpush1.msra.mxu0 0.0
        %4299 = vmatprep.subr.mxu0 0.0
        %4300 = vmatpush1.msra.mxu0 0.0
        %4301 = vmatprep.subr.mxu0 0.0
        %4302 = vmatpush1.msra.mxu0 0.0
        %4303 = vmatprep.subr.mxu0 0.0
        %4304 = vmatpush1.msra.mxu0 0.0
        %4305 = vmatprep.subr.mxu0 0.0
        %4306 = vmatpush1.msra.mxu0 0.0
        %v4307 = vand.u32 %v3345, 4294901760
        %4308 = vmatprep.subr.mxu0 %v4307
        %v4309 = vand.u32 %v3342, 4294901760
        %4310 = vmatpush1.msra.mxu0 %v4309
        %4311 = vmatprep.subr.mxu0 0.0
        %4312 = vmatpush2.msra.mxu0 0.0
        %4313 = vmatprep.subr.mxu0 0.0
        %4314 = vmatpush2.msra.mxu0 0.0
        %4315 = vmatprep.subr.mxu0 0.0
        %4316 = vmatpush2.msra.mxu0 0.0
        %4317 = vmatprep.subr.mxu0 0.0
        %4318 = vmatpush2.msra.mxu0 0.0
        %4319 = vmatprep.subr.mxu0 0.0
        %4320 = vmatpush2.msra.mxu0 0.0
        %4321 = vmatprep.subr.mxu0 0.0
        %4322 = vmatpush2.msra.mxu0 0.0
        %4323 = vmatprep.subr.mxu0 0.0
        %4324 = vmatpush2.msra.mxu0 0.0
        %4325 = vmatprep.subr.mxu0 0.0
        %4326 = vmatpush2.msra.mxu0 0.0
        %4327 = vmatprep.subr.mxu0 0.0
        %4328 = vmatpush2.msra.mxu0 0.0
        %4329 = vmatprep.subr.mxu0 0.0
        %4330 = vmatpush2.msra.mxu0 0.0
        %4331 = vmatprep.subr.mxu0 0.0
        %4332 = vmatpush2.msra.mxu0 0.0
        %4333 = vmatprep.subr.mxu0 0.0
        %4334 = vmatpush2.msra.mxu0 0.0
        %4335 = vmatprep.subr.mxu0 0.0
        %4336 = vmatpush2.msra.mxu0 0.0
        %4337 = vmatprep.subr.mxu0 0.0
        %4338 = vmatpush2.msra.mxu0 0.0
        %4339 = vmatprep.subr.mxu0 0.0
        %4340 = vmatpush2.msra.mxu0 0.0
        %4341 = vmatprep.subr.mxu0 0.0
        %4342 = vmatpush2.msra.mxu0 0.0
        %4343 = vmatprep.mubr.f32.mxu0 0.0
        %v4344 = vand.u32 %v3326, 4294901760
        %v4345 = vsub.f32 %v3326, %v4344
        %v4346 = vand.u32 %v4345, 4294901760
        %v4347 = vsub.f32 %v4345, %v4346
        %v4348 = vand.u32 %v4347, 4294901760
        %4349 = vmatmul.mubr.f32.gmra.mxu0 %v4348
        %v4350 = vpop.f32.mrf.mxu0
        %v4351 = vadd.f32 %v3323, %v4350
        %v4352 = vpop.f32.mrf.mxu0
        %v4353 = vadd.f32 %v3323, %v4352
        %4354 = vdwg.mxu0
        %4355 = vmatprep.subr.mxu0 0.0
        %4356 = vmatpush1.msra.mxu0 0.0
        %4357 = vmatprep.subr.mxu0 0.0
        %4358 = vmatpush1.msra.mxu0 0.0
        %4359 = vmatprep.subr.mxu0 0.0
        %4360 = vmatpush1.msra.mxu0 0.0
        %4361 = vmatprep.subr.mxu0 0.0
        %4362 = vmatpush1.msra.mxu0 0.0
        %4363 = vmatprep.subr.mxu0 0.0
        %4364 = vmatpush1.msra.mxu0 0.0
        %4365 = vmatprep.subr.mxu0 0.0
        %4366 = vmatpush1.msra.mxu0 0.0
        %4367 = vmatprep.subr.mxu0 0.0
        %4368 = vmatpush1.msra.mxu0 0.0
        %4369 = vmatprep.subr.mxu0 0.0
        %4370 = vmatpush1.msra.mxu0 0.0
        %4371 = vmatprep.subr.mxu0 0.0
        %4372 = vmatpush1.msra.mxu0 0.0
        %4373 = vmatprep.subr.mxu0 0.0
        %4374 = vmatpush1.msra.mxu0 0.0
        %4375 = vmatprep.subr.mxu0 0.0
        %4376 = vmatpush1.msra.mxu0 0.0
        %4377 = vmatprep.subr.mxu0 0.0
        %4378 = vmatpush1.msra.mxu0 0.0
        %4379 = vmatprep.subr.mxu0 0.0
        %4380 = vmatpush1.msra.mxu0 0.0
        %4381 = vmatprep.subr.mxu0 0.0
        %4382 = vmatpush1.msra.mxu0 0.0
        %4383 = vmatprep.subr.mxu0 0.0
        %4384 = vmatpush1.msra.mxu0 0.0
        %v4385 = vand.u32 %v3345, 4294901760
        %v4386 = vsub.f32 %v3345, %v4385
        %v4387 = vand.u32 %v4386, 4294901760
        %v4388 = vsub.f32 %v4386, %v4387
        %v4389 = vand.u32 %v4388, 4294901760
        %4390 = vmatprep.subr.mxu0 %v4389
        %v4391 = vand.u32 %v3342, 4294901760
        %v4392 = vsub.f32 %v3342, %v4391
        %v4393 = vand.u32 %v4392, 4294901760
        %v4394 = vsub.f32 %v4392, %v4393
        %v4395 = vand.u32 %v4394, 4294901760
        %4396 = vmatpush1.msra.mxu0 %v4395
        %4397 = vmatprep.subr.mxu0 0.0
        %4398 = vmatpush2.msra.mxu0 0.0
        %4399 = vmatprep.subr.mxu0 0.0
        %4400 = vmatpush2.msra.mxu0 0.0
        %4401 = vmatprep.subr.mxu0 0.0
        %4402 = vmatpush2.msra.mxu0 0.0
        %4403 = vmatprep.subr.mxu0 0.0
        %4404 = vmatpush2.msra.mxu0 0.0
        %4405 = vmatprep.subr.mxu0 0.0
        %4406 = vmatpush2.msra.mxu0 0.0
        %4407 = vmatprep.subr.mxu0 0.0
        %4408 = vmatpush2.msra.mxu0 0.0
        %4409 = vmatprep.subr.mxu0 0.0
        %4410 = vmatpush2.msra.mxu0 0.0
        %4411 = vmatprep.subr.mxu0 0.0
        %4412 = vmatpush2.msra.mxu0 0.0
        %4413 = vmatprep.subr.mxu0 0.0
        %4414 = vmatpush2.msra.mxu0 0.0
        %4415 = vmatprep.subr.mxu0 0.0
        %4416 = vmatpush2.msra.mxu0 0.0
        %4417 = vmatprep.subr.mxu0 0.0
        %4418 = vmatpush2.msra.mxu0 0.0
        %4419 = vmatprep.subr.mxu0 0.0
        %4420 = vmatpush2.msra.mxu0 0.0
        %4421 = vmatprep.subr.mxu0 0.0
        %4422 = vmatpush2.msra.mxu0 0.0
        %4423 = vmatprep.subr.mxu0 0.0
        %4424 = vmatpush2.msra.mxu0 0.0
        %4425 = vmatprep.subr.mxu0 0.0
        %4426 = vmatpush2.msra.mxu0 0.0
        %4427 = vmatprep.subr.mxu0 0.0
        %4428 = vmatpush2.msra.mxu0 0.0
        %4429 = vmatprep.mubr.f32.mxu0 0.0
        %v4430 = vand.u32 %v3326, 4294901760
        %4431 = vmatmul.mubr.f32.gmra.mxu0 %v4430
        %v4432 = vpop.f32.mrf.mxu0
        %v4433 = vadd.f32 %v4351, %v4432
        %v4434 = vpop.f32.mrf.mxu0
        %v4435 = vadd.f32 %v4353, %v4434
        %4436 = vdwg.mxu0
        %4437 = vmatprep.subr.mxu0 0.0
        %4438 = vmatpush1.msra.mxu0 0.0
        %4439 = vmatprep.subr.mxu0 0.0
        %4440 = vmatpush1.msra.mxu0 0.0
        %4441 = vmatprep.subr.mxu0 0.0
        %4442 = vmatpush1.msra.mxu0 0.0
        %4443 = vmatprep.subr.mxu0 0.0
        %4444 = vmatpush1.msra.mxu0 0.0
        %4445 = vmatprep.subr.mxu0 0.0
        %4446 = vmatpush1.msra.mxu0 0.0
        %4447 = vmatprep.subr.mxu0 0.0
        %4448 = vmatpush1.msra.mxu0 0.0
        %4449 = vmatprep.subr.mxu0 0.0
        %4450 = vmatpush1.msra.mxu0 0.0
        %4451 = vmatprep.subr.mxu0 0.0
        %4452 = vmatpush1.msra.mxu0 0.0
        %4453 = vmatprep.subr.mxu0 0.0
        %4454 = vmatpush1.msra.mxu0 0.0
        %4455 = vmatprep.subr.mxu0 0.0
        %4456 = vmatpush1.msra.mxu0 0.0
        %4457 = vmatprep.subr.mxu0 0.0
        %4458 = vmatpush1.msra.mxu0 0.0
        %4459 = vmatprep.subr.mxu0 0.0
        %4460 = vmatpush1.msra.mxu0 0.0
        %4461 = vmatprep.subr.mxu0 0.0
        %4462 = vmatpush1.msra.mxu0 0.0
        %4463 = vmatprep.subr.mxu0 0.0
        %4464 = vmatpush1.msra.mxu0 0.0
        %4465 = vmatprep.subr.mxu0 0.0
        %4466 = vmatpush1.msra.mxu0 0.0
        %v4467 = vand.u32 %v3345, 4294901760
        %v4468 = vsub.f32 %v3345, %v4467
        %4469 = vmatprep.subr.mxu0 %v4468
        %v4470 = vand.u32 %v3342, 4294901760
        %v4471 = vsub.f32 %v3342, %v4470
        %4472 = vmatpush1.msra.mxu0 %v4471
        %4473 = vmatprep.subr.mxu0 0.0
        %4474 = vmatpush2.msra.mxu0 0.0
        %4475 = vmatprep.subr.mxu0 0.0
        %4476 = vmatpush2.msra.mxu0 0.0
        %4477 = vmatprep.subr.mxu0 0.0
        %4478 = vmatpush2.msra.mxu0 0.0
        %4479 = vmatprep.subr.mxu0 0.0
        %4480 = vmatpush2.msra.mxu0 0.0
        %4481 = vmatprep.subr.mxu0 0.0
        %4482 = vmatpush2.msra.mxu0 0.0
        %4483 = vmatprep.subr.mxu0 0.0
        %4484 = vmatpush2.msra.mxu0 0.0
        %4485 = vmatprep.subr.mxu0 0.0
        %4486 = vmatpush2.msra.mxu0 0.0
        %4487 = vmatprep.subr.mxu0 0.0
        %4488 = vmatpush2.msra.mxu0 0.0
        %4489 = vmatprep.subr.mxu0 0.0
        %4490 = vmatpush2.msra.mxu0 0.0
        %4491 = vmatprep.subr.mxu0 0.0
        %4492 = vmatpush2.msra.mxu0 0.0
        %4493 = vmatprep.subr.mxu0 0.0
        %4494 = vmatpush2.msra.mxu0 0.0
        %4495 = vmatprep.subr.mxu0 0.0
        %4496 = vmatpush2.msra.mxu0 0.0
        %4497 = vmatprep.subr.mxu0 0.0
        %4498 = vmatpush2.msra.mxu0 0.0
        %4499 = vmatprep.subr.mxu0 0.0
        %4500 = vmatpush2.msra.mxu0 0.0
        %4501 = vmatprep.subr.mxu0 0.0
        %4502 = vmatpush2.msra.mxu0 0.0
        %4503 = vmatprep.subr.mxu0 0.0
        %4504 = vmatpush2.msra.mxu0 0.0
        %4505 = vmatprep.mubr.f32.mxu0 0.0
        %v4506 = vand.u32 %v3326, 4294901760
        %v4507 = vsub.f32 %v3326, %v4506
        %4508 = vmatmul.mubr.f32.gmra.mxu0 %v4507
        %v4509 = vpop.f32.mrf.mxu0
        %v4510 = vadd.f32 %v4433, %v4509
        %v4511 = vpop.f32.mrf.mxu0
        %v4512 = vadd.f32 %v4435, %v4511
        %4513 = vdwg.mxu0
        %4514 = vmatprep.subr.mxu0 0.0
        %4515 = vmatpush1.msra.mxu0 0.0
        %4516 = vmatprep.subr.mxu0 0.0
        %4517 = vmatpush1.msra.mxu0 0.0
        %4518 = vmatprep.subr.mxu0 0.0
        %4519 = vmatpush1.msra.mxu0 0.0
        %4520 = vmatprep.subr.mxu0 0.0
        %4521 = vmatpush1.msra.mxu0 0.0
        %4522 = vmatprep.subr.mxu0 0.0
        %4523 = vmatpush1.msra.mxu0 0.0
        %4524 = vmatprep.subr.mxu0 0.0
        %4525 = vmatpush1.msra.mxu0 0.0
        %4526 = vmatprep.subr.mxu0 0.0
        %4527 = vmatpush1.msra.mxu0 0.0
        %4528 = vmatprep.subr.mxu0 0.0
        %4529 = vmatpush1.msra.mxu0 0.0
        %4530 = vmatprep.subr.mxu0 0.0
        %4531 = vmatpush1.msra.mxu0 0.0
        %4532 = vmatprep.subr.mxu0 0.0
        %4533 = vmatpush1.msra.mxu0 0.0
        %4534 = vmatprep.subr.mxu0 0.0
        %4535 = vmatpush1.msra.mxu0 0.0
        %4536 = vmatprep.subr.mxu0 0.0
        %4537 = vmatpush1.msra.mxu0 0.0
        %4538 = vmatprep.subr.mxu0 0.0
        %4539 = vmatpush1.msra.mxu0 0.0
        %4540 = vmatprep.subr.mxu0 0.0
        %4541 = vmatpush1.msra.mxu0 0.0
        %4542 = vmatprep.subr.mxu0 0.0
        %4543 = vmatpush1.msra.mxu0 0.0
        %v4544 = vand.u32 %v3345, 4294901760
        %4545 = vmatprep.subr.mxu0 %v4544
        %v4546 = vand.u32 %v3342, 4294901760
        %4547 = vmatpush1.msra.mxu0 %v4546
        %4548 = vmatprep.subr.mxu0 0.0
        %4549 = vmatpush2.msra.mxu0 0.0
        %4550 = vmatprep.subr.mxu0 0.0
        %4551 = vmatpush2.msra.mxu0 0.0
        %4552 = vmatprep.subr.mxu0 0.0
        %4553 = vmatpush2.msra.mxu0 0.0
        %4554 = vmatprep.subr.mxu0 0.0
        %4555 = vmatpush2.msra.mxu0 0.0
        %4556 = vmatprep.subr.mxu0 0.0
        %4557 = vmatpush2.msra.mxu0 0.0
        %4558 = vmatprep.subr.mxu0 0.0
        %4559 = vmatpush2.msra.mxu0 0.0
        %4560 = vmatprep.subr.mxu0 0.0
        %4561 = vmatpush2.msra.mxu0 0.0
        %4562 = vmatprep.subr.mxu0 0.0
        %4563 = vmatpush2.msra.mxu0 0.0
        %4564 = vmatprep.subr.mxu0 0.0
        %4565 = vmatpush2.msra.mxu0 0.0
        %4566 = vmatprep.subr.mxu0 0.0
        %4567 = vmatpush2.msra.mxu0 0.0
        %4568 = vmatprep.subr.mxu0 0.0
        %4569 = vmatpush2.msra.mxu0 0.0
        %4570 = vmatprep.subr.mxu0 0.0
        %4571 = vmatpush2.msra.mxu0 0.0
        %4572 = vmatprep.subr.mxu0 0.0
        %4573 = vmatpush2.msra.mxu0 0.0
        %4574 = vmatprep.subr.mxu0 0.0
        %4575 = vmatpush2.msra.mxu0 0.0
        %4576 = vmatprep.subr.mxu0 0.0
        %4577 = vmatpush2.msra.mxu0 0.0
        %4578 = vmatprep.subr.mxu0 0.0
        %4579 = vmatpush2.msra.mxu0 0.0
        %4580 = vmatprep.mubr.f32.mxu0 0.0
        %v4581 = vand.u32 %v3326, 4294901760
        %v4582 = vsub.f32 %v3326, %v4581
        %v4583 = vand.u32 %v4582, 4294901760
        %4584 = vmatmul.mubr.f32.gmra.mxu0 %v4583
        %v4585 = vpop.f32.mrf.mxu0
        %v4586 = vadd.f32 %v4510, %v4585
        %v4587 = vpop.f32.mrf.mxu0
        %v4588 = vadd.f32 %v4512, %v4587
        %4589 = vdwg.mxu0
        %4590 = vmatprep.subr.mxu0 0.0
        %4591 = vmatpush1.msra.mxu0 0.0
        %4592 = vmatprep.subr.mxu0 0.0
        %4593 = vmatpush1.msra.mxu0 0.0
        %4594 = vmatprep.subr.mxu0 0.0
        %4595 = vmatpush1.msra.mxu0 0.0
        %4596 = vmatprep.subr.mxu0 0.0
        %4597 = vmatpush1.msra.mxu0 0.0
        %4598 = vmatprep.subr.mxu0 0.0
        %4599 = vmatpush1.msra.mxu0 0.0
        %4600 = vmatprep.subr.mxu0 0.0
        %4601 = vmatpush1.msra.mxu0 0.0
        %4602 = vmatprep.subr.mxu0 0.0
        %4603 = vmatpush1.msra.mxu0 0.0
        %4604 = vmatprep.subr.mxu0 0.0
        %4605 = vmatpush1.msra.mxu0 0.0
        %4606 = vmatprep.subr.mxu0 0.0
        %4607 = vmatpush1.msra.mxu0 0.0
        %4608 = vmatprep.subr.mxu0 0.0
        %4609 = vmatpush1.msra.mxu0 0.0
        %4610 = vmatprep.subr.mxu0 0.0
        %4611 = vmatpush1.msra.mxu0 0.0
        %4612 = vmatprep.subr.mxu0 0.0
        %4613 = vmatpush1.msra.mxu0 0.0
        %4614 = vmatprep.subr.mxu0 0.0
        %4615 = vmatpush1.msra.mxu0 0.0
        %4616 = vmatprep.subr.mxu0 0.0
        %4617 = vmatpush1.msra.mxu0 0.0
        %4618 = vmatprep.subr.mxu0 0.0
        %4619 = vmatpush1.msra.mxu0 0.0
        %v4620 = vand.u32 %v3345, 4294901760
        %v4621 = vsub.f32 %v3345, %v4620
        %v4622 = vand.u32 %v4621, 4294901760
        %4623 = vmatprep.subr.mxu0 %v4622
        %v4624 = vand.u32 %v3342, 4294901760
        %v4625 = vsub.f32 %v3342, %v4624
        %v4626 = vand.u32 %v4625, 4294901760
        %4627 = vmatpush1.msra.mxu0 %v4626
        %4628 = vmatprep.subr.mxu0 0.0
        %4629 = vmatpush2.msra.mxu0 0.0
        %4630 = vmatprep.subr.mxu0 0.0
        %4631 = vmatpush2.msra.mxu0 0.0
        %4632 = vmatprep.subr.mxu0 0.0
        %4633 = vmatpush2.msra.mxu0 0.0
        %4634 = vmatprep.subr.mxu0 0.0
        %4635 = vmatpush2.msra.mxu0 0.0
        %4636 = vmatprep.subr.mxu0 0.0
        %4637 = vmatpush2.msra.mxu0 0.0
        %4638 = vmatprep.subr.mxu0 0.0
        %4639 = vmatpush2.msra.mxu0 0.0
        %4640 = vmatprep.subr.mxu0 0.0
        %4641 = vmatpush2.msra.mxu0 0.0
        %4642 = vmatprep.subr.mxu0 0.0
        %4643 = vmatpush2.msra.mxu0 0.0
        %4644 = vmatprep.subr.mxu0 0.0
        %4645 = vmatpush2.msra.mxu0 0.0
        %4646 = vmatprep.subr.mxu0 0.0
        %4647 = vmatpush2.msra.mxu0 0.0
        %4648 = vmatprep.subr.mxu0 0.0
        %4649 = vmatpush2.msra.mxu0 0.0
        %4650 = vmatprep.subr.mxu0 0.0
        %4651 = vmatpush2.msra.mxu0 0.0
        %4652 = vmatprep.subr.mxu0 0.0
        %4653 = vmatpush2.msra.mxu0 0.0
        %4654 = vmatprep.subr.mxu0 0.0
        %4655 = vmatpush2.msra.mxu0 0.0
        %4656 = vmatprep.subr.mxu0 0.0
        %4657 = vmatpush2.msra.mxu0 0.0
        %4658 = vmatprep.subr.mxu0 0.0
        %4659 = vmatpush2.msra.mxu0 0.0
        %4660 = vmatprep.mubr.f32.mxu0 0.0
        %v4661 = vand.u32 %v3326, 4294901760
        %4662 = vmatmul.mubr.f32.gmra.mxu0 %v4661
        %v4663 = vpop.f32.mrf.mxu0
        %v4664 = vadd.f32 %v4586, %v4663
        %v4665 = vpop.f32.mrf.mxu0
        %v4666 = vadd.f32 %v4588, %v4665
        %4667 = vdwg.mxu0
        %4668 = vmatprep.subr.mxu0 0.0
        %4669 = vmatpush1.msra.mxu0 0.0
        %4670 = vmatprep.subr.mxu0 0.0
        %4671 = vmatpush1.msra.mxu0 0.0
        %4672 = vmatprep.subr.mxu0 0.0
        %4673 = vmatpush1.msra.mxu0 0.0
        %4674 = vmatprep.subr.mxu0 0.0
        %4675 = vmatpush1.msra.mxu0 0.0
        %4676 = vmatprep.subr.mxu0 0.0
        %4677 = vmatpush1.msra.mxu0 0.0
        %4678 = vmatprep.subr.mxu0 0.0
        %4679 = vmatpush1.msra.mxu0 0.0
        %4680 = vmatprep.subr.mxu0 0.0
        %4681 = vmatpush1.msra.mxu0 0.0
        %4682 = vmatprep.subr.mxu0 0.0
        %4683 = vmatpush1.msra.mxu0 0.0
        %4684 = vmatprep.subr.mxu0 0.0
        %4685 = vmatpush1.msra.mxu0 0.0
        %4686 = vmatprep.subr.mxu0 0.0
        %4687 = vmatpush1.msra.mxu0 0.0
        %4688 = vmatprep.subr.mxu0 0.0
        %4689 = vmatpush1.msra.mxu0 0.0
        %4690 = vmatprep.subr.mxu0 0.0
        %4691 = vmatpush1.msra.mxu0 0.0
        %4692 = vmatprep.subr.mxu0 0.0
        %4693 = vmatpush1.msra.mxu0 0.0
        %4694 = vmatprep.subr.mxu0 0.0
        %4695 = vmatpush1.msra.mxu0 0.0
        %4696 = vmatprep.subr.mxu0 0.0
        %4697 = vmatpush1.msra.mxu0 0.0
        %v4698 = vand.u32 %v3345, 4294901760
        %4699 = vmatprep.subr.mxu0 %v4698
        %v4700 = vand.u32 %v3342, 4294901760
        %4701 = vmatpush1.msra.mxu0 %v4700
        %4702 = vmatprep.subr.mxu0 0.0
        %4703 = vmatpush2.msra.mxu0 0.0
        %4704 = vmatprep.subr.mxu0 0.0
        %4705 = vmatpush2.msra.mxu0 0.0
        %4706 = vmatprep.subr.mxu0 0.0
        %4707 = vmatpush2.msra.mxu0 0.0
        %4708 = vmatprep.subr.mxu0 0.0
        %4709 = vmatpush2.msra.mxu0 0.0
        %4710 = vmatprep.subr.mxu0 0.0
        %4711 = vmatpush2.msra.mxu0 0.0
        %4712 = vmatprep.subr.mxu0 0.0
        %4713 = vmatpush2.msra.mxu0 0.0
        %4714 = vmatprep.subr.mxu0 0.0
        %4715 = vmatpush2.msra.mxu0 0.0
        %4716 = vmatprep.subr.mxu0 0.0
        %4717 = vmatpush2.msra.mxu0 0.0
        %4718 = vmatprep.subr.mxu0 0.0
        %4719 = vmatpush2.msra.mxu0 0.0
        %4720 = vmatprep.subr.mxu0 0.0
        %4721 = vmatpush2.msra.mxu0 0.0
        %4722 = vmatprep.subr.mxu0 0.0
        %4723 = vmatpush2.msra.mxu0 0.0
        %4724 = vmatprep.subr.mxu0 0.0
        %4725 = vmatpush2.msra.mxu0 0.0
        %4726 = vmatprep.subr.mxu0 0.0
        %4727 = vmatpush2.msra.mxu0 0.0
        %4728 = vmatprep.subr.mxu0 0.0
        %4729 = vmatpush2.msra.mxu0 0.0
        %4730 = vmatprep.subr.mxu0 0.0
        %4731 = vmatpush2.msra.mxu0 0.0
        %4732 = vmatprep.subr.mxu0 0.0
        %4733 = vmatpush2.msra.mxu0 0.0
        %4734 = vmatprep.mubr.f32.mxu0 0.0
        %v4735 = vand.u32 %v3326, 4294901760
        %4736 = vmatmul.mubr.f32.gmra.mxu0 %v4735
        %v4737 = vpop.f32.mrf.mxu0
        %v4738 = vadd.f32 %v4664, %v4737
        %v4739 = vpop.f32.mrf.mxu0
        %v4740 = vadd.f32 %v4666, %v4739
        %4741 = vdwg.mxu0
        %v4742 = vxor.u32 %v3808, 2147483648
        %v4743 = vxor.u32 %v3810, 2147483648
        %v4744 = vxor.u32 %v4273, 2147483648
        %v4745 = vxor.u32 %v4275, 2147483648
        %v4746 = vxor.u32 %v4738, 2147483648
        %v4747 = vxor.u32 %v4740, 2147483648
        %v4748 = vmul.f32 %v4742, 1.442695
        %v4749 = vpow.pop %v4748
        %v4750 = vmul.f32 %v4743, 1.442695
        %v4751 = vpow.pop %v4750
        %v4752 = vmul.f32 %v4744, 1.442695
        %v4753 = vpow.pop %v4752
        %v4754 = vmul.f32 %v4745, 1.442695
        %v4755 = vpow.pop %v4754
        %v4756 = vmul.f32 %v4746, 1.442695
        %v4757 = vpow.pop %v4756
        %v4758 = vmul.f32 %v4747, 1.442695
        %v4759 = vpow.pop %v4758
        %v4760 = vadd.f32 %v4749, 1.0
        %v4761 = vadd.f32 %v4751, 1.0
        %v4762 = vadd.f32 %v4753, 1.0
        %v4763 = vadd.f32 %v4755, 1.0
        %v4764 = vadd.f32 %v4757, 1.0
        %v4765 = vadd.f32 %v4759, 1.0
        %v4766 = vrcp.pop %v4760
        %v4767 = vmul.f32 1.0, %v4766
        %v4768 = vrcp.pop %v4761
        %v4769 = vmul.f32 1.0, %v4768
        %v4770 = vrcp.pop %v4762
        %v4771 = vmul.f32 1.0, %v4770
        %v4772 = vrcp.pop %v4763
        %v4773 = vmul.f32 1.0, %v4772
        %v4774 = vrcp.pop %v4764
        %v4775 = vmul.f32 1.0, %v4774
        %v4776 = vrcp.pop %v4765
        %v4777 = vmul.f32 1.0, %v4776
        %v4784 = vcombine.low %v4767, %v4769
        %v4785 = vcombine.low %v4771, %v4773
        %v4786 = vcombine.low %v4775, %v4777
        %v4788 = vunpack.c.l.s4 1966171168
        %v4789 = vunpack.c.0.s8 %v4788
        %v4790 = vlaneseq
        %v4791 = vshrl.u32 %v4790, 7
        %v4792 = vsub.s32 %v4789, %v4791
        %v4793 = vrot.slane %v4784, %v4792
        %v4795 = vunpack.c.l.s4 1966171168
        %v4796 = vunpack.c.0.s8 %v4795
        %v4797 = vlaneseq
        %v4798 = vshrl.u32 %v4797, 7
        %v4799 = vsub.s32 %v4796, %v4798
        %v4800 = vrot.slane %v4785, %v4799
        %v4802 = vunpack.c.l.s4 1966171168
        %v4803 = vunpack.c.0.s8 %v4802
        %v4804 = vlaneseq
        %v4805 = vshrl.u32 %v4804, 7
        %v4806 = vsub.s32 %v4803, %v4805
        %v4807 = vrot.slane %v4786, %v4806
        %v4808 = vcombine.low %v4793, %v4800
        %v4810 = vunpack.c.l.s4 1966171168
        %v4811 = vunpack.c.0.s8 %v4810
        %v4812 = vlaneseq
        %v4813 = vshrl.u32 %v4812, 7
        %v4814 = vsub.s32 %v4811, %v4813
        %v4815 = vrot.slane %v4808, %v4814
        %v4817 = vunpack.c.l.s4 1966171168
        %v4818 = vunpack.c.0.s8 %v4817
        %v4819 = vlaneseq
        %v4820 = vshrl.u32 %v4819, 7
        %v4821 = vsub.s32 %v4818, %v4820
        %v4822 = vrot.slane %v4807, %v4821
        %v4823 = vcombine.low %v4815, %v4822
        %v4825 = vlaneseq
        %vm4826 = vcmp.ge.s32.totalorder %v4825, 0
        %vm4827 = vcmp.lt.s32.totalorder %v4825, 768
        %vm4828 = vmand %vm4826, %vm4827
        %4829 = vst.msk [vmem:[%s298] sm:$0x3f] %vm4828, %v4823
        %s4830 = sand.u32 %s186, 1
        %s4831 = scalar_lea.sflag [#allocation5], %s4830
        %s4832 = sand.u32 %s186, 1
        %s4833 = smul.addr %s4832, 6
        %s4834 = scalar_lea.vmem [#allocation6], %s4833
        // Predicated region
        $region53: #{tpu_custom_call.1} parent=47 // pred_check
          %p4835 = pneg %p196
        $region54: #{tpu_custom_call.1} parent=47 // pred_check_branch
          %4837 = sbr.rel (%p4835) target = $region56
        $region55: #{tpu_custom_call.1} parent=47 // pred_region
          %s4838 = smul.u32 6, %s26
          %s4840 = ssub.s32 96, 96
          %4841 = vsyncadd %s4831, %s4840
          %s4842 = smul.addr %s4838, 16
          %s4843 = scalar_lea.hbm %s7, %s4842
          %s4845 = sshll.u32 %s4834, 4
          %s4846 = int_to_ptr.vmem [resolvable:$true] %s4845
          %4848 = dma.vmem_to_hbm [thread:$0]  %s4846, 96, %s4843, %s4831
        $region56: #{tpu_custom_call.1} parent=47 // pred_fallthru
          _
      $region48: #{tpu_custom_call.1} parent=5 // pred_fallthru
        _
      %p4849 = scmp.le.s32.totalorder 2, %s21
      // Predicated region
      $region57: #{tpu_custom_call.1} parent=5 // pred_check
        %p4850 = pneg %p4849
      $region58: #{tpu_custom_call.1} parent=5 // pred_check_branch
        %4852 = sbr.rel (%p4850) target = $region60
      $region59: #{tpu_custom_call.1} parent=5 // pred_region
        %s4853 = ssub.s32 %s21, 2
        // Predicated region
        $region61: #{tpu_custom_call.1} parent=59 // pred_check
          %p4854 = pneg %p202
        $region62: #{tpu_custom_call.1} parent=59 // pred_check_branch
          %4856 = sbr.rel (%p4854) target = $region64
        $region63: #{tpu_custom_call.1} parent=59 // pred_region
          %s4857 = sand.u32 %s187, 1
          %s4858 = scalar_lea.sflag [#allocation5], %s4857
          %s4859 = sand.u32 %s187, 1
          %s4860 = smul.addr %s4859, 6
          %s4861 = scalar_lea.vmem [#allocation6], %s4860
          %4862 = dma.done %s4858, 96
        $region64: #{tpu_custom_call.1} parent=59 // pred_fallthru
          _
      $region60: #{tpu_custom_call.1} parent=5 // pred_fallthru
        _
    $region6: #{tpu_custom_call.1} parent=1 // loop_footer
      %s25 = sadd.s32 1, %s21
    $region7: #{tpu_custom_call.1} parent=1 // loop_footer_branch
      %20 = sbr.rel target = $region3
    $region8: #{tpu_custom_call.1} parent=1 // loop_exit
      _
    %4863 = vsyncpa [#allocation4], 1
    %s4864 = scalar_lea.sflag [#allocation4], 1
    %4865 = vsyncpa %s4864, 1
    %4866 = vsyncpa [#allocation5], 1
    %s4867 = scalar_lea.sflag [#allocation5], 1
    %4868 = vsyncpa %s4867, 1

</llo_original>
